<compile_context>
chip_gen: v6e
topology: v6e:2x2x1
jax: 0.10.0
libtpu: 0.0.40
codegen_flags: <defaults>
</compile_context>

<pallas_src>
import functools

import jax
import jax.numpy as jnp
from jax.experimental import pallas as pl
from jax.experimental.pallas import tpu as pltpu

_LN_EPS = 1e-5
_INV_SQRT2 = 0.7071067811865476


# ---------------------------------------------------------------------------
# Small helpers (row tiling / padding)
# ---------------------------------------------------------------------------
def _row_tile(M, cap=512):
    """Large row tile: whole M (rounded up to a multiple of 8) if small, else `cap`."""
    if M >= cap:
        return cap
    return max(8, ((M + 7) // 8) * 8)


def _pad_rows(arrs, tm):
    """Pad each 2-D array in `arrs` with zero rows up to a multiple of tm."""
    M = arrs[0].shape[0]
    Mp = ((M + tm - 1) // tm) * tm
    if Mp == M:
        return arrs, M
    return [jnp.pad(a, ((0, Mp - M), (0, 0))) for a in arrs], M


def _ln(x, g, b):
    """f32 LayerNorm on a VMEM tile (matches nn.LayerNorm defaults, eps=1e-5)."""
    mean = jnp.mean(x, axis=-1, keepdims=True)
    var = jnp.mean(jnp.square(x - mean), axis=-1, keepdims=True)
    return (x - mean) * jax.lax.rsqrt(var + _LN_EPS) * g + b


# ---------------------------------------------------------------------------
# Pallas kernels
# ---------------------------------------------------------------------------
def _ln_matmul_split_kernel(x_ref, g_ref, b_ref, w_ref, *out_refs, out_dims):
    """LayerNorm(x) @ [w0|w1|...]  ->  one output per slice (bias-less projections)."""
    xn = _ln(x_ref[...], g_ref[...], b_ref[...])
    y = jnp.dot(xn.astype(jnp.bfloat16), w_ref[...].astype(jnp.bfloat16),
                preferred_element_type=jnp.float32)
    off = 0
    for r, d in zip(out_refs, out_dims):
        r[...] = y[:, off:off + d].astype(r.dtype)
        off += d


def _matmul_split_kernel(x_ref, w_ref, *out_refs, out_dims):
    """x @ [w0|w1|...] -> one output per slice (bias-less projections, no LN)."""
    y = jnp.dot(x_ref[...].astype(jnp.bfloat16), w_ref[...].astype(jnp.bfloat16),
                preferred_element_type=jnp.float32)
    off = 0
    for r, d in zip(out_refs, out_dims):
        r[...] = y[:, off:off + d].astype(r.dtype)
        off += d


def _matmul_bias_res_kernel(x_ref, w_ref, b_ref, r_ref, o_ref):
    """x @ w + b + residual (attention output projection, residual fused)."""
    y = jnp.dot(x_ref[...].astype(jnp.bfloat16), w_ref[...].astype(jnp.bfloat16),
                preferred_element_type=jnp.float32)
    o_ref[...] = (y + b_ref[...] + r_ref[...]).astype(o_ref.dtype)


def _ln_geglu_mlp_kernel(x_ref, g_ref, b_ref, w1_ref, b1_ref, w2_ref, b2_ref, r_ref,
                         o_ref, *, ff_inner):
    """Fused FeedForward: LN -> (x@w1+b1) -> GEGLU (exact erf GELU) -> @w2+b2 -> +res."""
    # TODO(synk): at production LDM widths (dim~1280) tile w1/w2 along Dout/K with an
    # f32 VMEM accumulator so the weights fit v7x's 64 MiB VMEM.
    xn = _ln(x_ref[...], g_ref[...], b_ref[...])
    h = jnp.dot(xn.astype(jnp.bfloat16), w1_ref[...].astype(jnp.bfloat16),
                preferred_element_type=jnp.float32) + b1_ref[...]
    hidden = h[:, :ff_inner]
    gate = h[:, ff_inner:]
    gelu_gate = 0.5 * gate * (1.0 + jax.lax.erf(gate * _INV_SQRT2))   # exact F.gelu
    act = hidden * gelu_gate
    y = jnp.dot(act.astype(jnp.bfloat16), w2_ref[...].astype(jnp.bfloat16),
                preferred_element_type=jnp.float32)
    o_ref[...] = (y + b2_ref[...] + r_ref[...]).astype(o_ref.dtype)


def _mha_kernel(q_ref, k_ref, v_ref, o_ref, *, heads, scale):
    """All heads of one (b*f) element; head split/merge via static lane slices in VMEM."""
    # TODO(synk): for production token counts (S=h*w up to 4096) convert to a
    # flash-style L-tiled softmax so the (S, L) score matrix is never materialized.
    inner = q_ref.shape[-1]
    dh = inner // heads
    for h in range(heads):
        lo, hi = h * dh, (h + 1) * dh
        qh = q_ref[0, :, lo:hi].astype(jnp.bfloat16)     # (S, dh)
        kh = k_ref[0, :, lo:hi].astype(jnp.bfloat16)     # (L, dh)
        vh = v_ref[0, :, lo:hi].astype(jnp.bfloat16)     # (L, dh)
        s = jax.lax.dot_general(
            qh, kh, (((1,), (1,)), ((), ())), preferred_element_type=jnp.float32
        ) * scale                                        # (S, L), f32
        m = jnp.max(s, axis=-1, keepdims=True)
        e = jnp.exp(s - m)
        p = e * pl.reciprocal(jnp.sum(e, axis=-1, keepdims=True), approx=True)
        oh = jnp.dot(p.astype(jnp.bfloat16), vh, preferred_element_type=jnp.float32)
        o_ref[0, :, lo:hi] = oh.astype(o_ref.dtype)      # HBM writeback is the full block


# ---------------------------------------------------------------------------
# pallas_call wrappers
# ---------------------------------------------------------------------------
_PARALLEL1 = pltpu.CompilerParams(dimension_semantics=("parallel",))


def fused_ln_matmul_split(x2d, gamma, beta, w_cat, out_dims):
    M, Din = x2d.shape
    tm = _row_tile(M)
    (x_p,), M0 = _pad_rows([x2d], tm)
    Mp = x_p.shape[0]
    kern = functools.partial(_ln_matmul_split_kernel, out_dims=tuple(out_dims))
    outs = pl.pallas_call(
        kern,
        out_shape=tuple(jax.ShapeDtypeStruct((Mp, d), x2d.dtype) for d in out_dims),
        grid=(Mp // tm,),
        in_specs=[
            pl.BlockSpec((tm, Din), lambda i: (i, 0)),
            pl.BlockSpec((1, Din), lambda i: (0, 0)),
            pl.BlockSpec((1, Din), lambda i: (0, 0)),
            pl.BlockSpec((Din, sum(out_dims)), lambda i: (0, 0)),
        ],
        out_specs=tuple(pl.BlockSpec((tm, d), lambda i: (i, 0)) for d in out_dims),
        compiler_params=_PARALLEL1,
    )(x_p, gamma.reshape(1, Din), beta.reshape(1, Din), w_cat)
    return tuple(o[:M0] for o in outs)


def fused_matmul_split(x2d, w_cat, out_dims):
    M, Din = x2d.shape
    tm = _row_tile(M)
    (x_p,), M0 = _pad_rows([x2d], tm)
    Mp = x_p.shape[0]
    kern = functools.partial(_matmul_split_kernel, out_dims=tuple(out_dims))
    outs = pl.pallas_call(
        kern,
        out_shape=tuple(jax.ShapeDtypeStruct((Mp, d), x2d.dtype) for d in out_dims),
        grid=(Mp // tm,),
        in_specs=[
            pl.BlockSpec((tm, Din), lambda i: (i, 0)),
            pl.BlockSpec((Din, sum(out_dims)), lambda i: (0, 0)),
        ],
        out_specs=tuple(pl.BlockSpec((tm, d), lambda i: (i, 0)) for d in out_dims),
        compiler_params=_PARALLEL1,
    )(x_p, w_cat)
    return tuple(o[:M0] for o in outs)


def fused_matmul_bias_residual(x2d, w, b, res2d):
    M, Din = x2d.shape
    Dout = w.shape[1]
    tm = _row_tile(M)
    (x_p, r_p), M0 = _pad_rows([x2d, res2d], tm)
    Mp = x_p.shape[0]
    out = pl.pallas_call(
        _matmul_bias_res_kernel,
        out_shape=jax.ShapeDtypeStruct((Mp, Dout), x2d.dtype),
        grid=(Mp // tm,),
        in_specs=[
            pl.BlockSpec((tm, Din), lambda i: (i, 0)),
            pl.BlockSpec((Din, Dout), lambda i: (0, 0)),
            pl.BlockSpec((1, Dout), lambda i: (0, 0)),
            pl.BlockSpec((tm, Dout), lambda i: (i, 0)),
        ],
        out_specs=pl.BlockSpec((tm, Dout), lambda i: (i, 0)),
        compiler_params=_PARALLEL1,
    )(x_p, w, b.reshape(1, Dout), r_p)
    return out[:M0]


def fused_ln_geglu_mlp(x2d, gamma, beta, w1, b1, w2, b2, res2d):
    M, D = x2d.shape
    ff_inner = w2.shape[0]
    tm = _row_tile(M)
    (x_p, r_p), M0 = _pad_rows([x2d, res2d], tm)
    Mp = x_p.shape[0]
    kern = functools.partial(_ln_geglu_mlp_kernel, ff_inner=ff_inner)
    out = pl.pallas_call(
        kern,
        out_shape=jax.ShapeDtypeStruct((Mp, D), x2d.dtype),
        grid=(Mp // tm,),
        in_specs=[
            pl.BlockSpec((tm, D), lambda i: (i, 0)),
            pl.BlockSpec((1, D), lambda i: (0, 0)),
            pl.BlockSpec((1, D), lambda i: (0, 0)),
            pl.BlockSpec((D, 2 * ff_inner), lambda i: (0, 0)),
            pl.BlockSpec((1, 2 * ff_inner), lambda i: (0, 0)),
            pl.BlockSpec((ff_inner, D), lambda i: (0, 0)),
            pl.BlockSpec((1, D), lambda i: (0, 0)),
            pl.BlockSpec((tm, D), lambda i: (i, 0)),
        ],
        out_specs=pl.BlockSpec((tm, D), lambda i: (i, 0)),
        compiler_params=_PARALLEL1,
    )(x_p, gamma.reshape(1, D), beta.reshape(1, D), w1, b1.reshape(1, 2 * ff_inner),
      w2, b2.reshape(1, D), r_p)
    return out[:M0]


def attention_all_heads(q, k, v, *, heads, scale):
    N, S, inner = q.shape
    L = k.shape[1]
    kern = functools.partial(_mha_kernel, heads=heads, scale=scale)
    return pl.pallas_call(
        kern,
        out_shape=jax.ShapeDtypeStruct((N, S, inner), q.dtype),
        grid=(N,),
        in_specs=[
            pl.BlockSpec((1, S, inner), lambda i: (i, 0, 0)),
            pl.BlockSpec((1, L, inner), lambda i: (i, 0, 0)),
            pl.BlockSpec((1, L, inner), lambda i: (i, 0, 0)),
        ],
        out_specs=pl.BlockSpec((1, S, inner), lambda i: (i, 0, 0)),
        compiler_params=_PARALLEL1,
    )(q, k, v)


# ---------------------------------------------------------------------------
# Module-level wrappers
# ---------------------------------------------------------------------------
def cross_attention_block(x, ctx, ln_g, ln_b, p, heads):
    """LayerNorm -> CrossAttention (dropout=0, no mask) -> + residual, all fused."""
    N, S, D = x.shape
    inner = p["wq"].shape[1]
    dh = inner // heads
    scale = dh ** (-0.5)
    x2d = x.reshape(N * S, D)

    if ctx is None:                                   # self-attention: fused LN+QKV
        w_qkv = jnp.concatenate([p["wq"], p["wk"], p["wv"]], axis=1)
        q2d, k2d, v2d = fused_ln_matmul_split(x2d, ln_g, ln_b, w_qkv,
                                              (inner, inner, inner))
        L = S
    else:                                             # cross-attention: LN+Q, then KV
        (q2d,) = fused_ln_matmul_split(x2d, ln_g, ln_b, p["wq"], (inner,))
        L, Dc = ctx.shape[1], ctx.shape[2]
        w_kv = jnp.concatenate([p["wk"], p["wv"]], axis=1)
        k2d, v2d = fused_matmul_split(ctx.reshape(N * L, Dc), w_kv, (inner, inner))

    q3 = q2d.reshape(N, S, inner)                     # free metadata reshapes only
    k3 = k2d.reshape(N, L, inner)
    v3 = v2d.reshape(N, L, inner)
    o3 = attention_all_heads(q3, k3, v3, heads=heads, scale=scale)   # (N, S, inner)

    out2d = fused_matmul_bias_residual(o3.reshape(N * S, inner), p["wo"], p["bo"], x2d)
    return out2d.reshape(N, S, D)


def feed_forward_block(x, ln_g, ln_b, p):
    N, S, D = x.shape
    x2d = x.reshape(N * S, D)
    out2d = fused_ln_geglu_mlp(x2d, ln_g, ln_b, p["w1"], p["b1"], p["w2"], p["b2"], x2d)
    return out2d.reshape(N, S, D)


def basic_text_transformer_block_3d(x5d, context, params, n_heads):
    b, c, f, h, w = x5d.shape
    x = jnp.transpose(x5d, (0, 2, 3, 4, 1)).reshape(b * f, h * w, c)

    # self-attention (norm1 + attn1 + residual, fused)
    x = cross_attention_block(x, None, params["ln1_g"], params["ln1_b"],
                              params["attn1"], n_heads)
    # cross-attention (norm2 + attn2 + residual, fused)
    if context is not None:
        c1 = context.shape[-1]
        ctx = context.reshape(b * f, -1, c1)
        x = cross_attention_block(x, ctx, params["ln2_g"], params["ln2_b"],
                                  params["attn2"], n_heads)
    # feed-forward (norm3 + GEGLU FF + residual, fused)
    x = feed_forward_block(x, params["ln3_g"], params["ln3_b"], params["ff"])
    return x  # (b*f, h*w, c) — same layout the PyTorch module returns


# ---------------------------------------------------------------------------
# Deterministic parameter init (synthetic; weights stored as (in, out))
# ---------------------------------------------------------------------------
def init_params(key, dim, n_heads, d_head, context_dim, ff_mult=4):
    inner = n_heads * d_head
    ff_inner = dim * ff_mult
    ks = jax.random.split(key, 20)

    def w(k, shape, scale=0.05):
        return (scale * jax.random.normal(k, shape)).astype(jnp.float32)

    return {
        "ln1_g": 1.0 + w(ks[0], (dim,)), "ln1_b": w(ks[1], (dim,)),
        "ln2_g": 1.0 + w(ks[2], (dim,)), "ln2_b": w(ks[3], (dim,)),
        "ln3_g": 1.0 + w(ks[4], (dim,)), "ln3_b": w(ks[5], (dim,)),
        "attn1": {
            "wq": w(ks[6], (dim, inner)), "wk": w(ks[7], (dim, inner)),
            "wv": w(ks[8], (dim, inner)),
            "wo": w(ks[9], (inner, dim)), "bo": w(ks[10], (dim,)),
        },
        "attn2": {
            "wq": w(ks[11], (dim, inner)), "wk": w(ks[12], (context_dim, inner)),
            "wv": w(ks[13], (context_dim, inner)),
            "wo": w(ks[14], (inner, dim)), "bo": w(ks[15], (dim,)),
        },
        "ff": {
            "w1": w(ks[16], (dim, 2 * ff_inner)), "b1": w(ks[17], (2 * ff_inner,)),
            "w2": w(ks[18], (ff_inner, dim)), "b2": w(ks[19], (dim,)),
        },
    }


if __name__ == "__main__":
    # Module config: dim=32, n_heads=4, d_head=8 (inner_dim=32), context_dim=16
    dim, n_heads, d_head, context_dim = 32, 4, 8, 16
    b, f, h, w = 2, 2, 4, 4
    ctx_len_per_frame = 8

    key = jax.random.PRNGKey(0)
    k_x, k_ctx, k_p = jax.random.split(key, 3)

    x = jax.random.normal(k_x, (b, dim, f, h, w), dtype=jnp.float32)       # NCFHW
    context = jax.random.normal(
        k_ctx, (b, f * ctx_len_per_frame, context_dim), dtype=jnp.float32)

    params = init_params(k_p, dim, n_heads, d_head, context_dim)

    fwd = jax.jit(functools.partial(basic_text_transformer_block_3d, n_heads=n_heads))
    out = fwd(x, context, params)
    out = jax.block_until_ready(out)

    assert out.shape == (b * f, h * w, dim), out.shape
    assert out.dtype == jnp.float32
    assert bool(jnp.all(jnp.isfinite(out)))
    print("KERNEL_OK")
</pallas_src>

<mosaic_0001>
module attributes {stable_mosaic.version = 11 : i64} {
  func.func @_mha_kernel(%arg0: i32, %arg1: memref<1x16x32xf32, #tpu.memory_space<vmem>>, %arg2: memref<1x16x32xf32, #tpu.memory_space<vmem>>, %arg3: memref<1x16x32xf32, #tpu.memory_space<vmem>>, %arg4: memref<1x16x32xf32, #tpu.memory_space<vmem>>) attributes {dimension_semantics = [#tpu.dimension_semantics<parallel>], iteration_bounds = array<i64: 4>, scalar_prefetch = 0 : i64, scratch_operands = 0 : i64, tpu.core_type = #tpu.core_type<tc>, window_params = [{transform_indices = @transform_0, window_bounds = array<i64: 1, 16, 32>}, {transform_indices = @transform_1, window_bounds = array<i64: 1, 16, 32>}, {transform_indices = @transform_2, window_bounds = array<i64: 1, 16, 32>}, {transform_indices = @transform_3, window_bounds = array<i64: 1, 16, 32>}]} {
    %c0 = arith.constant 0 : index
    %c0_0 = arith.constant 0 : index
    %c0_1 = arith.constant 0 : index
    %0 = vector.load %arg1[%c0, %c0_0, %c0_1] : memref<1x16x32xf32, #tpu.memory_space<vmem>>, vector<1x16x8xf32>
    %1 = vector.shape_cast %0 : vector<1x16x8xf32> to vector<16x8xf32>
    %2 = arith.truncf %1 : vector<16x8xf32> to vector<16x8xbf16>
    %c0_2 = arith.constant 0 : index
    %c0_3 = arith.constant 0 : index
    %c0_4 = arith.constant 0 : index
    %3 = vector.load %arg2[%c0_2, %c0_3, %c0_4] : memref<1x16x32xf32, #tpu.memory_space<vmem>>, vector<1x16x8xf32>
    %4 = vector.shape_cast %3 : vector<1x16x8xf32> to vector<16x8xf32>
    %5 = arith.truncf %4 : vector<16x8xf32> to vector<16x8xbf16>
    %c0_5 = arith.constant 0 : index
    %c0_6 = arith.constant 0 : index
    %c0_7 = arith.constant 0 : index
    %6 = vector.load %arg3[%c0_5, %c0_6, %c0_7] : memref<1x16x32xf32, #tpu.memory_space<vmem>>, vector<1x16x8xf32>
    %7 = vector.shape_cast %6 : vector<1x16x8xf32> to vector<16x8xf32>
    %8 = arith.truncf %7 : vector<16x8xf32> to vector<16x8xbf16>
    %cst = arith.constant dense<0.000000e+00> : vector<16x16xf32>
    %9 = tpu.matmul %2, %5, %cst {dimension_numbers = #tpu.dot_dimension_numbers<[1], [1], [0], [0], [0, 0, 1, 0], [], []>} : vector<16x8xbf16>, vector<16x8xbf16>, vector<16x16xf32> -> vector<16x16xf32>
    %cst_8 = arith.constant 0.353553385 : f32
    %10 = vector.broadcast %cst_8 : f32 to vector<16x16xf32>
    %11 = arith.mulf %9, %10 : vector<16x16xf32>
    %cst_9 = arith.constant dense<0xFF800000> : vector<16xf32>
    %12 = vector.multi_reduction <maximumf>, %11, %cst_9 [1] : vector<16x16xf32> to vector<16xf32>
    %13 = vector.shape_cast %12 : vector<16xf32> to vector<16x1xf32>
    %14 = vector.broadcast %13 : vector<16x1xf32> to vector<16x16xf32>
    %15 = arith.subf %11, %14 : vector<16x16xf32>
    %16 = math.exp %15 : vector<16x16xf32>
    %cst_10 = arith.constant dense<0.000000e+00> : vector<16xf32>
    %17 = vector.multi_reduction <add>, %16, %cst_10 [1] : vector<16x16xf32> to vector<16xf32>
    %18 = vector.shape_cast %17 : vector<16xf32> to vector<16x1xf32>
    %19 = tpu.reciprocal %18 {approx = true} : vector<16x1xf32> -> vector<16x1xf32>
    %20 = vector.broadcast %19 : vector<16x1xf32> to vector<16x16xf32>
    %21 = arith.mulf %16, %20 : vector<16x16xf32>
    %22 = arith.truncf %21 : vector<16x16xf32> to vector<16x16xbf16>
    %cst_11 = arith.constant dense<0.000000e+00> : vector<16x8xf32>
    %23 = tpu.matmul %22, %8, %cst_11 {dimension_numbers = #tpu.dot_dimension_numbers<[1], [0], [0], [1], [0, 0, 1, 1], [], []>} : vector<16x16xbf16>, vector<16x8xbf16>, vector<16x8xf32> -> vector<16x8xf32>
    %c0_12 = arith.constant 0 : index
    %c0_13 = arith.constant 0 : index
    %c0_14 = arith.constant 0 : index
    %24 = vector.load %arg4[%c0_12, %c0_13, %c0_14] : memref<1x16x32xf32, #tpu.memory_space<vmem>>, vector<1x16x8xf32>
    %25 = vector.shape_cast %24 : vector<1x16x8xf32> to vector<16x8xf32>
    %26 = vector.shape_cast %23 : vector<16x8xf32> to vector<1x16x8xf32>
    tpu.vector_store %arg4[%c0_12, %c0_13, %c0_14], %26 {strides = array<i32>} : memref<1x16x32xf32, #tpu.memory_space<vmem>>, vector<1x16x8xf32>,
    %c0_15 = arith.constant 0 : index
    %c0_16 = arith.constant 0 : index
    %c8 = arith.constant 8 : index
    %27 = vector.load %arg1[%c0_15, %c0_16, %c8] : memref<1x16x32xf32, #tpu.memory_space<vmem>>, vector<1x16x8xf32>
    %28 = vector.shape_cast %27 : vector<1x16x8xf32> to vector<16x8xf32>
    %29 = arith.truncf %28 : vector<16x8xf32> to vector<16x8xbf16>
    %c0_17 = arith.constant 0 : index
    %c0_18 = arith.constant 0 : index
    %c8_19 = arith.constant 8 : index
    %30 = vector.load %arg2[%c0_17, %c0_18, %c8_19] : memref<1x16x32xf32, #tpu.memory_space<vmem>>, vector<1x16x8xf32>
    %31 = vector.shape_cast %30 : vector<1x16x8xf32> to vector<16x8xf32>
    %32 = arith.truncf %31 : vector<16x8xf32> to vector<16x8xbf16>
    %c0_20 = arith.constant 0 : index
    %c0_21 = arith.constant 0 : index
    %c8_22 = arith.constant 8 : index
    %33 = vector.load %arg3[%c0_20, %c0_21, %c8_22] : memref<1x16x32xf32, #tpu.memory_space<vmem>>, vector<1x16x8xf32>
    %34 = vector.shape_cast %33 : vector<1x16x8xf32> to vector<16x8xf32>
    %35 = arith.truncf %34 : vector<16x8xf32> to vector<16x8xbf16>
    %cst_23 = arith.constant dense<0.000000e+00> : vector<16x16xf32>
    %36 = tpu.matmul %29, %32, %cst_23 {dimension_numbers = #tpu.dot_dimension_numbers<[1], [1], [0], [0], [0, 0, 1, 0], [], []>} : vector<16x8xbf16>, vector<16x8xbf16>, vector<16x16xf32> -> vector<16x16xf32>
    %cst_24 = arith.constant 0.353553385 : f32
    %37 = vector.broadcast %cst_24 : f32 to vector<16x16xf32>
    %38 = arith.mulf %36, %37 : vector<16x16xf32>
    %cst_25 = arith.constant dense<0xFF800000> : vector<16xf32>
    %39 = vector.multi_reduction <maximumf>, %38, %cst_25 [1] : vector<16x16xf32> to vector<16xf32>
    %40 = vector.shape_cast %39 : vector<16xf32> to vector<16x1xf32>
    %41 = vector.broadcast %40 : vector<16x1xf32> to vector<16x16xf32>
    %42 = arith.subf %38, %41 : vector<16x16xf32>
    %43 = math.exp %42 : vector<16x16xf32>
    %cst_26 = arith.constant dense<0.000000e+00> : vector<16xf32>
    %44 = vector.multi_reduction <add>, %43, %cst_26 [1] : vector<16x16xf32> to vector<16xf32>
    %45 = vector.shape_cast %44 : vector<16xf32> to vector<16x1xf32>
    %46 = tpu.reciprocal %45 {approx = true} : vector<16x1xf32> -> vector<16x1xf32>
    %47 = vector.broadcast %46 : vector<16x1xf32> to vector<16x16xf32>
    %48 = arith.mulf %43, %47 : vector<16x16xf32>
    %49 = arith.truncf %48 : vector<16x16xf32> to vector<16x16xbf16>
    %cst_27 = arith.constant dense<0.000000e+00> : vector<16x8xf32>
    %50 = tpu.matmul %49, %35, %cst_27 {dimension_numbers = #tpu.dot_dimension_numbers<[1], [0], [0], [1], [0, 0, 1, 1], [], []>} : vector<16x16xbf16>, vector<16x8xbf16>, vector<16x8xf32> -> vector<16x8xf32>
    %c0_28 = arith.constant 0 : index
    %c0_29 = arith.constant 0 : index
    %c8_30 = arith.constant 8 : index
    %51 = vector.load %arg4[%c0_28, %c0_29, %c8_30] : memref<1x16x32xf32, #tpu.memory_space<vmem>>, vector<1x16x8xf32>
    %52 = vector.shape_cast %51 : vector<1x16x8xf32> to vector<16x8xf32>
    %53 = vector.shape_cast %50 : vector<16x8xf32> to vector<1x16x8xf32>
    tpu.vector_store %arg4[%c0_28, %c0_29, %c8_30], %53 {strides = array<i32>} : memref<1x16x32xf32, #tpu.memory_space<vmem>>, vector<1x16x8xf32>,
    %c0_31 = arith.constant 0 : index
    %c0_32 = arith.constant 0 : index
    %c16 = arith.constant 16 : index
    %54 = vector.load %arg1[%c0_31, %c0_32, %c16] : memref<1x16x32xf32, #tpu.memory_space<vmem>>, vector<1x16x8xf32>
    %55 = vector.shape_cast %54 : vector<1x16x8xf32> to vector<16x8xf32>
    %56 = arith.truncf %55 : vector<16x8xf32> to vector<16x8xbf16>
    %c0_33 = arith.constant 0 : index
    %c0_34 = arith.constant 0 : index
    %c16_35 = arith.constant 16 : index
    %57 = vector.load %arg2[%c0_33, %c0_34, %c16_35] : memref<1x16x32xf32, #tpu.memory_space<vmem>>, vector<1x16x8xf32>
    %58 = vector.shape_cast %57 : vector<1x16x8xf32> to vector<16x8xf32>
    %59 = arith.truncf %58 : vector<16x8xf32> to vector<16x8xbf16>
    %c0_36 = arith.constant 0 : index
    %c0_37 = arith.constant 0 : index
    %c16_38 = arith.constant 16 : index
    %60 = vector.load %arg3[%c0_36, %c0_37, %c16_38] : memref<1x16x32xf32, #tpu.memory_space<vmem>>, vector<1x16x8xf32>
    %61 = vector.shape_cast %60 : vector<1x16x8xf32> to vector<16x8xf32>
    %62 = arith.truncf %61 : vector<16x8xf32> to vector<16x8xbf16>
    %cst_39 = arith.constant dense<0.000000e+00> : vector<16x16xf32>
    %63 = tpu.matmul %56, %59, %cst_39 {dimension_numbers = #tpu.dot_dimension_numbers<[1], [1], [0], [0], [0, 0, 1, 0], [], []>} : vector<16x8xbf16>, vector<16x8xbf16>, vector<16x16xf32> -> vector<16x16xf32>
    %cst_40 = arith.constant 0.353553385 : f32
    %64 = vector.broadcast %cst_40 : f32 to vector<16x16xf32>
    %65 = arith.mulf %63, %64 : vector<16x16xf32>
    %cst_41 = arith.constant dense<0xFF800000> : vector<16xf32>
    %66 = vector.multi_reduction <maximumf>, %65, %cst_41 [1] : vector<16x16xf32> to vector<16xf32>
    %67 = vector.shape_cast %66 : vector<16xf32> to vector<16x1xf32>
    %68 = vector.broadcast %67 : vector<16x1xf32> to vector<16x16xf32>
    %69 = arith.subf %65, %68 : vector<16x16xf32>
    %70 = math.exp %69 : vector<16x16xf32>
    %cst_42 = arith.constant dense<0.000000e+00> : vector<16xf32>
    %71 = vector.multi_reduction <add>, %70, %cst_42 [1] : vector<16x16xf32> to vector<16xf32>
    %72 = vector.shape_cast %71 : vector<16xf32> to vector<16x1xf32>
    %73 = tpu.reciprocal %72 {approx = true} : vector<16x1xf32> -> vector<16x1xf32>
    %74 = vector.broadcast %73 : vector<16x1xf32> to vector<16x16xf32>
    %75 = arith.mulf %70, %74 : vector<16x16xf32>
    %76 = arith.truncf %75 : vector<16x16xf32> to vector<16x16xbf16>
    %cst_43 = arith.constant dense<0.000000e+00> : vector<16x8xf32>
    %77 = tpu.matmul %76, %62, %cst_43 {dimension_numbers = #tpu.dot_dimension_numbers<[1], [0], [0], [1], [0, 0, 1, 1], [], []>} : vector<16x16xbf16>, vector<16x8xbf16>, vector<16x8xf32> -> vector<16x8xf32>
    %c0_44 = arith.constant 0 : index
    %c0_45 = arith.constant 0 : index
    %c16_46 = arith.constant 16 : index
    %78 = vector.load %arg4[%c0_44, %c0_45, %c16_46] : memref<1x16x32xf32, #tpu.memory_space<vmem>>, vector<1x16x8xf32>
    %79 = vector.shape_cast %78 : vector<1x16x8xf32> to vector<16x8xf32>
    %80 = vector.shape_cast %77 : vector<16x8xf32> to vector<1x16x8xf32>
    tpu.vector_store %arg4[%c0_44, %c0_45, %c16_46], %80 {strides = array<i32>} : memref<1x16x32xf32, #tpu.memory_space<vmem>>, vector<1x16x8xf32>,
    %c0_47 = arith.constant 0 : index
    %c0_48 = arith.constant 0 : index
    %c24 = arith.constant 24 : index
    %81 = vector.load %arg1[%c0_47, %c0_48, %c24] : memref<1x16x32xf32, #tpu.memory_space<vmem>>, vector<1x16x8xf32>
    %82 = vector.shape_cast %81 : vector<1x16x8xf32> to vector<16x8xf32>
    %83 = arith.truncf %82 : vector<16x8xf32> to vector<16x8xbf16>
    %c0_49 = arith.constant 0 : index
    %c0_50 = arith.constant 0 : index
    %c24_51 = arith.constant 24 : index
    %84 = vector.load %arg2[%c0_49, %c0_50, %c24_51] : memref<1x16x32xf32, #tpu.memory_space<vmem>>, vector<1x16x8xf32>
    %85 = vector.shape_cast %84 : vector<1x16x8xf32> to vector<16x8xf32>
    %86 = arith.truncf %85 : vector<16x8xf32> to vector<16x8xbf16>
    %c0_52 = arith.constant 0 : index
    %c0_53 = arith.constant 0 : index
    %c24_54 = arith.constant 24 : index
    %87 = vector.load %arg3[%c0_52, %c0_53, %c24_54] : memref<1x16x32xf32, #tpu.memory_space<vmem>>, vector<1x16x8xf32>
    %88 = vector.shape_cast %87 : vector<1x16x8xf32> to vector<16x8xf32>
    %89 = arith.truncf %88 : vector<16x8xf32> to vector<16x8xbf16>
    %cst_55 = arith.constant dense<0.000000e+00> : vector<16x16xf32>
    %90 = tpu.matmul %83, %86, %cst_55 {dimension_numbers = #tpu.dot_dimension_numbers<[1], [1], [0], [0], [0, 0, 1, 0], [], []>} : vector<16x8xbf16>, vector<16x8xbf16>, vector<16x16xf32> -> vector<16x16xf32>
    %cst_56 = arith.constant 0.353553385 : f32
    %91 = vector.broadcast %cst_56 : f32 to vector<16x16xf32>
    %92 = arith.mulf %90, %91 : vector<16x16xf32>
    %cst_57 = arith.constant dense<0xFF800000> : vector<16xf32>
    %93 = vector.multi_reduction <maximumf>, %92, %cst_57 [1] : vector<16x16xf32> to vector<16xf32>
    %94 = vector.shape_cast %93 : vector<16xf32> to vector<16x1xf32>
    %95 = vector.broadcast %94 : vector<16x1xf32> to vector<16x16xf32>
    %96 = arith.subf %92, %95 : vector<16x16xf32>
    %97 = math.exp %96 : vector<16x16xf32>
    %cst_58 = arith.constant dense<0.000000e+00> : vector<16xf32>
    %98 = vector.multi_reduction <add>, %97, %cst_58 [1] : vector<16x16xf32> to vector<16xf32>
    %99 = vector.shape_cast %98 : vector<16xf32> to vector<16x1xf32>
    %100 = tpu.reciprocal %99 {approx = true} : vector<16x1xf32> -> vector<16x1xf32>
    %101 = vector.broadcast %100 : vector<16x1xf32> to vector<16x16xf32>
    %102 = arith.mulf %97, %101 : vector<16x16xf32>
    %103 = arith.truncf %102 : vector<16x16xf32> to vector<16x16xbf16>
    %cst_59 = arith.constant dense<0.000000e+00> : vector<16x8xf32>
    %104 = tpu.matmul %103, %89, %cst_59 {dimension_numbers = #tpu.dot_dimension_numbers<[1], [0], [0], [1], [0, 0, 1, 1], [], []>} : vector<16x16xbf16>, vector<16x8xbf16>, vector<16x8xf32> -> vector<16x8xf32>
    %c0_60 = arith.constant 0 : index
    %c0_61 = arith.constant 0 : index
    %c24_62 = arith.constant 24 : index
    %105 = vector.load %arg4[%c0_60, %c0_61, %c24_62] : memref<1x16x32xf32, #tpu.memory_space<vmem>>, vector<1x16x8xf32>
    %106 = vector.shape_cast %105 : vector<1x16x8xf32> to vector<16x8xf32>
    %107 = vector.shape_cast %104 : vector<16x8xf32> to vector<1x16x8xf32>
    tpu.vector_store %arg4[%c0_60, %c0_61, %c24_62], %107 {strides = array<i32>} : memref<1x16x32xf32, #tpu.memory_space<vmem>>, vector<1x16x8xf32>,
    return
  }
  func.func @transform_0(%arg0: i32) -> (i32, i32, i32) {
    %c0_i32 = arith.constant 0 : i32
    %c0_i32_0 = arith.constant 0 : i32
    %c0_i32_1 = arith.constant 0 : i32
    return %arg0, %c0_i32, %c0_i32_0 : i32, i32, i32
  }
  func.func @transform_1(%arg0: i32) -> (i32, i32, i32) {
    %c0_i32 = arith.constant 0 : i32
    %c0_i32_0 = arith.constant 0 : i32
    %c0_i32_1 = arith.constant 0 : i32
    return %arg0, %c0_i32, %c0_i32_0 : i32, i32, i32
  }
  func.func @transform_2(%arg0: i32) -> (i32, i32, i32) {
    %c0_i32 = arith.constant 0 : i32
    %c0_i32_0 = arith.constant 0 : i32
    %c0_i32_1 = arith.constant 0 : i32
    return %arg0, %c0_i32, %c0_i32_0 : i32, i32, i32
  }
  func.func @transform_3(%arg0: i32) -> (i32, i32, i32) {
    %c0_i32 = arith.constant 0 : i32
    %c0_i32_0 = arith.constant 0 : i32
    %c0_i32_1 = arith.constant 0 : i32
    return %arg0, %c0_i32, %c0_i32_0 : i32, i32, i32
  }
}

module attributes {stable_mosaic.version = 11 : i64} {
  func.func @_ln_matmul_split_kernel(%arg0: i32, %arg1: memref<64x32xf32, #tpu.memory_space<vmem>>, %arg2: memref<1x32xf32, #tpu.memory_space<vmem>>, %arg3: memref<1x32xf32, #tpu.memory_space<vmem>>, %arg4: memref<32x96xf32, #tpu.memory_space<vmem>>, %arg5: memref<64x32xf32, #tpu.memory_space<vmem>>, %arg6: memref<64x32xf32, #tpu.memory_space<vmem>>, %arg7: memref<64x32xf32, #tpu.memory_space<vmem>>) attributes {dimension_semantics = [#tpu.dimension_semantics<parallel>], iteration_bounds = array<i64: 1>, scalar_prefetch = 0 : i64, scratch_operands = 0 : i64, tpu.core_type = #tpu.core_type<tc>, window_params = [{transform_indices = @transform_0, window_bounds = array<i64: 64, 32>}, {pipeline_mode = #tpu.pipeline_mode<synchronous>, transform_indices = @transform_1, window_bounds = array<i64: 1, 32>}, {pipeline_mode = #tpu.pipeline_mode<synchronous>, transform_indices = @transform_2, window_bounds = array<i64: 1, 32>}, {pipeline_mode = #tpu.pipeline_mode<synchronous>, transform_indices = @transform_3, window_bounds = array<i64: 32, 96>}, {transform_indices = @transform_4, window_bounds = array<i64: 64, 32>}, {transform_indices = @transform_5, window_bounds = array<i64: 64, 32>}, {transform_indices = @transform_6, window_bounds = array<i64: 64, 32>}]} {
    %c0 = arith.constant 0 : index
    %c0_0 = arith.constant 0 : index
    %0 = vector.load %arg1[%c0, %c0_0] : memref<64x32xf32, #tpu.memory_space<vmem>>, vector<64x32xf32>
    %c0_1 = arith.constant 0 : index
    %c0_2 = arith.constant 0 : index
    %1 = vector.load %arg2[%c0_1, %c0_2] : memref<1x32xf32, #tpu.memory_space<vmem>>, vector<1x32xf32>
    %c0_3 = arith.constant 0 : index
    %c0_4 = arith.constant 0 : index
    %2 = vector.load %arg3[%c0_3, %c0_4] : memref<1x32xf32, #tpu.memory_space<vmem>>, vector<1x32xf32>
    %cst = arith.constant dense<0.000000e+00> : vector<64xf32>
    %3 = vector.multi_reduction <add>, %0, %cst [1] : vector<64x32xf32> to vector<64xf32>
    %4 = vector.shape_cast %3 : vector<64xf32> to vector<64x1xf32>
    %cst_5 = arith.constant 3.200000e+01 : f32
    %5 = vector.broadcast %cst_5 : f32 to vector<64x1xf32>
    %6 = arith.divf %4, %5 : vector<64x1xf32>
    %7 = vector.broadcast %6 : vector<64x1xf32> to vector<64x32xf32>
    %8 = arith.subf %0, %7 : vector<64x32xf32>
    %9 = arith.mulf %8, %8 : vector<64x32xf32>
    %cst_6 = arith.constant dense<0.000000e+00> : vector<64xf32>
    %10 = vector.multi_reduction <add>, %9, %cst_6 [1] : vector<64x32xf32> to vector<64xf32>
    %11 = vector.shape_cast %10 : vector<64xf32> to vector<64x1xf32>
    %cst_7 = arith.constant 3.200000e+01 : f32
    %12 = vector.broadcast %cst_7 : f32 to vector<64x1xf32>
    %13 = arith.divf %11, %12 : vector<64x1xf32>
    %14 = vector.broadcast %6 : vector<64x1xf32> to vector<64x32xf32>
    %15 = arith.subf %0, %14 : vector<64x32xf32>
    %cst_8 = arith.constant 9.99999974E-6 : f32
    %16 = vector.broadcast %cst_8 : f32 to vector<64x1xf32>
    %17 = arith.addf %13, %16 : vector<64x1xf32>
    %18 = math.rsqrt %17 : vector<64x1xf32>
    %19 = vector.broadcast %18 : vector<64x1xf32> to vector<64x32xf32>
    %20 = arith.mulf %15, %19 : vector<64x32xf32>
    %21 = vector.broadcast %1 : vector<1x32xf32> to vector<64x32xf32>
    %22 = arith.mulf %20, %21 : vector<64x32xf32>
    %23 = vector.broadcast %2 : vector<1x32xf32> to vector<64x32xf32>
    %24 = arith.addf %22, %23 : vector<64x32xf32>
    %25 = arith.truncf %24 : vector<64x32xf32> to vector<64x32xbf16>
    %c0_9 = arith.constant 0 : index
    %c0_10 = arith.constant 0 : index
    %26 = vector.load %arg4[%c0_9, %c0_10] : memref<32x96xf32, #tpu.memory_space<vmem>>, vector<32x96xf32>
    %27 = arith.truncf %26 : vector<32x96xf32> to vector<32x96xbf16>
    %cst_11 = arith.constant dense<0.000000e+00> : vector<64x96xf32>
    %28 = tpu.matmul %25, %27, %cst_11 {dimension_numbers = #tpu.dot_dimension_numbers<[1], [0], [0], [1], [0, 0, 1, 1], [], []>} : vector<64x32xbf16>, vector<32x96xbf16>, vector<64x96xf32> -> vector<64x96xf32>
    %29 = vector.extract_strided_slice %28 {offsets = [0, 0], sizes = [64, 32], strides = [1, 1]} : vector<64x96xf32> to vector<64x32xf32>
    %c0_12 = arith.constant 0 : index
    %c0_13 = arith.constant 0 : index
    %30 = vector.load %arg5[%c0_12, %c0_13] : memref<64x32xf32, #tpu.memory_space<vmem>>, vector<64x32xf32>
    tpu.vector_store %arg5[%c0_12, %c0_13], %29 {strides = array<i32>} : memref<64x32xf32, #tpu.memory_space<vmem>>, vector<64x32xf32>,
    %31 = vector.extract_strided_slice %28 {offsets = [0, 32], sizes = [64, 32], strides = [1, 1]} : vector<64x96xf32> to vector<64x32xf32>
    %c0_14 = arith.constant 0 : index
    %c0_15 = arith.constant 0 : index
    %32 = vector.load %arg6[%c0_14, %c0_15] : memref<64x32xf32, #tpu.memory_space<vmem>>, vector<64x32xf32>
    tpu.vector_store %arg6[%c0_14, %c0_15], %31 {strides = array<i32>} : memref<64x32xf32, #tpu.memory_space<vmem>>, vector<64x32xf32>,
    %33 = vector.extract_strided_slice %28 {offsets = [0, 64], sizes = [64, 32], strides = [1, 1]} : vector<64x96xf32> to vector<64x32xf32>
    %c0_16 = arith.constant 0 : index
    %c0_17 = arith.constant 0 : index
    %34 = vector.load %arg7[%c0_16, %c0_17] : memref<64x32xf32, #tpu.memory_space<vmem>>, vector<64x32xf32>
    tpu.vector_store %arg7[%c0_16, %c0_17], %33 {strides = array<i32>} : memref<64x32xf32, #tpu.memory_space<vmem>>, vector<64x32xf32>,
    return
  }
  func.func @transform_0(%arg0: i32) -> (i32, i32) {
    %c0_i32 = arith.constant 0 : i32
    %c0_i32_0 = arith.constant 0 : i32
    return %arg0, %c0_i32 : i32, i32
  }
  func.func @transform_1(%arg0: i32) -> (i32, i32) {
    %c0_i32 = arith.constant 0 : i32
    %c0_i32_0 = arith.constant 0 : i32
    %c0_i32_1 = arith.constant 0 : i32
    return %c0_i32, %c0_i32_0 : i32, i32
  }
  func.func @transform_2(%arg0: i32) -> (i32, i32) {
    %c0_i32 = arith.constant 0 : i32
    %c0_i32_0 = arith.constant 0 : i32
    %c0_i32_1 = arith.constant 0 : i32
    return %c0_i32, %c0_i32_0 : i32, i32
  }
  func.func @transform_3(%arg0: i32) -> (i32, i32) {
    %c0_i32 = arith.constant 0 : i32
    %c0_i32_0 = arith.constant 0 : i32
    %c0_i32_1 = arith.constant 0 : i32
    return %c0_i32, %c0_i32_0 : i32, i32
  }
  func.func @transform_4(%arg0: i32) -> (i32, i32) {
    %c0_i32 = arith.constant 0 : i32
    %c0_i32_0 = arith.constant 0 : i32
    return %arg0, %c0_i32 : i32, i32
  }
  func.func @transform_5(%arg0: i32) -> (i32, i32) {
    %c0_i32 = arith.constant 0 : i32
    %c0_i32_0 = arith.constant 0 : i32
    return %arg0, %c0_i32 : i32, i32
  }
  func.func @transform_6(%arg0: i32) -> (i32, i32) {
    %c0_i32 = arith.constant 0 : i32
    %c0_i32_0 = arith.constant 0 : i32
    return %arg0, %c0_i32 : i32, i32
  }
}

module attributes {stable_mosaic.version = 11 : i64} {
  func.func @_matmul_bias_res_kernel(%arg0: i32, %arg1: memref<64x32xf32, #tpu.memory_space<vmem>>, %arg2: memref<32x32xf32, #tpu.memory_space<vmem>>, %arg3: memref<1x32xf32, #tpu.memory_space<vmem>>, %arg4: memref<64x32xf32, #tpu.memory_space<vmem>>, %arg5: memref<64x32xf32, #tpu.memory_space<vmem>>) attributes {dimension_semantics = [#tpu.dimension_semantics<parallel>], iteration_bounds = array<i64: 1>, scalar_prefetch = 0 : i64, scratch_operands = 0 : i64, tpu.core_type = #tpu.core_type<tc>, window_params = [{transform_indices = @transform_0, window_bounds = array<i64: 64, 32>}, {pipeline_mode = #tpu.pipeline_mode<synchronous>, transform_indices = @transform_1, window_bounds = array<i64: 32, 32>}, {pipeline_mode = #tpu.pipeline_mode<synchronous>, transform_indices = @transform_2, window_bounds = array<i64: 1, 32>}, {transform_indices = @transform_3, window_bounds = array<i64: 64, 32>}, {transform_indices = @transform_4, window_bounds = array<i64: 64, 32>}]} {
    %c0 = arith.constant 0 : index
    %c0_0 = arith.constant 0 : index
    %0 = vector.load %arg1[%c0, %c0_0] : memref<64x32xf32, #tpu.memory_space<vmem>>, vector<64x32xf32>
    %1 = arith.truncf %0 : vector<64x32xf32> to vector<64x32xbf16>
    %c0_1 = arith.constant 0 : index
    %c0_2 = arith.constant 0 : index
    %2 = vector.load %arg2[%c0_1, %c0_2] : memref<32x32xf32, #tpu.memory_space<vmem>>, vector<32x32xf32>
    %3 = arith.truncf %2 : vector<32x32xf32> to vector<32x32xbf16>
    %cst = arith.constant dense<0.000000e+00> : vector<64x32xf32>
    %4 = tpu.matmul %1, %3, %cst {dimension_numbers = #tpu.dot_dimension_numbers<[1], [0], [0], [1], [0, 0, 1, 1], [], []>} : vector<64x32xbf16>, vector<32x32xbf16>, vector<64x32xf32> -> vector<64x32xf32>
    %c0_3 = arith.constant 0 : index
    %c0_4 = arith.constant 0 : index
    %5 = vector.load %arg3[%c0_3, %c0_4] : memref<1x32xf32, #tpu.memory_space<vmem>>, vector<1x32xf32>
    %6 = vector.broadcast %5 : vector<1x32xf32> to vector<64x32xf32>
    %7 = arith.addf %4, %6 : vector<64x32xf32>
    %c0_5 = arith.constant 0 : index
    %c0_6 = arith.constant 0 : index
    %8 = vector.load %arg4[%c0_5, %c0_6] : memref<64x32xf32, #tpu.memory_space<vmem>>, vector<64x32xf32>
    %9 = arith.addf %7, %8 : vector<64x32xf32>
    %c0_7 = arith.constant 0 : index
    %c0_8 = arith.constant 0 : index
    %10 = vector.load %arg5[%c0_7, %c0_8] : memref<64x32xf32, #tpu.memory_space<vmem>>, vector<64x32xf32>
    tpu.vector_store %arg5[%c0_7, %c0_8], %9 {strides = array<i32>} : memref<64x32xf32, #tpu.memory_space<vmem>>, vector<64x32xf32>,
    return
  }
  func.func @transform_0(%arg0: i32) -> (i32, i32) {
    %c0_i32 = arith.constant 0 : i32
    %c0_i32_0 = arith.constant 0 : i32
    return %arg0, %c0_i32 : i32, i32
  }
  func.func @transform_1(%arg0: i32) -> (i32, i32) {
    %c0_i32 = arith.constant 0 : i32
    %c0_i32_0 = arith.constant 0 : i32
    %c0_i32_1 = arith.constant 0 : i32
    return %c0_i32, %c0_i32_0 : i32, i32
  }
  func.func @transform_2(%arg0: i32) -> (i32, i32) {
    %c0_i32 = arith.constant 0 : i32
    %c0_i32_0 = arith.constant 0 : i32
    %c0_i32_1 = arith.constant 0 : i32
    return %c0_i32, %c0_i32_0 : i32, i32
  }
  func.func @transform_3(%arg0: i32) -> (i32, i32) {
    %c0_i32 = arith.constant 0 : i32
    %c0_i32_0 = arith.constant 0 : i32
    return %arg0, %c0_i32 : i32, i32
  }
  func.func @transform_4(%arg0: i32) -> (i32, i32) {
    %c0_i32 = arith.constant 0 : i32
    %c0_i32_0 = arith.constant 0 : i32
    return %arg0, %c0_i32 : i32, i32
  }
}

module attributes {stable_mosaic.version = 11 : i64} {
  func.func @_ln_matmul_split_kernel(%arg0: i32, %arg1: memref<64x32xf32, #tpu.memory_space<vmem>>, %arg2: memref<1x32xf32, #tpu.memory_space<vmem>>, %arg3: memref<1x32xf32, #tpu.memory_space<vmem>>, %arg4: memref<32x32xf32, #tpu.memory_space<vmem>>, %arg5: memref<64x32xf32, #tpu.memory_space<vmem>>) attributes {dimension_semantics = [#tpu.dimension_semantics<parallel>], iteration_bounds = array<i64: 1>, scalar_prefetch = 0 : i64, scratch_operands = 0 : i64, tpu.core_type = #tpu.core_type<tc>, window_params = [{transform_indices = @transform_0, window_bounds = array<i64: 64, 32>}, {pipeline_mode = #tpu.pipeline_mode<synchronous>, transform_indices = @transform_1, window_bounds = array<i64: 1, 32>}, {pipeline_mode = #tpu.pipeline_mode<synchronous>, transform_indices = @transform_2, window_bounds = array<i64: 1, 32>}, {pipeline_mode = #tpu.pipeline_mode<synchronous>, transform_indices = @transform_3, window_bounds = array<i64: 32, 32>}, {transform_indices = @transform_4, window_bounds = array<i64: 64, 32>}]} {
    %c0 = arith.constant 0 : index
    %c0_0 = arith.constant 0 : index
    %0 = vector.load %arg1[%c0, %c0_0] : memref<64x32xf32, #tpu.memory_space<vmem>>, vector<64x32xf32>
    %c0_1 = arith.constant 0 : index
    %c0_2 = arith.constant 0 : index
    %1 = vector.load %arg2[%c0_1, %c0_2] : memref<1x32xf32, #tpu.memory_space<vmem>>, vector<1x32xf32>
    %c0_3 = arith.constant 0 : index
    %c0_4 = arith.constant 0 : index
    %2 = vector.load %arg3[%c0_3, %c0_4] : memref<1x32xf32, #tpu.memory_space<vmem>>, vector<1x32xf32>
    %cst = arith.constant dense<0.000000e+00> : vector<64xf32>
    %3 = vector.multi_reduction <add>, %0, %cst [1] : vector<64x32xf32> to vector<64xf32>
    %4 = vector.shape_cast %3 : vector<64xf32> to vector<64x1xf32>
    %cst_5 = arith.constant 3.200000e+01 : f32
    %5 = vector.broadcast %cst_5 : f32 to vector<64x1xf32>
    %6 = arith.divf %4, %5 : vector<64x1xf32>
    %7 = vector.broadcast %6 : vector<64x1xf32> to vector<64x32xf32>
    %8 = arith.subf %0, %7 : vector<64x32xf32>
    %9 = arith.mulf %8, %8 : vector<64x32xf32>
    %cst_6 = arith.constant dense<0.000000e+00> : vector<64xf32>
    %10 = vector.multi_reduction <add>, %9, %cst_6 [1] : vector<64x32xf32> to vector<64xf32>
    %11 = vector.shape_cast %10 : vector<64xf32> to vector<64x1xf32>
    %cst_7 = arith.constant 3.200000e+01 : f32
    %12 = vector.broadcast %cst_7 : f32 to vector<64x1xf32>
    %13 = arith.divf %11, %12 : vector<64x1xf32>
    %14 = vector.broadcast %6 : vector<64x1xf32> to vector<64x32xf32>
    %15 = arith.subf %0, %14 : vector<64x32xf32>
    %cst_8 = arith.constant 9.99999974E-6 : f32
    %16 = vector.broadcast %cst_8 : f32 to vector<64x1xf32>
    %17 = arith.addf %13, %16 : vector<64x1xf32>
    %18 = math.rsqrt %17 : vector<64x1xf32>
    %19 = vector.broadcast %18 : vector<64x1xf32> to vector<64x32xf32>
    %20 = arith.mulf %15, %19 : vector<64x32xf32>
    %21 = vector.broadcast %1 : vector<1x32xf32> to vector<64x32xf32>
    %22 = arith.mulf %20, %21 : vector<64x32xf32>
    %23 = vector.broadcast %2 : vector<1x32xf32> to vector<64x32xf32>
    %24 = arith.addf %22, %23 : vector<64x32xf32>
    %25 = arith.truncf %24 : vector<64x32xf32> to vector<64x32xbf16>
    %c0_9 = arith.constant 0 : index
    %c0_10 = arith.constant 0 : index
    %26 = vector.load %arg4[%c0_9, %c0_10] : memref<32x32xf32, #tpu.memory_space<vmem>>, vector<32x32xf32>
    %27 = arith.truncf %26 : vector<32x32xf32> to vector<32x32xbf16>
    %cst_11 = arith.constant dense<0.000000e+00> : vector<64x32xf32>
    %28 = tpu.matmul %25, %27, %cst_11 {dimension_numbers = #tpu.dot_dimension_numbers<[1], [0], [0], [1], [0, 0, 1, 1], [], []>} : vector<64x32xbf16>, vector<32x32xbf16>, vector<64x32xf32> -> vector<64x32xf32>
    %c0_12 = arith.constant 0 : index
    %c0_13 = arith.constant 0 : index
    %29 = vector.load %arg5[%c0_12, %c0_13] : memref<64x32xf32, #tpu.memory_space<vmem>>, vector<64x32xf32>
    tpu.vector_store %arg5[%c0_12, %c0_13], %28 {strides = array<i32>} : memref<64x32xf32, #tpu.memory_space<vmem>>, vector<64x32xf32>,
    return
  }
  func.func @transform_0(%arg0: i32) -> (i32, i32) {
    %c0_i32 = arith.constant 0 : i32
    %c0_i32_0 = arith.constant 0 : i32
    return %arg0, %c0_i32 : i32, i32
  }
  func.func @transform_1(%arg0: i32) -> (i32, i32) {
    %c0_i32 = arith.constant 0 : i32
    %c0_i32_0 = arith.constant 0 : i32
    %c0_i32_1 = arith.constant 0 : i32
    return %c0_i32, %c0_i32_0 : i32, i32
  }
  func.func @transform_2(%arg0: i32) -> (i32, i32) {
    %c0_i32 = arith.constant 0 : i32
    %c0_i32_0 = arith.constant 0 : i32
    %c0_i32_1 = arith.constant 0 : i32
    return %c0_i32, %c0_i32_0 : i32, i32
  }
  func.func @transform_3(%arg0: i32) -> (i32, i32) {
    %c0_i32 = arith.constant 0 : i32
    %c0_i32_0 = arith.constant 0 : i32
    %c0_i32_1 = arith.constant 0 : i32
    return %c0_i32, %c0_i32_0 : i32, i32
  }
  func.func @transform_4(%arg0: i32) -> (i32, i32) {
    %c0_i32 = arith.constant 0 : i32
    %c0_i32_0 = arith.constant 0 : i32
    return %arg0, %c0_i32 : i32, i32
  }
}

module attributes {stable_mosaic.version = 11 : i64} {
  func.func @_mha_kernel(%arg0: i32, %arg1: memref<1x16x32xf32, #tpu.memory_space<vmem>>, %arg2: memref<1x8x32xf32, #tpu.memory_space<vmem>>, %arg3: memref<1x8x32xf32, #tpu.memory_space<vmem>>, %arg4: memref<1x16x32xf32, #tpu.memory_space<vmem>>) attributes {dimension_semantics = [#tpu.dimension_semantics<parallel>], iteration_bounds = array<i64: 4>, scalar_prefetch = 0 : i64, scratch_operands = 0 : i64, tpu.core_type = #tpu.core_type<tc>, window_params = [{transform_indices = @transform_0, window_bounds = array<i64: 1, 16, 32>}, {transform_indices = @transform_1, window_bounds = array<i64: 1, 8, 32>}, {transform_indices = @transform_2, window_bounds = array<i64: 1, 8, 32>}, {transform_indices = @transform_3, window_bounds = array<i64: 1, 16, 32>}]} {
    %c0 = arith.constant 0 : index
    %c0_0 = arith.constant 0 : index
    %c0_1 = arith.constant 0 : index
    %0 = vector.load %arg1[%c0, %c0_0, %c0_1] : memref<1x16x32xf32, #tpu.memory_space<vmem>>, vector<1x16x8xf32>
    %1 = vector.shape_cast %0 : vector<1x16x8xf32> to vector<16x8xf32>
    %2 = arith.truncf %1 : vector<16x8xf32> to vector<16x8xbf16>
    %c0_2 = arith.constant 0 : index
    %c0_3 = arith.constant 0 : index
    %c0_4 = arith.constant 0 : index
    %3 = vector.load %arg2[%c0_2, %c0_3, %c0_4] : memref<1x8x32xf32, #tpu.memory_space<vmem>>, vector<1x8x8xf32>
    %4 = vector.shape_cast %3 : vector<1x8x8xf32> to vector<8x8xf32>
    %5 = arith.truncf %4 : vector<8x8xf32> to vector<8x8xbf16>
    %c0_5 = arith.constant 0 : index
    %c0_6 = arith.constant 0 : index
    %c0_7 = arith.constant 0 : index
    %6 = vector.load %arg3[%c0_5, %c0_6, %c0_7] : memref<1x8x32xf32, #tpu.memory_space<vmem>>, vector<1x8x8xf32>
    %7 = vector.shape_cast %6 : vector<1x8x8xf32> to vector<8x8xf32>
    %8 = arith.truncf %7 : vector<8x8xf32> to vector<8x8xbf16>
    %cst = arith.constant dense<0.000000e+00> : vector<16x8xf32>
    %9 = tpu.matmul %2, %5, %cst {dimension_numbers = #tpu.dot_dimension_numbers<[1], [1], [0], [0], [0, 0, 1, 0], [], []>} : vector<16x8xbf16>, vector<8x8xbf16>, vector<16x8xf32> -> vector<16x8xf32>
    %cst_8 = arith.constant 0.353553385 : f32
    %10 = vector.broadcast %cst_8 : f32 to vector<16x8xf32>
    %11 = arith.mulf %9, %10 : vector<16x8xf32>
    %cst_9 = arith.constant dense<0xFF800000> : vector<16xf32>
    %12 = vector.multi_reduction <maximumf>, %11, %cst_9 [1] : vector<16x8xf32> to vector<16xf32>
    %13 = vector.shape_cast %12 : vector<16xf32> to vector<16x1xf32>
    %14 = vector.broadcast %13 : vector<16x1xf32> to vector<16x8xf32>
    %15 = arith.subf %11, %14 : vector<16x8xf32>
    %16 = math.exp %15 : vector<16x8xf32>
    %cst_10 = arith.constant dense<0.000000e+00> : vector<16xf32>
    %17 = vector.multi_reduction <add>, %16, %cst_10 [1] : vector<16x8xf32> to vector<16xf32>
    %18 = vector.shape_cast %17 : vector<16xf32> to vector<16x1xf32>
    %19 = tpu.reciprocal %18 {approx = true} : vector<16x1xf32> -> vector<16x1xf32>
    %20 = vector.broadcast %19 : vector<16x1xf32> to vector<16x8xf32>
    %21 = arith.mulf %16, %20 : vector<16x8xf32>
    %22 = arith.truncf %21 : vector<16x8xf32> to vector<16x8xbf16>
    %cst_11 = arith.constant dense<0.000000e+00> : vector<16x8xf32>
    %23 = tpu.matmul %22, %8, %cst_11 {dimension_numbers = #tpu.dot_dimension_numbers<[1], [0], [0], [1], [0, 0, 1, 1], [], []>} : vector<16x8xbf16>, vector<8x8xbf16>, vector<16x8xf32> -> vector<16x8xf32>
    %c0_12 = arith.constant 0 : index
    %c0_13 = arith.constant 0 : index
    %c0_14 = arith.constant 0 : index
    %24 = vector.load %arg4[%c0_12, %c0_13, %c0_14] : memref<1x16x32xf32, #tpu.memory_space<vmem>>, vector<1x16x8xf32>
    %25 = vector.shape_cast %24 : vector<1x16x8xf32> to vector<16x8xf32>
    %26 = vector.shape_cast %23 : vector<16x8xf32> to vector<1x16x8xf32>
    tpu.vector_store %arg4[%c0_12, %c0_13, %c0_14], %26 {strides = array<i32>} : memref<1x16x32xf32, #tpu.memory_space<vmem>>, vector<1x16x8xf32>,
    %c0_15 = arith.constant 0 : index
    %c0_16 = arith.constant 0 : index
    %c8 = arith.constant 8 : index
    %27 = vector.load %arg1[%c0_15, %c0_16, %c8] : memref<1x16x32xf32, #tpu.memory_space<vmem>>, vector<1x16x8xf32>
    %28 = vector.shape_cast %27 : vector<1x16x8xf32> to vector<16x8xf32>
    %29 = arith.truncf %28 : vector<16x8xf32> to vector<16x8xbf16>
    %c0_17 = arith.constant 0 : index
    %c0_18 = arith.constant 0 : index
    %c8_19 = arith.constant 8 : index
    %30 = vector.load %arg2[%c0_17, %c0_18, %c8_19] : memref<1x8x32xf32, #tpu.memory_space<vmem>>, vector<1x8x8xf32>
    %31 = vector.shape_cast %30 : vector<1x8x8xf32> to vector<8x8xf32>
    %32 = arith.truncf %31 : vector<8x8xf32> to vector<8x8xbf16>
    %c0_20 = arith.constant 0 : index
    %c0_21 = arith.constant 0 : index
    %c8_22 = arith.constant 8 : index
    %33 = vector.load %arg3[%c0_20, %c0_21, %c8_22] : memref<1x8x32xf32, #tpu.memory_space<vmem>>, vector<1x8x8xf32>
    %34 = vector.shape_cast %33 : vector<1x8x8xf32> to vector<8x8xf32>
    %35 = arith.truncf %34 : vector<8x8xf32> to vector<8x8xbf16>
    %cst_23 = arith.constant dense<0.000000e+00> : vector<16x8xf32>
    %36 = tpu.matmul %29, %32, %cst_23 {dimension_numbers = #tpu.dot_dimension_numbers<[1], [1], [0], [0], [0, 0, 1, 0], [], []>} : vector<16x8xbf16>, vector<8x8xbf16>, vector<16x8xf32> -> vector<16x8xf32>
    %cst_24 = arith.constant 0.353553385 : f32
    %37 = vector.broadcast %cst_24 : f32 to vector<16x8xf32>
    %38 = arith.mulf %36, %37 : vector<16x8xf32>
    %cst_25 = arith.constant dense<0xFF800000> : vector<16xf32>
    %39 = vector.multi_reduction <maximumf>, %38, %cst_25 [1] : vector<16x8xf32> to vector<16xf32>
    %40 = vector.shape_cast %39 : vector<16xf32> to vector<16x1xf32>
    %41 = vector.broadcast %40 : vector<16x1xf32> to vector<16x8xf32>
    %42 = arith.subf %38, %41 : vector<16x8xf32>
    %43 = math.exp %42 : vector<16x8xf32>
    %cst_26 = arith.constant dense<0.000000e+00> : vector<16xf32>
    %44 = vector.multi_reduction <add>, %43, %cst_26 [1] : vector<16x8xf32> to vector<16xf32>
    %45 = vector.shape_cast %44 : vector<16xf32> to vector<16x1xf32>
    %46 = tpu.reciprocal %45 {approx = true} : vector<16x1xf32> -> vector<16x1xf32>
    %47 = vector.broadcast %46 : vector<16x1xf32> to vector<16x8xf32>
    %48 = arith.mulf %43, %47 : vector<16x8xf32>
    %49 = arith.truncf %48 : vector<16x8xf32> to vector<16x8xbf16>
    %cst_27 = arith.constant dense<0.000000e+00> : vector<16x8xf32>
    %50 = tpu.matmul %49, %35, %cst_27 {dimension_numbers = #tpu.dot_dimension_numbers<[1], [0], [0], [1], [0, 0, 1, 1], [], []>} : vector<16x8xbf16>, vector<8x8xbf16>, vector<16x8xf32> -> vector<16x8xf32>
    %c0_28 = arith.constant 0 : index
    %c0_29 = arith.constant 0 : index
    %c8_30 = arith.constant 8 : index
    %51 = vector.load %arg4[%c0_28, %c0_29, %c8_30] : memref<1x16x32xf32, #tpu.memory_space<vmem>>, vector<1x16x8xf32>
    %52 = vector.shape_cast %51 : vector<1x16x8xf32> to vector<16x8xf32>
    %53 = vector.shape_cast %50 : vector<16x8xf32> to vector<1x16x8xf32>
    tpu.vector_store %arg4[%c0_28, %c0_29, %c8_30], %53 {strides = array<i32>} : memref<1x16x32xf32, #tpu.memory_space<vmem>>, vector<1x16x8xf32>,
    %c0_31 = arith.constant 0 : index
    %c0_32 = arith.constant 0 : index
    %c16 = arith.constant 16 : index
    %54 = vector.load %arg1[%c0_31, %c0_32, %c16] : memref<1x16x32xf32, #tpu.memory_space<vmem>>, vector<1x16x8xf32>
    %55 = vector.shape_cast %54 : vector<1x16x8xf32> to vector<16x8xf32>
    %56 = arith.truncf %55 : vector<16x8xf32> to vector<16x8xbf16>
    %c0_33 = arith.constant 0 : index
    %c0_34 = arith.constant 0 : index
    %c16_35 = arith.constant 16 : index
    %57 = vector.load %arg2[%c0_33, %c0_34, %c16_35] : memref<1x8x32xf32, #tpu.memory_space<vmem>>, vector<1x8x8xf32>
    %58 = vector.shape_cast %57 : vector<1x8x8xf32> to vector<8x8xf32>
    %59 = arith.truncf %58 : vector<8x8xf32> to vector<8x8xbf16>
    %c0_36 = arith.constant 0 : index
    %c0_37 = arith.constant 0 : index
    %c16_38 = arith.constant 16 : index
    %60 = vector.load %arg3[%c0_36, %c0_37, %c16_38] : memref<1x8x32xf32, #tpu.memory_space<vmem>>, vector<1x8x8xf32>
    %61 = vector.shape_cast %60 : vector<1x8x8xf32> to vector<8x8xf32>
    %62 = arith.truncf %61 : vector<8x8xf32> to vector<8x8xbf16>
    %cst_39 = arith.constant dense<0.000000e+00> : vector<16x8xf32>
    %63 = tpu.matmul %56, %59, %cst_39 {dimension_numbers = #tpu.dot_dimension_numbers<[1], [1], [0], [0], [0, 0, 1, 0], [], []>} : vector<16x8xbf16>, vector<8x8xbf16>, vector<16x8xf32> -> vector<16x8xf32>
    %cst_40 = arith.constant 0.353553385 : f32
    %64 = vector.broadcast %cst_40 : f32 to vector<16x8xf32>
    %65 = arith.mulf %63, %64 : vector<16x8xf32>
    %cst_41 = arith.constant dense<0xFF800000> : vector<16xf32>
    %66 = vector.multi_reduction <maximumf>, %65, %cst_41 [1] : vector<16x8xf32> to vector<16xf32>
    %67 = vector.shape_cast %66 : vector<16xf32> to vector<16x1xf32>
    %68 = vector.broadcast %67 : vector<16x1xf32> to vector<16x8xf32>
    %69 = arith.subf %65, %68 : vector<16x8xf32>
    %70 = math.exp %69 : vector<16x8xf32>
    %cst_42 = arith.constant dense<0.000000e+00> : vector<16xf32>
    %71 = vector.multi_reduction <add>, %70, %cst_42 [1] : vector<16x8xf32> to vector<16xf32>
    %72 = vector.shape_cast %71 : vector<16xf32> to vector<16x1xf32>
    %73 = tpu.reciprocal %72 {approx = true} : vector<16x1xf32> -> vector<16x1xf32>
    %74 = vector.broadcast %73 : vector<16x1xf32> to vector<16x8xf32>
    %75 = arith.mulf %70, %74 : vector<16x8xf32>
    %76 = arith.truncf %75 : vector<16x8xf32> to vector<16x8xbf16>
    %cst_43 = arith.constant dense<0.000000e+00> : vector<16x8xf32>
    %77 = tpu.matmul %76, %62, %cst_43 {dimension_numbers = #tpu.dot_dimension_numbers<[1], [0], [0], [1], [0, 0, 1, 1], [], []>} : vector<16x8xbf16>, vector<8x8xbf16>, vector<16x8xf32> -> vector<16x8xf32>
    %c0_44 = arith.constant 0 : index
    %c0_45 = arith.constant 0 : index
    %c16_46 = arith.constant 16 : index
    %78 = vector.load %arg4[%c0_44, %c0_45, %c16_46] : memref<1x16x32xf32, #tpu.memory_space<vmem>>, vector<1x16x8xf32>
    %79 = vector.shape_cast %78 : vector<1x16x8xf32> to vector<16x8xf32>
    %80 = vector.shape_cast %77 : vector<16x8xf32> to vector<1x16x8xf32>
    tpu.vector_store %arg4[%c0_44, %c0_45, %c16_46], %80 {strides = array<i32>} : memref<1x16x32xf32, #tpu.memory_space<vmem>>, vector<1x16x8xf32>,
    %c0_47 = arith.constant 0 : index
    %c0_48 = arith.constant 0 : index
    %c24 = arith.constant 24 : index
    %81 = vector.load %arg1[%c0_47, %c0_48, %c24] : memref<1x16x32xf32, #tpu.memory_space<vmem>>, vector<1x16x8xf32>
    %82 = vector.shape_cast %81 : vector<1x16x8xf32> to vector<16x8xf32>
    %83 = arith.truncf %82 : vector<16x8xf32> to vector<16x8xbf16>
    %c0_49 = arith.constant 0 : index
    %c0_50 = arith.constant 0 : index
    %c24_51 = arith.constant 24 : index
    %84 = vector.load %arg2[%c0_49, %c0_50, %c24_51] : memref<1x8x32xf32, #tpu.memory_space<vmem>>, vector<1x8x8xf32>
    %85 = vector.shape_cast %84 : vector<1x8x8xf32> to vector<8x8xf32>
    %86 = arith.truncf %85 : vector<8x8xf32> to vector<8x8xbf16>
    %c0_52 = arith.constant 0 : index
    %c0_53 = arith.constant 0 : index
    %c24_54 = arith.constant 24 : index
    %87 = vector.load %arg3[%c0_52, %c0_53, %c24_54] : memref<1x8x32xf32, #tpu.memory_space<vmem>>, vector<1x8x8xf32>
    %88 = vector.shape_cast %87 : vector<1x8x8xf32> to vector<8x8xf32>
    %89 = arith.truncf %88 : vector<8x8xf32> to vector<8x8xbf16>
    %cst_55 = arith.constant dense<0.000000e+00> : vector<16x8xf32>
    %90 = tpu.matmul %83, %86, %cst_55 {dimension_numbers = #tpu.dot_dimension_numbers<[1], [1], [0], [0], [0, 0, 1, 0], [], []>} : vector<16x8xbf16>, vector<8x8xbf16>, vector<16x8xf32> -> vector<16x8xf32>
    %cst_56 = arith.constant 0.353553385 : f32
    %91 = vector.broadcast %cst_56 : f32 to vector<16x8xf32>
    %92 = arith.mulf %90, %91 : vector<16x8xf32>
    %cst_57 = arith.constant dense<0xFF800000> : vector<16xf32>
    %93 = vector.multi_reduction <maximumf>, %92, %cst_57 [1] : vector<16x8xf32> to vector<16xf32>
    %94 = vector.shape_cast %93 : vector<16xf32> to vector<16x1xf32>
    %95 = vector.broadcast %94 : vector<16x1xf32> to vector<16x8xf32>
    %96 = arith.subf %92, %95 : vector<16x8xf32>
    %97 = math.exp %96 : vector<16x8xf32>
    %cst_58 = arith.constant dense<0.000000e+00> : vector<16xf32>
    %98 = vector.multi_reduction <add>, %97, %cst_58 [1] : vector<16x8xf32> to vector<16xf32>
    %99 = vector.shape_cast %98 : vector<16xf32> to vector<16x1xf32>
    %100 = tpu.reciprocal %99 {approx = true} : vector<16x1xf32> -> vector<16x1xf32>
    %101 = vector.broadcast %100 : vector<16x1xf32> to vector<16x8xf32>
    %102 = arith.mulf %97, %101 : vector<16x8xf32>
    %103 = arith.truncf %102 : vector<16x8xf32> to vector<16x8xbf16>
    %cst_59 = arith.constant dense<0.000000e+00> : vector<16x8xf32>
    %104 = tpu.matmul %103, %89, %cst_59 {dimension_numbers = #tpu.dot_dimension_numbers<[1], [0], [0], [1], [0, 0, 1, 1], [], []>} : vector<16x8xbf16>, vector<8x8xbf16>, vector<16x8xf32> -> vector<16x8xf32>
    %c0_60 = arith.constant 0 : index
    %c0_61 = arith.constant 0 : index
    %c24_62 = arith.constant 24 : index
    %105 = vector.load %arg4[%c0_60, %c0_61, %c24_62] : memref<1x16x32xf32, #tpu.memory_space<vmem>>, vector<1x16x8xf32>
    %106 = vector.shape_cast %105 : vector<1x16x8xf32> to vector<16x8xf32>
    %107 = vector.shape_cast %104 : vector<16x8xf32> to vector<1x16x8xf32>
    tpu.vector_store %arg4[%c0_60, %c0_61, %c24_62], %107 {strides = array<i32>} : memref<1x16x32xf32, #tpu.memory_space<vmem>>, vector<1x16x8xf32>,
    return
  }
  func.func @transform_0(%arg0: i32) -> (i32, i32, i32) {
    %c0_i32 = arith.constant 0 : i32
    %c0_i32_0 = arith.constant 0 : i32
    %c0_i32_1 = arith.constant 0 : i32
    return %arg0, %c0_i32, %c0_i32_0 : i32, i32, i32
  }
  func.func @transform_1(%arg0: i32) -> (i32, i32, i32) {
    %c0_i32 = arith.constant 0 : i32
    %c0_i32_0 = arith.constant 0 : i32
    %c0_i32_1 = arith.constant 0 : i32
    return %arg0, %c0_i32, %c0_i32_0 : i32, i32, i32
  }
  func.func @transform_2(%arg0: i32) -> (i32, i32, i32) {
    %c0_i32 = arith.constant 0 : i32
    %c0_i32_0 = arith.constant 0 : i32
    %c0_i32_1 = arith.constant 0 : i32
    return %arg0, %c0_i32, %c0_i32_0 : i32, i32, i32
  }
  func.func @transform_3(%arg0: i32) -> (i32, i32, i32) {
    %c0_i32 = arith.constant 0 : i32
    %c0_i32_0 = arith.constant 0 : i32
    %c0_i32_1 = arith.constant 0 : i32
    return %arg0, %c0_i32, %c0_i32_0 : i32, i32, i32
  }
}

module attributes {stable_mosaic.version = 11 : i64} {
  func.func @_ln_geglu_mlp_kernel(%arg0: i32, %arg1: memref<64x32xf32, #tpu.memory_space<vmem>>, %arg2: memref<1x32xf32, #tpu.memory_space<vmem>>, %arg3: memref<1x32xf32, #tpu.memory_space<vmem>>, %arg4: memref<32x256xf32, #tpu.memory_space<vmem>>, %arg5: memref<1x256xf32, #tpu.memory_space<vmem>>, %arg6: memref<128x32xf32, #tpu.memory_space<vmem>>, %arg7: memref<1x32xf32, #tpu.memory_space<vmem>>, %arg8: memref<64x32xf32, #tpu.memory_space<vmem>>, %arg9: memref<64x32xf32, #tpu.memory_space<vmem>>) attributes {dimension_semantics = [#tpu.dimension_semantics<parallel>], iteration_bounds = array<i64: 1>, scalar_prefetch = 0 : i64, scratch_operands = 0 : i64, tpu.core_type = #tpu.core_type<tc>, window_params = [{transform_indices = @transform_0, window_bounds = array<i64: 64, 32>}, {pipeline_mode = #tpu.pipeline_mode<synchronous>, transform_indices = @transform_1, window_bounds = array<i64: 1, 32>}, {pipeline_mode = #tpu.pipeline_mode<synchronous>, transform_indices = @transform_2, window_bounds = array<i64: 1, 32>}, {pipeline_mode = #tpu.pipeline_mode<synchronous>, transform_indices = @transform_3, window_bounds = array<i64: 32, 256>}, {pipeline_mode = #tpu.pipeline_mode<synchronous>, transform_indices = @transform_4, window_bounds = array<i64: 1, 256>}, {pipeline_mode = #tpu.pipeline_mode<synchronous>, transform_indices = @transform_5, window_bounds = array<i64: 128, 32>}, {pipeline_mode = #tpu.pipeline_mode<synchronous>, transform_indices = @transform_6, window_bounds = array<i64: 1, 32>}, {transform_indices = @transform_7, window_bounds = array<i64: 64, 32>}, {transform_indices = @transform_8, window_bounds = array<i64: 64, 32>}]} {
    %c0 = arith.constant 0 : index
    %c0_0 = arith.constant 0 : index
    %0 = vector.load %arg1[%c0, %c0_0] : memref<64x32xf32, #tpu.memory_space<vmem>>, vector<64x32xf32>
    %c0_1 = arith.constant 0 : index
    %c0_2 = arith.constant 0 : index
    %1 = vector.load %arg2[%c0_1, %c0_2] : memref<1x32xf32, #tpu.memory_space<vmem>>, vector<1x32xf32>
    %c0_3 = arith.constant 0 : index
    %c0_4 = arith.constant 0 : index
    %2 = vector.load %arg3[%c0_3, %c0_4] : memref<1x32xf32, #tpu.memory_space<vmem>>, vector<1x32xf32>
    %cst = arith.constant dense<0.000000e+00> : vector<64xf32>
    %3 = vector.multi_reduction <add>, %0, %cst [1] : vector<64x32xf32> to vector<64xf32>
    %4 = vector.shape_cast %3 : vector<64xf32> to vector<64x1xf32>
    %cst_5 = arith.constant 3.200000e+01 : f32
    %5 = vector.broadcast %cst_5 : f32 to vector<64x1xf32>
    %6 = arith.divf %4, %5 : vector<64x1xf32>
    %7 = vector.broadcast %6 : vector<64x1xf32> to vector<64x32xf32>
    %8 = arith.subf %0, %7 : vector<64x32xf32>
    %9 = arith.mulf %8, %8 : vector<64x32xf32>
    %cst_6 = arith.constant dense<0.000000e+00> : vector<64xf32>
    %10 = vector.multi_reduction <add>, %9, %cst_6 [1] : vector<64x32xf32> to vector<64xf32>
    %11 = vector.shape_cast %10 : vector<64xf32> to vector<64x1xf32>
    %cst_7 = arith.constant 3.200000e+01 : f32
    %12 = vector.broadcast %cst_7 : f32 to vector<64x1xf32>
    %13 = arith.divf %11, %12 : vector<64x1xf32>
    %14 = vector.broadcast %6 : vector<64x1xf32> to vector<64x32xf32>
    %15 = arith.subf %0, %14 : vector<64x32xf32>
    %cst_8 = arith.constant 9.99999974E-6 : f32
    %16 = vector.broadcast %cst_8 : f32 to vector<64x1xf32>
    %17 = arith.addf %13, %16 : vector<64x1xf32>
    %18 = math.rsqrt %17 : vector<64x1xf32>
    %19 = vector.broadcast %18 : vector<64x1xf32> to vector<64x32xf32>
    %20 = arith.mulf %15, %19 : vector<64x32xf32>
    %21 = vector.broadcast %1 : vector<1x32xf32> to vector<64x32xf32>
    %22 = arith.mulf %20, %21 : vector<64x32xf32>
    %23 = vector.broadcast %2 : vector<1x32xf32> to vector<64x32xf32>
    %24 = arith.addf %22, %23 : vector<64x32xf32>
    %25 = arith.truncf %24 : vector<64x32xf32> to vector<64x32xbf16>
    %c0_9 = arith.constant 0 : index
    %c0_10 = arith.constant 0 : index
    %26 = vector.load %arg4[%c0_9, %c0_10] : memref<32x256xf32, #tpu.memory_space<vmem>>, vector<32x256xf32>
    %27 = arith.truncf %26 : vector<32x256xf32> to vector<32x256xbf16>
    %cst_11 = arith.constant dense<0.000000e+00> : vector<64x256xf32>
    %28 = tpu.matmul %25, %27, %cst_11 {dimension_numbers = #tpu.dot_dimension_numbers<[1], [0], [0], [1], [0, 0, 1, 1], [], []>} : vector<64x32xbf16>, vector<32x256xbf16>, vector<64x256xf32> -> vector<64x256xf32>
    %c0_12 = arith.constant 0 : index
    %c0_13 = arith.constant 0 : index
    %29 = vector.load %arg5[%c0_12, %c0_13] : memref<1x256xf32, #tpu.memory_space<vmem>>, vector<1x256xf32>
    %30 = vector.broadcast %29 : vector<1x256xf32> to vector<64x256xf32>
    %31 = arith.addf %28, %30 : vector<64x256xf32>
    %32 = vector.extract_strided_slice %31 {offsets = [0, 0], sizes = [64, 128], strides = [1, 1]} : vector<64x256xf32> to vector<64x128xf32>
    %33 = vector.extract_strided_slice %31 {offsets = [0, 128], sizes = [64, 128], strides = [1, 1]} : vector<64x256xf32> to vector<64x128xf32>
    %cst_14 = arith.constant 5.000000e-01 : f32
    %34 = vector.broadcast %cst_14 : f32 to vector<64x128xf32>
    %35 = arith.mulf %34, %33 : vector<64x128xf32>
    %cst_15 = arith.constant 0.707106769 : f32
    %36 = vector.broadcast %cst_15 : f32 to vector<64x128xf32>
    %37 = arith.mulf %33, %36 : vector<64x128xf32>
    %38 = math.erf %37 : vector<64x128xf32>
    %cst_16 = arith.constant 1.000000e+00 : f32
    %39 = vector.broadcast %cst_16 : f32 to vector<64x128xf32>
    %40 = arith.addf %39, %38 : vector<64x128xf32>
    %41 = arith.mulf %35, %40 : vector<64x128xf32>
    %42 = arith.mulf %32, %41 : vector<64x128xf32>
    %43 = arith.truncf %42 : vector<64x128xf32> to vector<64x128xbf16>
    %c0_17 = arith.constant 0 : index
    %c0_18 = arith.constant 0 : index
    %44 = vector.load %arg6[%c0_17, %c0_18] : memref<128x32xf32, #tpu.memory_space<vmem>>, vector<128x32xf32>
    %45 = arith.truncf %44 : vector<128x32xf32> to vector<128x32xbf16>
    %cst_19 = arith.constant dense<0.000000e+00> : vector<64x32xf32>
    %46 = tpu.matmul %43, %45, %cst_19 {dimension_numbers = #tpu.dot_dimension_numbers<[1], [0], [0], [1], [0, 0, 1, 1], [], []>} : vector<64x128xbf16>, vector<128x32xbf16>, vector<64x32xf32> -> vector<64x32xf32>
    %c0_20 = arith.constant 0 : index
    %c0_21 = arith.constant 0 : index
    %47 = vector.load %arg7[%c0_20, %c0_21] : memref<1x32xf32, #tpu.memory_space<vmem>>, vector<1x32xf32>
    %48 = vector.broadcast %47 : vector<1x32xf32> to vector<64x32xf32>
    %49 = arith.addf %46, %48 : vector<64x32xf32>
    %c0_22 = arith.constant 0 : index
    %c0_23 = arith.constant 0 : index
    %50 = vector.load %arg8[%c0_22, %c0_23] : memref<64x32xf32, #tpu.memory_space<vmem>>, vector<64x32xf32>
    %51 = arith.addf %49, %50 : vector<64x32xf32>
    %c0_24 = arith.constant 0 : index
    %c0_25 = arith.constant 0 : index
    %52 = vector.load %arg9[%c0_24, %c0_25] : memref<64x32xf32, #tpu.memory_space<vmem>>, vector<64x32xf32>
    tpu.vector_store %arg9[%c0_24, %c0_25], %51 {strides = array<i32>} : memref<64x32xf32, #tpu.memory_space<vmem>>, vector<64x32xf32>,
    return
  }
  func.func @transform_0(%arg0: i32) -> (i32, i32) {
    %c0_i32 = arith.constant 0 : i32
    %c0_i32_0 = arith.constant 0 : i32
    return %arg0, %c0_i32 : i32, i32
  }
  func.func @transform_1(%arg0: i32) -> (i32, i32) {
    %c0_i32 = arith.constant 0 : i32
    %c0_i32_0 = arith.constant 0 : i32
    %c0_i32_1 = arith.constant 0 : i32
    return %c0_i32, %c0_i32_0 : i32, i32
  }
  func.func @transform_2(%arg0: i32) -> (i32, i32) {
    %c0_i32 = arith.constant 0 : i32
    %c0_i32_0 = arith.constant 0 : i32
    %c0_i32_1 = arith.constant 0 : i32
    return %c0_i32, %c0_i32_0 : i32, i32
  }
  func.func @transform_3(%arg0: i32) -> (i32, i32) {
    %c0_i32 = arith.constant 0 : i32
    %c0_i32_0 = arith.constant 0 : i32
    %c0_i32_1 = arith.constant 0 : i32
    return %c0_i32, %c0_i32_0 : i32, i32
  }
  func.func @transform_4(%arg0: i32) -> (i32, i32) {
    %c0_i32 = arith.constant 0 : i32
    %c0_i32_0 = arith.constant 0 : i32
    %c0_i32_1 = arith.constant 0 : i32
    return %c0_i32, %c0_i32_0 : i32, i32
  }
  func.func @transform_5(%arg0: i32) -> (i32, i32) {
    %c0_i32 = arith.constant 0 : i32
    %c0_i32_0 = arith.constant 0 : i32
    %c0_i32_1 = arith.constant 0 : i32
    return %c0_i32, %c0_i32_0 : i32, i32
  }
  func.func @transform_6(%arg0: i32) -> (i32, i32) {
    %c0_i32 = arith.constant 0 : i32
    %c0_i32_0 = arith.constant 0 : i32
    %c0_i32_1 = arith.constant 0 : i32
    return %c0_i32, %c0_i32_0 : i32, i32
  }
  func.func @transform_7(%arg0: i32) -> (i32, i32) {
    %c0_i32 = arith.constant 0 : i32
    %c0_i32_0 = arith.constant 0 : i32
    return %arg0, %c0_i32 : i32, i32
  }
  func.func @transform_8(%arg0: i32) -> (i32, i32) {
    %c0_i32 = arith.constant 0 : i32
    %c0_i32_0 = arith.constant 0 : i32
    return %arg0, %c0_i32 : i32, i32
  }
}

module attributes {stable_mosaic.version = 11 : i64} {
  func.func @_matmul_split_kernel(%arg0: i32, %arg1: memref<32x16xf32, #tpu.memory_space<vmem>>, %arg2: memref<16x64xf32, #tpu.memory_space<vmem>>, %arg3: memref<32x32xf32, #tpu.memory_space<vmem>>, %arg4: memref<32x32xf32, #tpu.memory_space<vmem>>) attributes {dimension_semantics = [#tpu.dimension_semantics<parallel>], iteration_bounds = array<i64: 1>, scalar_prefetch = 0 : i64, scratch_operands = 0 : i64, tpu.core_type = #tpu.core_type<tc>, window_params = [{transform_indices = @transform_0, window_bounds = array<i64: 32, 16>}, {pipeline_mode = #tpu.pipeline_mode<synchronous>, transform_indices = @transform_1, window_bounds = array<i64: 16, 64>}, {transform_indices = @transform_2, window_bounds = array<i64: 32, 32>}, {transform_indices = @transform_3, window_bounds = array<i64: 32, 32>}]} {
    %c0 = arith.constant 0 : index
    %c0_0 = arith.constant 0 : index
    %0 = vector.load %arg1[%c0, %c0_0] : memref<32x16xf32, #tpu.memory_space<vmem>>, vector<32x16xf32>
    %1 = arith.truncf %0 : vector<32x16xf32> to vector<32x16xbf16>
    %c0_1 = arith.constant 0 : index
    %c0_2 = arith.constant 0 : index
    %2 = vector.load %arg2[%c0_1, %c0_2] : memref<16x64xf32, #tpu.memory_space<vmem>>, vector<16x64xf32>
    %3 = arith.truncf %2 : vector<16x64xf32> to vector<16x64xbf16>
    %cst = arith.constant dense<0.000000e+00> : vector<32x64xf32>
    %4 = tpu.matmul %1, %3, %cst {dimension_numbers = #tpu.dot_dimension_numbers<[1], [0], [0], [1], [0, 0, 1, 1], [], []>} : vector<32x16xbf16>, vector<16x64xbf16>, vector<32x64xf32> -> vector<32x64xf32>
    %5 = vector.extract_strided_slice %4 {offsets = [0, 0], sizes = [32, 32], strides = [1, 1]} : vector<32x64xf32> to vector<32x32xf32>
    %c0_3 = arith.constant 0 : index
    %c0_4 = arith.constant 0 : index
    %6 = vector.load %arg3[%c0_3, %c0_4] : memref<32x32xf32, #tpu.memory_space<vmem>>, vector<32x32xf32>
    tpu.vector_store %arg3[%c0_3, %c0_4], %5 {strides = array<i32>} : memref<32x32xf32, #tpu.memory_space<vmem>>, vector<32x32xf32>,
    %7 = vector.extract_strided_slice %4 {offsets = [0, 32], sizes = [32, 32], strides = [1, 1]} : vector<32x64xf32> to vector<32x32xf32>
    %c0_5 = arith.constant 0 : index
    %c0_6 = arith.constant 0 : index
    %8 = vector.load %arg4[%c0_5, %c0_6] : memref<32x32xf32, #tpu.memory_space<vmem>>, vector<32x32xf32>
    tpu.vector_store %arg4[%c0_5, %c0_6], %7 {strides = array<i32>} : memref<32x32xf32, #tpu.memory_space<vmem>>, vector<32x32xf32>,
    return
  }
  func.func @transform_0(%arg0: i32) -> (i32, i32) {
    %c0_i32 = arith.constant 0 : i32
    %c0_i32_0 = arith.constant 0 : i32
    return %arg0, %c0_i32 : i32, i32
  }
  func.func @transform_1(%arg0: i32) -> (i32, i32) {
    %c0_i32 = arith.constant 0 : i32
    %c0_i32_0 = arith.constant 0 : i32
    %c0_i32_1 = arith.constant 0 : i32
    return %c0_i32, %c0_i32_0 : i32, i32
  }
  func.func @transform_2(%arg0: i32) -> (i32, i32) {
    %c0_i32 = arith.constant 0 : i32
    %c0_i32_0 = arith.constant 0 : i32
    return %arg0, %c0_i32 : i32, i32
  }
  func.func @transform_3(%arg0: i32) -> (i32, i32) {
    %c0_i32 = arith.constant 0 : i32
    %c0_i32_0 = arith.constant 0 : i32
    return %arg0, %c0_i32 : i32, i32
  }
}

</mosaic_0001>

<llo_original>
// kernel: basic_text_transformer_block_3d.8
$region0: #{basic_text_transformer_block_3d.8}
  #allocation0 [shape = 'u32[]', space=smem, size = 0x4, offset = 0x4, fixed_abs, tag = 'smem constant byte address 0x4 - core index']
  #allocation1 [shape = 'u32[144,128]{1,0:T(1,128)}', space=vmem, size = 0x12000, scoped, tag = 'internal scratch']
  %s0 = inlined_call_operand.vmem [shape: f32[64,32], index: 0, kind: input, shape index: {}]
  %s1 = inlined_call_operand.vmem [shape: f32[1,32], index: 1, kind: input, shape index: {}]
  %s2 = inlined_call_operand.vmem [shape: f32[1,32], index: 2, kind: input, shape index: {}]
  %s3 = inlined_call_operand.vmem [shape: f32[32,96], index: 3, kind: input, shape index: {}]
  %s4 = inlined_call_operand.vmem [shape: f32[64,32], index: 4, kind: output, shape index: {0}]
  %s5 = inlined_call_operand.vmem [shape: f32[64,32], index: 5, kind: output, shape index: {1}]
  %s6 = inlined_call_operand.vmem [shape: f32[64,32], index: 6, kind: output, shape index: {2}]
  %7 = xla_tuple %s4, %s5, %s6
  %s8 = sld [smem:[#allocation0]]
  $region42: #{basic_text_transformer_block_3d.8} parent=0
    _
  %s10 = ssub.s32 1, %s8
  %s11 = scalar_select 0, %s10, %s8
  // Predicated region
  $region2: #{basic_text_transformer_block_3d.8} parent=0 // pred_check
    _
  $region3: #{basic_text_transformer_block_3d.8} parent=0 // pred_check_branch
    %13 = sbr.rel (0) target = $region5
  $region4: #{basic_text_transformer_block_3d.8} parent=0 // pred_region
    _
  $region5: #{basic_text_transformer_block_3d.8} parent=0 // pred_fallthru
    _
  // Predicated region
  $region6: #{basic_text_transformer_block_3d.8} parent=0 // pred_check
    _
  $region7: #{basic_text_transformer_block_3d.8} parent=0 // pred_check_branch
    %15 = sbr.rel (0) target = $region9
  $region8: #{basic_text_transformer_block_3d.8} parent=0 // pred_region
    _
  $region9: #{basic_text_transformer_block_3d.8} parent=0 // pred_fallthru
    _
  // Predicated region
  $region10: #{basic_text_transformer_block_3d.8} parent=0 // pred_check
    _
  $region11: #{basic_text_transformer_block_3d.8} parent=0 // pred_check_branch
    %17 = sbr.rel (0) target = $region13
  $region12: #{basic_text_transformer_block_3d.8} parent=0 // pred_region
    _
  $region13: #{basic_text_transformer_block_3d.8} parent=0 // pred_fallthru
    _
  // Predicated region
  $region14: #{basic_text_transformer_block_3d.8} parent=0 // pred_check
    _
  $region15: #{basic_text_transformer_block_3d.8} parent=0 // pred_check_branch
    %19 = sbr.rel (0) target = $region17
  $region16: #{basic_text_transformer_block_3d.8} parent=0 // pred_region
    _
  $region17: #{basic_text_transformer_block_3d.8} parent=0 // pred_fallthru
    _
  %v21 = vld [vmem:[%s0] sm:$0xff]
  %v22 = vld [vmem:[%s0 + $0x8] sm:$0xff]
  %v23 = vld [vmem:[%s0 + $0x10] sm:$0xff]
  %v24 = vld [vmem:[%s0 + $0x18] sm:$0xff]
  %v25 = vld [vmem:[%s0 + $0x20] sm:$0xff]
  %v26 = vld [vmem:[%s0 + $0x28] sm:$0xff]
  %v27 = vld [vmem:[%s0 + $0x30] sm:$0xff]
  %v28 = vld [vmem:[%s0 + $0x38] sm:$0xff]
  %v29 = vld [vmem:[%s1] sm:$0x1]
  %v30 = vld [vmem:[%s2] sm:$0x1]
  %vm31 = vcmask 261120
  %v32 = vsel %vm31, %v21, 0.0
  %33 = vadd.xlane.f32.xlu0 %v32
  %v34 = vpop.xlane.xlu0 %33
  %v35 = vsel %vm31, %v22, 0.0
  %36 = vadd.xlane.f32.xlu0 %v35
  %v37 = vpop.xlane.xlu0 %36
  %v38 = vsel %vm31, %v23, 0.0
  %39 = vadd.xlane.f32.xlu0 %v38
  %v40 = vpop.xlane.xlu0 %39
  %v41 = vsel %vm31, %v24, 0.0
  %42 = vadd.xlane.f32.xlu0 %v41
  %v43 = vpop.xlane.xlu0 %42
  %v44 = vsel %vm31, %v25, 0.0
  %45 = vadd.xlane.f32.xlu0 %v44
  %v46 = vpop.xlane.xlu0 %45
  %v47 = vsel %vm31, %v26, 0.0
  %48 = vadd.xlane.f32.xlu0 %v47
  %v49 = vpop.xlane.xlu0 %48
  %v50 = vsel %vm31, %v27, 0.0
  %51 = vadd.xlane.f32.xlu0 %v50
  %v52 = vpop.xlane.xlu0 %51
  %v53 = vsel %vm31, %v28, 0.0
  %54 = vadd.xlane.f32.xlu0 %v53
  %v55 = vpop.xlane.xlu0 %54
  %v56 = vrcp.pop 32.0
  %v57 = vmul.f32 %v34, %v56
  %v58 = vmul.f32 %v37, %v56
  %v59 = vmul.f32 %v40, %v56
  %v60 = vmul.f32 %v43, %v56
  %v61 = vmul.f32 %v46, %v56
  %v62 = vmul.f32 %v49, %v56
  %v63 = vmul.f32 %v52, %v56
  %v64 = vmul.f32 %v55, %v56
  %v65 = vsub.f32 %v21, %v57
  %v66 = vsub.f32 %v22, %v58
  %v67 = vsub.f32 %v23, %v59
  %v68 = vsub.f32 %v24, %v60
  %v69 = vsub.f32 %v25, %v61
  %v70 = vsub.f32 %v26, %v62
  %v71 = vsub.f32 %v27, %v63
  %v72 = vsub.f32 %v28, %v64
  %v73 = vmul.f32 %v65, %v65
  %v74 = vmul.f32 %v66, %v66
  %v75 = vmul.f32 %v67, %v67
  %v76 = vmul.f32 %v68, %v68
  %v77 = vmul.f32 %v69, %v69
  %v78 = vmul.f32 %v70, %v70
  %v79 = vmul.f32 %v71, %v71
  %v80 = vmul.f32 %v72, %v72
  %v81 = vsel %vm31, %v73, 0.0
  %82 = vadd.xlane.f32.xlu0 %v81
  %v83 = vpop.xlane.xlu0 %82
  %v84 = vsel %vm31, %v74, 0.0
  %85 = vadd.xlane.f32.xlu0 %v84
  %v86 = vpop.xlane.xlu0 %85
  %v87 = vsel %vm31, %v75, 0.0
  %88 = vadd.xlane.f32.xlu0 %v87
  %v89 = vpop.xlane.xlu0 %88
  %v90 = vsel %vm31, %v76, 0.0
  %91 = vadd.xlane.f32.xlu0 %v90
  %v92 = vpop.xlane.xlu0 %91
  %v93 = vsel %vm31, %v77, 0.0
  %94 = vadd.xlane.f32.xlu0 %v93
  %v95 = vpop.xlane.xlu0 %94
  %v96 = vsel %vm31, %v78, 0.0
  %97 = vadd.xlane.f32.xlu0 %v96
  %v98 = vpop.xlane.xlu0 %97
  %v99 = vsel %vm31, %v79, 0.0
  %100 = vadd.xlane.f32.xlu0 %v99
  %v101 = vpop.xlane.xlu0 %100
  %v102 = vsel %vm31, %v80, 0.0
  %103 = vadd.xlane.f32.xlu0 %v102
  %v104 = vpop.xlane.xlu0 %103
  %v105 = vmul.f32 %v83, %v56
  %v106 = vmul.f32 %v86, %v56
  %v107 = vmul.f32 %v89, %v56
  %v108 = vmul.f32 %v92, %v56
  %v109 = vmul.f32 %v95, %v56
  %v110 = vmul.f32 %v98, %v56
  %v111 = vmul.f32 %v101, %v56
  %v112 = vmul.f32 %v104, %v56
  %v113 = vadd.f32 %v105, 1e-05
  %v114 = vadd.f32 %v106, 1e-05
  %v115 = vadd.f32 %v107, 1e-05
  %v116 = vadd.f32 %v108, 1e-05
  %v117 = vadd.f32 %v109, 1e-05
  %v118 = vadd.f32 %v110, 1e-05
  %v119 = vadd.f32 %v111, 1e-05
  %v120 = vadd.f32 %v112, 1e-05
  %v121 = vrsqrt.pop %v113
  %v122 = vrsqrt.pop %v114
  %v123 = vrsqrt.pop %v115
  %v124 = vrsqrt.pop %v116
  %v125 = vrsqrt.pop %v117
  %v126 = vrsqrt.pop %v118
  %v127 = vrsqrt.pop %v119
  %v128 = vrsqrt.pop %v120
  %v129 = vmul.f32 %v65, %v121
  %v130 = vmul.f32 %v66, %v122
  %v131 = vmul.f32 %v67, %v123
  %v132 = vmul.f32 %v68, %v124
  %v133 = vmul.f32 %v69, %v125
  %v134 = vmul.f32 %v70, %v126
  %v135 = vmul.f32 %v71, %v127
  %v136 = vmul.f32 %v72, %v128
  %v138 = vlaneseq
  %v139 = vshrl.u32 %v138, 7
  %v140 = vsub.s32 0, %v139
  %v141 = vrot.slane %v29, %v140
  %v143 = vmul.f32 %v129, %v141
  %v144 = vmul.f32 %v130, %v141
  %v145 = vmul.f32 %v131, %v141
  %v146 = vmul.f32 %v132, %v141
  %v147 = vmul.f32 %v133, %v141
  %v148 = vmul.f32 %v134, %v141
  %v149 = vmul.f32 %v135, %v141
  %v150 = vmul.f32 %v136, %v141
  %v152 = vlaneseq
  %v153 = vshrl.u32 %v152, 7
  %v154 = vsub.s32 0, %v153
  %v155 = vrot.slane %v30, %v154
  %v157 = vadd.f32 %v143, %v155
  %v158 = vadd.f32 %v144, %v155
  %v159 = vadd.f32 %v145, %v155
  %v160 = vadd.f32 %v146, %v155
  %v161 = vadd.f32 %v147, %v155
  %v162 = vadd.f32 %v148, %v155
  %v163 = vadd.f32 %v149, %v155
  %v164 = vadd.f32 %v150, %v155
  %v165 = vpack.c.bf16 %v158, %v157
  %v166 = vpack.c.bf16 %v160, %v159
  %v167 = vpack.c.bf16 %v162, %v161
  %v168 = vpack.c.bf16 %v164, %v163
  %v169 = vld [vmem:[%s3] sm:$0xff]
  %v170 = vld [vmem:[%s3 + $0x8] sm:$0xff]
  %v171 = vld [vmem:[%s3 + $0x10] sm:$0xff]
  %v172 = vld [vmem:[%s3 + $0x18] sm:$0xff]
  %v173 = vpack.c.bf16 %v170, %v169
  %v174 = vpack.c.bf16 %v172, %v171
  %v176 = vsel %vm31, %v165, 0
  %v179 = vsel %vm31, %v166, 0
  %v182 = vsel %vm31, %v167, 0
  %v185 = vsel %vm31, %v168, 0
  %187 = vmatprep.subr.bf16.mxu0 0
  %188 = vmatpush1.bf16.msra.mxu0 0
  %189 = vmatprep.subr.bf16.mxu0 0
  %190 = vmatpush1.bf16.msra.mxu0 0
  %191 = vmatprep.subr.bf16.mxu0 0
  %192 = vmatpush1.bf16.msra.mxu0 0
  %193 = vmatprep.subr.bf16.mxu0 0
  %194 = vmatpush1.bf16.msra.mxu0 0
  %195 = vmatprep.subr.bf16.mxu0 0
  %196 = vmatpush1.bf16.msra.mxu0 0
  %197 = vmatprep.subr.bf16.mxu0 0
  %198 = vmatpush1.bf16.msra.mxu0 0
  %199 = vmatprep.subr.bf16.mxu0 0
  %200 = vmatpush1.bf16.msra.mxu0 %v174
  %201 = vmatprep.subr.bf16.mxu0 0
  %202 = vmatpush1.bf16.msra.mxu0 %v173
  %203 = vmatprep.subr.bf16.mxu0 0
  %204 = vmatpush2.bf16.msra.mxu0 0
  %205 = vmatprep.subr.bf16.mxu0 0
  %206 = vmatpush2.bf16.msra.mxu0 0
  %207 = vmatprep.subr.bf16.mxu0 0
  %208 = vmatpush2.bf16.msra.mxu0 0
  %209 = vmatprep.subr.bf16.mxu0 0
  %210 = vmatpush2.bf16.msra.mxu0 0
  %211 = vmatprep.subr.bf16.mxu0 0
  %212 = vmatpush2.bf16.msra.mxu0 0
  %213 = vmatprep.subr.bf16.mxu0 0
  %214 = vmatpush2.bf16.msra.mxu0 0
  %215 = vmatprep.subr.bf16.mxu0 0
  %216 = vmatpush2.bf16.msra.mxu0 0
  %217 = vmatprep.subr.bf16.mxu0 0
  %218 = vmatpush2.bf16.msra.mxu0 0
  %219 = vmatprep.mubr.bf16.mxu0 0
  %220 = vmatmul.mubr.bf16.gmra.mxu0 %v176
  %v221 = vpop.f32.mrf.mxu0
  %v222 = vadd.f32 0.0, %v221
  %v223 = vpop.f32.mrf.mxu0
  %v224 = vpop.f32.mrf.mxu0
  %v225 = vadd.f32 0.0, %v224
  %v226 = vpop.f32.mrf.mxu0
  %227 = vmatprep.mubr.bf16.mxu0 0
  %228 = vmatmul.mubr.bf16.gmra.mxu0 %v179
  %v229 = vpop.f32.mrf.mxu0
  %v230 = vadd.f32 0.0, %v229
  %v231 = vpop.f32.mrf.mxu0
  %v232 = vpop.f32.mrf.mxu0
  %v233 = vadd.f32 0.0, %v232
  %v234 = vpop.f32.mrf.mxu0
  %235 = vmatprep.mubr.bf16.mxu0 0
  %236 = vmatmul.mubr.bf16.gmra.mxu0 %v182
  %v237 = vpop.f32.mrf.mxu0
  %v238 = vadd.f32 0.0, %v237
  %v239 = vpop.f32.mrf.mxu0
  %v240 = vpop.f32.mrf.mxu0
  %v241 = vadd.f32 0.0, %v240
  %v242 = vpop.f32.mrf.mxu0
  %243 = vmatprep.mubr.bf16.mxu0 0
  %244 = vmatmul.mubr.bf16.gmra.mxu0 %v185
  %v245 = vpop.f32.mrf.mxu0
  %v246 = vadd.f32 0.0, %v245
  %v247 = vpop.f32.mrf.mxu0
  %v248 = vpop.f32.mrf.mxu0
  %v249 = vadd.f32 0.0, %v248
  %v250 = vpop.f32.mrf.mxu0
  %251 = vdwg.mxu0
  %252 = vst.msk [vmem:[%s4] sm:$0xff] %vm31, %v222
  %253 = vst.msk [vmem:[%s4 + $0x8] sm:$0xff] %vm31, %v225
  %254 = vst.msk [vmem:[%s4 + $0x10] sm:$0xff] %vm31, %v230
  %255 = vst.msk [vmem:[%s4 + $0x18] sm:$0xff] %vm31, %v233
  %256 = vst.msk [vmem:[%s4 + $0x20] sm:$0xff] %vm31, %v238
  %257 = vst.msk [vmem:[%s4 + $0x28] sm:$0xff] %vm31, %v241
  %258 = vst.msk [vmem:[%s4 + $0x30] sm:$0xff] %vm31, %v246
  %259 = vst.msk [vmem:[%s4 + $0x38] sm:$0xff] %vm31, %v249
  %268 = vrot.lane.b32.xlu0 %v222, 96
  %v269 = vpop.permute.xlu0 %268
  %270 = vrot.lane.b32.xlu0 %v225, 96
  %v271 = vpop.permute.xlu0 %270
  %272 = vrot.lane.b32.xlu0 %v230, 96
  %v273 = vpop.permute.xlu0 %272
  %274 = vrot.lane.b32.xlu0 %v233, 96
  %v275 = vpop.permute.xlu0 %274
  %276 = vrot.lane.b32.xlu0 %v238, 96
  %v277 = vpop.permute.xlu0 %276
  %278 = vrot.lane.b32.xlu0 %v241, 96
  %v279 = vpop.permute.xlu0 %278
  %280 = vrot.lane.b32.xlu0 %v246, 96
  %v281 = vpop.permute.xlu0 %280
  %282 = vrot.lane.b32.xlu0 %v249, 96
  %v283 = vpop.permute.xlu0 %282
  %292 = vst.msk [vmem:[%s5] sm:$0xff] %vm31, %v269
  %293 = vst.msk [vmem:[%s5 + $0x8] sm:$0xff] %vm31, %v271
  %294 = vst.msk [vmem:[%s5 + $0x10] sm:$0xff] %vm31, %v273
  %295 = vst.msk [vmem:[%s5 + $0x18] sm:$0xff] %vm31, %v275
  %296 = vst.msk [vmem:[%s5 + $0x20] sm:$0xff] %vm31, %v277
  %297 = vst.msk [vmem:[%s5 + $0x28] sm:$0xff] %vm31, %v279
  %298 = vst.msk [vmem:[%s5 + $0x30] sm:$0xff] %vm31, %v281
  %299 = vst.msk [vmem:[%s5 + $0x38] sm:$0xff] %vm31, %v283
  %300 = vrot.lane.b32.xlu0 %v222, 64
  %v301 = vpop.permute.xlu0 %300
  %302 = vrot.lane.b32.xlu0 %v225, 64
  %v303 = vpop.permute.xlu0 %302
  %304 = vrot.lane.b32.xlu0 %v230, 64
  %v305 = vpop.permute.xlu0 %304
  %306 = vrot.lane.b32.xlu0 %v233, 64
  %v307 = vpop.permute.xlu0 %306
  %308 = vrot.lane.b32.xlu0 %v238, 64
  %v309 = vpop.permute.xlu0 %308
  %310 = vrot.lane.b32.xlu0 %v241, 64
  %v311 = vpop.permute.xlu0 %310
  %312 = vrot.lane.b32.xlu0 %v246, 64
  %v313 = vpop.permute.xlu0 %312
  %314 = vrot.lane.b32.xlu0 %v249, 64
  %v315 = vpop.permute.xlu0 %314
  %324 = vst.msk [vmem:[%s6] sm:$0xff] %vm31, %v301
  %325 = vst.msk [vmem:[%s6 + $0x8] sm:$0xff] %vm31, %v303
  %326 = vst.msk [vmem:[%s6 + $0x10] sm:$0xff] %vm31, %v305
  %327 = vst.msk [vmem:[%s6 + $0x18] sm:$0xff] %vm31, %v307
  %328 = vst.msk [vmem:[%s6 + $0x20] sm:$0xff] %vm31, %v309
  %329 = vst.msk [vmem:[%s6 + $0x28] sm:$0xff] %vm31, %v311
  %330 = vst.msk [vmem:[%s6 + $0x30] sm:$0xff] %vm31, %v313
  %331 = vst.msk [vmem:[%s6 + $0x38] sm:$0xff] %vm31, %v315
  // Predicated region
  $region18: #{basic_text_transformer_block_3d.8} parent=0 // pred_check
    _
  $region19: #{basic_text_transformer_block_3d.8} parent=0 // pred_check_branch
    %333 = sbr.rel (0) target = $region21
  $region20: #{basic_text_transformer_block_3d.8} parent=0 // pred_region
    _
  $region21: #{basic_text_transformer_block_3d.8} parent=0 // pred_fallthru
    _
  // Predicated region
  $region22: #{basic_text_transformer_block_3d.8} parent=0 // pred_check
    _
  $region23: #{basic_text_transformer_block_3d.8} parent=0 // pred_check_branch
    %335 = sbr.rel (0) target = $region25
  $region24: #{basic_text_transformer_block_3d.8} parent=0 // pred_region
    _
  $region25: #{basic_text_transformer_block_3d.8} parent=0 // pred_fallthru
    _
  // Predicated region
  $region26: #{basic_text_transformer_block_3d.8} parent=0 // pred_check
    _
  $region27: #{basic_text_transformer_block_3d.8} parent=0 // pred_check_branch
    %337 = sbr.rel (0) target = $region29
  $region28: #{basic_text_transformer_block_3d.8} parent=0 // pred_region
    _
  $region29: #{basic_text_transformer_block_3d.8} parent=0 // pred_fallthru
    _
  // Predicated region
  $region30: #{basic_text_transformer_block_3d.8} parent=0 // pred_check
    _
  $region31: #{basic_text_transformer_block_3d.8} parent=0 // pred_check_branch
    %339 = sbr.rel (0) target = $region33
  $region32: #{basic_text_transformer_block_3d.8} parent=0 // pred_region
    _
  $region33: #{basic_text_transformer_block_3d.8} parent=0 // pred_fallthru
    _
  // Predicated region
  $region34: #{basic_text_transformer_block_3d.8} parent=0 // pred_check
    _
  $region35: #{basic_text_transformer_block_3d.8} parent=0 // pred_check_branch
    %341 = sbr.rel (0) target = $region37
  $region36: #{basic_text_transformer_block_3d.8} parent=0 // pred_region
    _
  $region37: #{basic_text_transformer_block_3d.8} parent=0 // pred_fallthru
    _
  // Predicated region
  $region38: #{basic_text_transformer_block_3d.8} parent=0 // pred_check
    _
  $region39: #{basic_text_transformer_block_3d.8} parent=0 // pred_check_branch
    %343 = sbr.rel (0) target = $region41
  $region40: #{basic_text_transformer_block_3d.8} parent=0 // pred_region
    _
  $region41: #{basic_text_transformer_block_3d.8} parent=0 // pred_fallthru
    _

// kernel: basic_text_transformer_block_3d.10
$region0: #{basic_text_transformer_block_3d.10}
  #allocation0 [shape = 'u32[]', space=smem, size = 0x4, offset = 0x4, fixed_abs, tag = 'smem constant byte address 0x4 - core index']
  #allocation1 [shape = 'u32[144,128]{1,0:T(1,128)}', space=vmem, size = 0x12000, scoped, tag = 'internal scratch']
  %s0 = inlined_call_operand.vmem [shape: f32[64,32], index: 0, kind: input, shape index: {}]
  %s1 = inlined_call_operand.vmem [shape: f32[32,32], index: 1, kind: input, shape index: {}]
  %s2 = inlined_call_operand.vmem [shape: f32[1,32], index: 2, kind: input, shape index: {}]
  %s3 = inlined_call_operand.vmem [shape: f32[64,32], index: 3, kind: input, shape index: {}]
  %s4 = inlined_call_operand.vmem [shape: f32[64,32], index: 4, kind: output, shape index: {}]
  %s5 = sld [smem:[#allocation0]]
  $region26: #{basic_text_transformer_block_3d.10} parent=0
    _
  %s7 = ssub.s32 1, %s5
  %s8 = scalar_select 0, %s7, %s5
  // Predicated region
  $region2: #{basic_text_transformer_block_3d.10} parent=0 // pred_check
    _
  $region3: #{basic_text_transformer_block_3d.10} parent=0 // pred_check_branch
    %10 = sbr.rel (0) target = $region5
  $region4: #{basic_text_transformer_block_3d.10} parent=0 // pred_region
    _
  $region5: #{basic_text_transformer_block_3d.10} parent=0 // pred_fallthru
    _
  // Predicated region
  $region6: #{basic_text_transformer_block_3d.10} parent=0 // pred_check
    _
  $region7: #{basic_text_transformer_block_3d.10} parent=0 // pred_check_branch
    %12 = sbr.rel (0) target = $region9
  $region8: #{basic_text_transformer_block_3d.10} parent=0 // pred_region
    _
  $region9: #{basic_text_transformer_block_3d.10} parent=0 // pred_fallthru
    _
  // Predicated region
  $region10: #{basic_text_transformer_block_3d.10} parent=0 // pred_check
    _
  $region11: #{basic_text_transformer_block_3d.10} parent=0 // pred_check_branch
    %14 = sbr.rel (0) target = $region13
  $region12: #{basic_text_transformer_block_3d.10} parent=0 // pred_region
    _
  $region13: #{basic_text_transformer_block_3d.10} parent=0 // pred_fallthru
    _
  // Predicated region
  $region14: #{basic_text_transformer_block_3d.10} parent=0 // pred_check
    _
  $region15: #{basic_text_transformer_block_3d.10} parent=0 // pred_check_branch
    %16 = sbr.rel (0) target = $region17
  $region16: #{basic_text_transformer_block_3d.10} parent=0 // pred_region
    _
  $region17: #{basic_text_transformer_block_3d.10} parent=0 // pred_fallthru
    _
  %v18 = vld [vmem:[%s0] sm:$0xff]
  %v19 = vld [vmem:[%s0 + $0x8] sm:$0xff]
  %v20 = vld [vmem:[%s0 + $0x10] sm:$0xff]
  %v21 = vld [vmem:[%s0 + $0x18] sm:$0xff]
  %v22 = vld [vmem:[%s0 + $0x20] sm:$0xff]
  %v23 = vld [vmem:[%s0 + $0x28] sm:$0xff]
  %v24 = vld [vmem:[%s0 + $0x30] sm:$0xff]
  %v25 = vld [vmem:[%s0 + $0x38] sm:$0xff]
  %v26 = vpack.c.bf16 %v19, %v18
  %v27 = vpack.c.bf16 %v21, %v20
  %v28 = vpack.c.bf16 %v23, %v22
  %v29 = vpack.c.bf16 %v25, %v24
  %v30 = vld [vmem:[%s1] sm:$0xff]
  %v31 = vld [vmem:[%s1 + $0x8] sm:$0xff]
  %v32 = vld [vmem:[%s1 + $0x10] sm:$0xff]
  %v33 = vld [vmem:[%s1 + $0x18] sm:$0xff]
  %v34 = vpack.c.bf16 %v31, %v30
  %v35 = vpack.c.bf16 %v33, %v32
  %v36 = vld [vmem:[%s2] sm:$0x1]
  %v38 = vlaneseq
  %v39 = vshrl.u32 %v38, 7
  %v40 = vsub.s32 0, %v39
  %v41 = vrot.slane %v36, %v40
  %vm43 = vcmask 261120
  %v45 = vsel %vm43, %v26, 0
  %v48 = vsel %vm43, %v27, 0
  %v51 = vsel %vm43, %v28, 0
  %v54 = vsel %vm43, %v29, 0
  %56 = vmatprep.subr.bf16.mxu0 0
  %57 = vmatpush1.bf16.msra.mxu0 0
  %58 = vmatprep.subr.bf16.mxu0 0
  %59 = vmatpush1.bf16.msra.mxu0 0
  %60 = vmatprep.subr.bf16.mxu0 0
  %61 = vmatpush1.bf16.msra.mxu0 0
  %62 = vmatprep.subr.bf16.mxu0 0
  %63 = vmatpush1.bf16.msra.mxu0 0
  %64 = vmatprep.subr.bf16.mxu0 0
  %65 = vmatpush1.bf16.msra.mxu0 0
  %66 = vmatprep.subr.bf16.mxu0 0
  %67 = vmatpush1.bf16.msra.mxu0 0
  %68 = vmatprep.subr.bf16.mxu0 0
  %69 = vmatpush1.bf16.msra.mxu0 %v35
  %70 = vmatprep.subr.bf16.mxu0 0
  %71 = vmatpush1.bf16.msra.mxu0 %v34
  %72 = vmatprep.subr.bf16.mxu0 0
  %73 = vmatpush2.bf16.msra.mxu0 0
  %74 = vmatprep.subr.bf16.mxu0 0
  %75 = vmatpush2.bf16.msra.mxu0 0
  %76 = vmatprep.subr.bf16.mxu0 0
  %77 = vmatpush2.bf16.msra.mxu0 0
  %78 = vmatprep.subr.bf16.mxu0 0
  %79 = vmatpush2.bf16.msra.mxu0 0
  %80 = vmatprep.subr.bf16.mxu0 0
  %81 = vmatpush2.bf16.msra.mxu0 0
  %82 = vmatprep.subr.bf16.mxu0 0
  %83 = vmatpush2.bf16.msra.mxu0 0
  %84 = vmatprep.subr.bf16.mxu0 0
  %85 = vmatpush2.bf16.msra.mxu0 0
  %86 = vmatprep.subr.bf16.mxu0 0
  %87 = vmatpush2.bf16.msra.mxu0 0
  %88 = vmatprep.mubr.bf16.mxu0 0
  %89 = vmatmul.mubr.bf16.gmra.mxu0 %v45
  %v90 = vpop.f32.mrf.mxu0
  %v91 = vadd.f32 %v41, %v90
  %v92 = vpop.f32.mrf.mxu0
  %v93 = vpop.f32.mrf.mxu0
  %v94 = vadd.f32 %v41, %v93
  %v95 = vpop.f32.mrf.mxu0
  %96 = vmatprep.mubr.bf16.mxu0 0
  %97 = vmatmul.mubr.bf16.gmra.mxu0 %v48
  %v98 = vpop.f32.mrf.mxu0
  %v99 = vadd.f32 %v41, %v98
  %v100 = vpop.f32.mrf.mxu0
  %v101 = vpop.f32.mrf.mxu0
  %v102 = vadd.f32 %v41, %v101
  %v103 = vpop.f32.mrf.mxu0
  %104 = vmatprep.mubr.bf16.mxu0 0
  %105 = vmatmul.mubr.bf16.gmra.mxu0 %v51
  %v106 = vpop.f32.mrf.mxu0
  %v107 = vadd.f32 %v41, %v106
  %v108 = vpop.f32.mrf.mxu0
  %v109 = vpop.f32.mrf.mxu0
  %v110 = vadd.f32 %v41, %v109
  %v111 = vpop.f32.mrf.mxu0
  %112 = vmatprep.mubr.bf16.mxu0 0
  %113 = vmatmul.mubr.bf16.gmra.mxu0 %v54
  %v114 = vpop.f32.mrf.mxu0
  %v115 = vadd.f32 %v41, %v114
  %v116 = vpop.f32.mrf.mxu0
  %v117 = vpop.f32.mrf.mxu0
  %v118 = vadd.f32 %v41, %v117
  %v119 = vpop.f32.mrf.mxu0
  %120 = vdwg.mxu0
  %v121 = vld [vmem:[%s3] sm:$0xff]
  %v122 = vld [vmem:[%s3 + $0x8] sm:$0xff]
  %v123 = vld [vmem:[%s3 + $0x10] sm:$0xff]
  %v124 = vld [vmem:[%s3 + $0x18] sm:$0xff]
  %v125 = vld [vmem:[%s3 + $0x20] sm:$0xff]
  %v126 = vld [vmem:[%s3 + $0x28] sm:$0xff]
  %v127 = vld [vmem:[%s3 + $0x30] sm:$0xff]
  %v128 = vld [vmem:[%s3 + $0x38] sm:$0xff]
  %v129 = vadd.f32 %v91, %v121
  %v130 = vadd.f32 %v94, %v122
  %v131 = vadd.f32 %v99, %v123
  %v132 = vadd.f32 %v102, %v124
  %v133 = vadd.f32 %v107, %v125
  %v134 = vadd.f32 %v110, %v126
  %v135 = vadd.f32 %v115, %v127
  %v136 = vadd.f32 %v118, %v128
  %137 = vst.msk [vmem:[%s4] sm:$0xff] %vm43, %v129
  %138 = vst.msk [vmem:[%s4 + $0x8] sm:$0xff] %vm43, %v130
  %139 = vst.msk [vmem:[%s4 + $0x10] sm:$0xff] %vm43, %v131
  %140 = vst.msk [vmem:[%s4 + $0x18] sm:$0xff] %vm43, %v132
  %141 = vst.msk [vmem:[%s4 + $0x20] sm:$0xff] %vm43, %v133
  %142 = vst.msk [vmem:[%s4 + $0x28] sm:$0xff] %vm43, %v134
  %143 = vst.msk [vmem:[%s4 + $0x30] sm:$0xff] %vm43, %v135
  %144 = vst.msk [vmem:[%s4 + $0x38] sm:$0xff] %vm43, %v136
  // Predicated region
  $region18: #{basic_text_transformer_block_3d.10} parent=0 // pred_check
    _
  $region19: #{basic_text_transformer_block_3d.10} parent=0 // pred_check_branch
    %146 = sbr.rel (0) target = $region21
  $region20: #{basic_text_transformer_block_3d.10} parent=0 // pred_region
    _
  $region21: #{basic_text_transformer_block_3d.10} parent=0 // pred_fallthru
    _
  // Predicated region
  $region22: #{basic_text_transformer_block_3d.10} parent=0 // pred_check
    _
  $region23: #{basic_text_transformer_block_3d.10} parent=0 // pred_check_branch
    %148 = sbr.rel (0) target = $region25
  $region24: #{basic_text_transformer_block_3d.10} parent=0 // pred_region
    _
  $region25: #{basic_text_transformer_block_3d.10} parent=0 // pred_fallthru
    _

// kernel: basic_text_transformer_block_3d.9
$region0: #{basic_text_transformer_block_3d.9}
  #allocation0 [shape = 'u32[]', space=smem, size = 0x4, offset = 0x4, fixed_abs, tag = 'smem constant byte address 0x4 - core index']
  #allocation1 [shape = 'u32[144,128]{1,0:T(1,128)}', space=vmem, size = 0x12000, scoped, tag = 'internal scratch']
  %s0 = inlined_call_operand.vmem [shape: f32[4,16,32], index: 0, kind: input, shape index: {}]
  %s1 = inlined_call_operand.vmem [shape: f32[4,16,32], index: 1, kind: input, shape index: {}]
  %s2 = inlined_call_operand.vmem [shape: f32[4,16,32], index: 2, kind: input, shape index: {}]
  %s3 = inlined_call_operand.vmem [shape: f32[4,16,32], index: 3, kind: output, shape index: {}]
  %s4 = sld [smem:[#allocation0]]
  $region45: #{basic_text_transformer_block_3d.9} parent=0
    _
  %s6 = ssub.s32 1, %s4
  %s7 = scalar_select 0, %s6, %s4
  loop: start=0, step=1, limit=6
  $region2: #{basic_text_transformer_block_3d.9} parent=0 // loop_pre_header
    _
  $region3: #{basic_text_transformer_block_3d.9} parent=0 // loop_header
    %s9 = sphi 0, %s13
    %p10 = scmp.ge.s32.totalorder %s9, 6
    %s19 = sphi 0, %s21
    %s22 = sphi 0, %s19
    %s23 = sphi 0, %s22
    %s39 = sphi 0, %s23
    %s45 = sphi 0, %s47
    %s48 = sphi 0, %s45
    %s49 = sphi 0, %s48
    %s65 = sphi 0, %s49
    %s71 = sphi 0, %s73
    %s74 = sphi 0, %s71
    %s75 = sphi 0, %s74
    %s91 = sphi 0, %s75
    %s97 = sphi 0, %s99
    %s100 = sphi 0, %s97
    %s101 = sphi 0, %s100
    %s117 = sphi 0, %s101
  $region4: #{basic_text_transformer_block_3d.9} parent=0 // loop_header_branch
    %12 = sbr.rel (%p10) target = $region8
  $region5: #{basic_text_transformer_block_3d.9} parent=0 // loop_body
    %s14 = ssub.s32 %s9, 1
    %s15 = ssub.s32 %s9, 2
    %s16 = sadd.s32 %s9, 1
    %s17 = ssub.s32 %s9, %s16
    %p18 = scmp.eq.s32.totalorder %s17, 0
    %s20 = sadd.s32 %s19, 1
    %s21 = scalar_select %p18, %s19, %s20
    %p24 = pneg %p18
    %p25 = scmp.eq.s32.totalorder %s9, 3
    %p26 = por %p24, %p25
    %p27 = scmp.ne.s32.totalorder %s19, %s22
    %p28 = scmp.eq.s32.totalorder %s9, 0
    %p29 = por %p27, %p28
    %p30 = scmp.ne.s32.totalorder %s19, %s22
    %p31 = scmp.eq.s32.totalorder %s14, 3
    %p32 = por %p30, %p31
    %p33 = scmp.ne.s32.totalorder %s22, %s23
    %p34 = scmp.eq.s32.totalorder %s14, 0
    %p35 = por %p33, %p34
    %p36 = scmp.ne.s32.totalorder %s22, %s23
    %p37 = scmp.eq.s32.totalorder %s15, 3
    %p38 = por %p36, %p37
    %p40 = scmp.ne.s32.totalorder %s23, %s39
    %p41 = scmp.eq.s32.totalorder %s15, 0
    %p42 = por %p40, %p41
    %s43 = ssub.s32 %s9, %s16
    %p44 = scmp.eq.s32.totalorder %s43, 0
    %s46 = sadd.s32 %s45, 1
    %s47 = scalar_select %p44, %s45, %s46
    %p50 = pneg %p44
    %p51 = scmp.eq.s32.totalorder %s9, 3
    %p52 = por %p50, %p51
    %p53 = scmp.ne.s32.totalorder %s45, %s48
    %p54 = scmp.eq.s32.totalorder %s9, 0
    %p55 = por %p53, %p54
    %p56 = scmp.ne.s32.totalorder %s45, %s48
    %p57 = scmp.eq.s32.totalorder %s14, 3
    %p58 = por %p56, %p57
    %p59 = scmp.ne.s32.totalorder %s48, %s49
    %p60 = scmp.eq.s32.totalorder %s14, 0
    %p61 = por %p59, %p60
    %p62 = scmp.ne.s32.totalorder %s48, %s49
    %p63 = scmp.eq.s32.totalorder %s15, 3
    %p64 = por %p62, %p63
    %p66 = scmp.ne.s32.totalorder %s49, %s65
    %p67 = scmp.eq.s32.totalorder %s15, 0
    %p68 = por %p66, %p67
    %s69 = ssub.s32 %s9, %s16
    %p70 = scmp.eq.s32.totalorder %s69, 0
    %s72 = sadd.s32 %s71, 1
    %s73 = scalar_select %p70, %s71, %s72
    %p76 = pneg %p70
    %p77 = scmp.eq.s32.totalorder %s9, 3
    %p78 = por %p76, %p77
    %p79 = scmp.ne.s32.totalorder %s71, %s74
    %p80 = scmp.eq.s32.totalorder %s9, 0
    %p81 = por %p79, %p80
    %p82 = scmp.ne.s32.totalorder %s71, %s74
    %p83 = scmp.eq.s32.totalorder %s14, 3
    %p84 = por %p82, %p83
    %p85 = scmp.ne.s32.totalorder %s74, %s75
    %p86 = scmp.eq.s32.totalorder %s14, 0
    %p87 = por %p85, %p86
    %p88 = scmp.ne.s32.totalorder %s74, %s75
    %p89 = scmp.eq.s32.totalorder %s15, 3
    %p90 = por %p88, %p89
    %p92 = scmp.ne.s32.totalorder %s75, %s91
    %p93 = scmp.eq.s32.totalorder %s15, 0
    %p94 = por %p92, %p93
    %s95 = ssub.s32 %s9, %s16
    %p96 = scmp.eq.s32.totalorder %s95, 0
    %s98 = sadd.s32 %s97, 1
    %s99 = scalar_select %p96, %s97, %s98
    %p102 = pneg %p96
    %p103 = scmp.eq.s32.totalorder %s9, 3
    %p104 = por %p102, %p103
    %p105 = scmp.ne.s32.totalorder %s97, %s100
    %p106 = scmp.eq.s32.totalorder %s9, 0
    %p107 = por %p105, %p106
    %p108 = scmp.ne.s32.totalorder %s97, %s100
    %p109 = scmp.eq.s32.totalorder %s14, 3
    %p110 = por %p108, %p109
    %p111 = scmp.ne.s32.totalorder %s100, %s101
    %p112 = scmp.eq.s32.totalorder %s14, 0
    %p113 = por %p111, %p112
    %p114 = scmp.ne.s32.totalorder %s100, %s101
    %p115 = scmp.eq.s32.totalorder %s15, 3
    %p116 = por %p114, %p115
    %p118 = scmp.ne.s32.totalorder %s101, %s117
    %p119 = scmp.eq.s32.totalorder %s15, 0
    %p120 = por %p118, %p119
    %p121 = scmp.le.s32.totalorder 1, %s9
    %p122 = scmp.lt.s32.totalorder %s9, 5
    %p123 = pnand %p121, %p122
    %p124 = pneg %p123
    // Predicated region
    $region9: #{basic_text_transformer_block_3d.9} parent=5 // pred_check
      _
    $region10: #{basic_text_transformer_block_3d.9} parent=5 // pred_check_branch
      %126 = sbr.rel (%p123) target = $region12
    $region11: #{basic_text_transformer_block_3d.9} parent=5 // pred_region
      %s127 = ssub.s32 %s9, 1
    $region12: #{basic_text_transformer_block_3d.9} parent=5 // pred_fallthru
      _
    %p128 = scmp.lt.s32.totalorder %s9, 4
    // Predicated region
    $region13: #{basic_text_transformer_block_3d.9} parent=5 // pred_check
      %p129 = pneg %p128
    $region14: #{basic_text_transformer_block_3d.9} parent=5 // pred_check_branch
      %131 = sbr.rel (%p129) target = $region16
    $region15: #{basic_text_transformer_block_3d.9} parent=5 // pred_region
      // Predicated region
      $region17: #{basic_text_transformer_block_3d.9} parent=15 // pred_check
        %p132 = pneg %p29
      $region18: #{basic_text_transformer_block_3d.9} parent=15 // pred_check_branch
        %134 = sbr.rel (%p132) target = $region20
      $region19: #{basic_text_transformer_block_3d.9} parent=15 // pred_region
        %p135 = scmp.lt.s32.totalorder %s9, 3
        %s136 = scalar_select %p135, %s9, 3
        %s137 = smul.addr %s136, 2
        %s138 = smul.addr %s137, 8
        %s139 = scalar_lea.vmem %s0, %s138
      $region20: #{basic_text_transformer_block_3d.9} parent=15 // pred_fallthru
        _
      // Predicated region
      $region21: #{basic_text_transformer_block_3d.9} parent=15 // pred_check
        %p140 = pneg %p55
      $region22: #{basic_text_transformer_block_3d.9} parent=15 // pred_check_branch
        %142 = sbr.rel (%p140) target = $region24
      $region23: #{basic_text_transformer_block_3d.9} parent=15 // pred_region
        %p143 = scmp.lt.s32.totalorder %s9, 3
        %s144 = scalar_select %p143, %s9, 3
        %s145 = smul.addr %s144, 2
        %s146 = smul.addr %s145, 8
        %s147 = scalar_lea.vmem %s1, %s146
      $region24: #{basic_text_transformer_block_3d.9} parent=15 // pred_fallthru
        _
      // Predicated region
      $region25: #{basic_text_transformer_block_3d.9} parent=15 // pred_check
        %p148 = pneg %p81
      $region26: #{basic_text_transformer_block_3d.9} parent=15 // pred_check_branch
        %150 = sbr.rel (%p148) target = $region28
      $region27: #{basic_text_transformer_block_3d.9} parent=15 // pred_region
        %p151 = scmp.lt.s32.totalorder %s9, 3
        %s152 = scalar_select %p151, %s9, 3
        %s153 = smul.addr %s152, 2
        %s154 = smul.addr %s153, 8
        %s155 = scalar_lea.vmem %s2, %s154
      $region28: #{basic_text_transformer_block_3d.9} parent=15 // pred_fallthru
        _
    $region16: #{basic_text_transformer_block_3d.9} parent=5 // pred_fallthru
      _
    %p156 = scmp.le.s32.totalorder 1, %s9
    %p157 = scmp.lt.s32.totalorder %s9, 5
    %p158 = pnand %p156, %p157
    %p159 = pneg %p158
    // Predicated region
    $region29: #{basic_text_transformer_block_3d.9} parent=5 // pred_check
      _
    $region30: #{basic_text_transformer_block_3d.9} parent=5 // pred_check_branch
      %161 = sbr.rel (%p158) target = $region32
    $region31: #{basic_text_transformer_block_3d.9} parent=5 // pred_region
      %s162 = ssub.s32 %s9, 1
      %p163 = scmp.lt.s32.totalorder %s14, 3
      %s164 = scalar_select %p163, %s14, 3
      %s165 = smul.addr %s164, 2
      %s166 = smul.addr %s165, 8
      %s167 = scalar_lea.vmem %s0, %s166
      %p168 = pneg %p35
      %p169 = pneg %p32
      %p170 = scmp.lt.s32.totalorder %s14, 3
      %s171 = scalar_select %p170, %s14, 3
      %s172 = smul.addr %s171, 2
      %s173 = smul.addr %s172, 8
      %s174 = scalar_lea.vmem %s1, %s173
      %p175 = pneg %p61
      %p176 = pneg %p58
      %p177 = scmp.lt.s32.totalorder %s14, 3
      %s178 = scalar_select %p177, %s14, 3
      %s179 = smul.addr %s178, 2
      %s180 = smul.addr %s179, 8
      %s181 = scalar_lea.vmem %s2, %s180
      %p182 = pneg %p87
      %p183 = pneg %p84
      %p184 = pneg %p113
      %p185 = pneg %p110
      %p186 = scmp.lt.s32.totalorder %s14, 3
      %s187 = scalar_select %p186, %s14, 3
      %s188 = smul.addr %s187, 2
      %s189 = smul.addr %s188, 8
      %s190 = scalar_lea.vmem %s3, %s189
      %p191 = scmp.lt.s32.totalorder %s14, 3
      %s192 = scalar_select %p191, %s14, 3
      %s193 = smul.addr %s192, 2
      %s194 = smul.addr %s193, 8
      %s195 = scalar_lea.vmem %s0, %s194
      %p196 = scmp.lt.s32.totalorder %s14, 3
      %s197 = scalar_select %p196, %s14, 3
      %s198 = smul.addr %s197, 2
      %s199 = smul.addr %s198, 8
      %s200 = scalar_lea.vmem %s1, %s199
      %p201 = scmp.lt.s32.totalorder %s14, 3
      %s202 = scalar_select %p201, %s14, 3
      %s203 = smul.addr %s202, 2
      %s204 = smul.addr %s203, 8
      %s205 = scalar_lea.vmem %s2, %s204
      %p206 = scmp.lt.s32.totalorder %s14, 3
      %s207 = scalar_select %p206, %s14, 3
      %s208 = smul.addr %s207, 2
      %s209 = smul.addr %s208, 8
      %s210 = scalar_lea.vmem %s3, %s209
      %v212 = vld [vmem:[%s195] sm:$0xff]
      %v213 = vld [vmem:[%s195 + $0x8] sm:$0xff]
      %v214 = vpack.c.bf16 %v213, %v212
      %v215 = vld [vmem:[%s200] sm:$0xff]
      %v216 = vld [vmem:[%s200 + $0x8] sm:$0xff]
      %v217 = vpack.c.bf16 %v216, %v215
      %v218 = vld [vmem:[%s205] sm:$0xff]
      %v219 = vld [vmem:[%s205 + $0x8] sm:$0xff]
      %v220 = vpack.c.bf16 %v219, %v218
      %vm221 = vcmask 64512
      %v223 = vsel %vm221, %v214, 0
      %v226 = vsel %vm221, %v217, 0
      %228 = vmatprep.subr.bf16.mxu0 0
      %229 = vmatpush1.bf16.xpose.msra.mxu0 0
      %230 = vmatprep.subr.bf16.mxu0 0
      %231 = vmatpush1.bf16.xpose.msra.mxu0 0
      %232 = vmatprep.subr.bf16.mxu0 0
      %233 = vmatpush1.bf16.xpose.msra.mxu0 0
      %234 = vmatprep.subr.bf16.mxu0 0
      %235 = vmatpush1.bf16.xpose.msra.mxu0 0
      %236 = vmatprep.subr.bf16.mxu0 0
      %237 = vmatpush1.bf16.xpose.msra.mxu0 0
      %238 = vmatprep.subr.bf16.mxu0 0
      %239 = vmatpush1.bf16.xpose.msra.mxu0 0
      %240 = vmatprep.subr.bf16.mxu0 0
      %241 = vmatpush1.bf16.xpose.msra.mxu0 0
      %242 = vmatprep.subr.bf16.mxu0 0
      %243 = vmatpush1.bf16.xpose.msra.mxu0 %v226
      %244 = vmatprep.subr.bf16.mxu0 0
      %245 = vmatpush2.bf16.xpose.msra.mxu0 0
      %246 = vmatprep.subr.bf16.mxu0 0
      %247 = vmatpush2.bf16.xpose.msra.mxu0 0
      %248 = vmatprep.subr.bf16.mxu0 0
      %249 = vmatpush2.bf16.xpose.msra.mxu0 0
      %250 = vmatprep.subr.bf16.mxu0 0
      %251 = vmatpush2.bf16.xpose.msra.mxu0 0
      %252 = vmatprep.subr.bf16.mxu0 0
      %253 = vmatpush2.bf16.xpose.msra.mxu0 0
      %254 = vmatprep.subr.bf16.mxu0 0
      %255 = vmatpush2.bf16.xpose.msra.mxu0 0
      %256 = vmatprep.subr.bf16.mxu0 0
      %257 = vmatpush2.bf16.xpose.msra.mxu0 0
      %258 = vmatprep.subr.bf16.mxu0 0
      %259 = vmatpush2.bf16.xpose.msra.mxu0 0
      %260 = vmatprep.mubr.bf16.mxu0 0
      %261 = vmatmul.mubr.bf16.gmra.mxu0 %v223
      %v262 = vpop.f32.mrf.mxu0
      %v263 = vadd.f32 0.0, %v262
      %v264 = vpop.f32.mrf.mxu0
      %v265 = vpop.f32.mrf.mxu0
      %v266 = vadd.f32 0.0, %v265
      %v267 = vpop.f32.mrf.mxu0
      %268 = vdwg.mxu0
      %v269 = vmul.f32 %v263, 0.35355338
      %v270 = vmul.f32 %v266, 0.35355338
      %vm271 = vcmask 130048
      %v272 = vsel %vm271, %v269, -inf
      %273 = vmax.xlane.f32.xlu0 %v272
      %v274 = vpop.xlane.xlu0 %273
      %v275 = vsel %vm271, %v270, -inf
      %276 = vmax.xlane.f32.xlu0 %v275
      %v277 = vpop.xlane.xlu0 %276
      %v278 = vsub.f32 %v269, %v274
      %v279 = vsub.f32 %v270, %v277
      %v280 = vmul.f32 %v278, 1.442695
      %v281 = vpow.pop %v280
      %v282 = vmul.f32 %v279, 1.442695
      %v283 = vpow.pop %v282
      %v284 = vsel %vm271, %v281, 0.0
      %285 = vadd.xlane.f32.xlu0 %v284
      %v286 = vpop.xlane.xlu0 %285
      %v287 = vsel %vm271, %v283, 0.0
      %288 = vadd.xlane.f32.xlu0 %v287
      %v289 = vpop.xlane.xlu0 %288
      %v290 = vrcp.pop %v286
      %v291 = vrcp.pop %v289
      %v292 = vmul.f32 %v281, %v290
      %v293 = vmul.f32 %v283, %v291
      %v294 = vpack.c.bf16 %v293, %v292
      %v296 = vsel %vm271, %v294, 0
      %298 = vmatprep.subr.bf16.mxu0 0
      %299 = vmatpush1.bf16.msra.mxu0 0
      %300 = vmatprep.subr.bf16.mxu0 0
      %301 = vmatpush1.bf16.msra.mxu0 0
      %302 = vmatprep.subr.bf16.mxu0 0
      %303 = vmatpush1.bf16.msra.mxu0 0
      %304 = vmatprep.subr.bf16.mxu0 0
      %305 = vmatpush1.bf16.msra.mxu0 0
      %306 = vmatprep.subr.bf16.mxu0 0
      %307 = vmatpush1.bf16.msra.mxu0 0
      %308 = vmatprep.subr.bf16.mxu0 0
      %309 = vmatpush1.bf16.msra.mxu0 0
      %310 = vmatprep.subr.bf16.mxu0 0
      %311 = vmatpush1.bf16.msra.mxu0 0
      %312 = vmatprep.subr.bf16.mxu0 0
      %313 = vmatpush1.bf16.msra.mxu0 %v220
      %314 = vmatprep.subr.bf16.mxu0 0
      %315 = vmatpush2.bf16.msra.mxu0 0
      %316 = vmatprep.subr.bf16.mxu0 0
      %317 = vmatpush2.bf16.msra.mxu0 0
      %318 = vmatprep.subr.bf16.mxu0 0
      %319 = vmatpush2.bf16.msra.mxu0 0
      %320 = vmatprep.subr.bf16.mxu0 0
      %321 = vmatpush2.bf16.msra.mxu0 0
      %322 = vmatprep.subr.bf16.mxu0 0
      %323 = vmatpush2.bf16.msra.mxu0 0
      %324 = vmatprep.subr.bf16.mxu0 0
      %325 = vmatpush2.bf16.msra.mxu0 0
      %326 = vmatprep.subr.bf16.mxu0 0
      %327 = vmatpush2.bf16.msra.mxu0 0
      %328 = vmatprep.subr.bf16.mxu0 0
      %329 = vmatpush2.bf16.msra.mxu0 0
      %330 = vmatprep.mubr.bf16.mxu0 0
      %331 = vmatmul.mubr.bf16.gmra.mxu0 %v296
      %v332 = vpop.f32.mrf.mxu0
      %v333 = vadd.f32 0.0, %v332
      %v334 = vpop.f32.mrf.mxu0
      %v335 = vpop.f32.mrf.mxu0
      %v336 = vadd.f32 0.0, %v335
      %v337 = vpop.f32.mrf.mxu0
      %338 = vdwg.mxu0
      %339 = vst.msk [vmem:[%s210] sm:$0xff] %vm221, %v333
      %340 = vst.msk [vmem:[%s210 + $0x8] sm:$0xff] %vm221, %v336
      %v341 = vld [vmem:[%s195] sm:$0xff]
      %v342 = vld [vmem:[%s195 + $0x8] sm:$0xff]
      %v343 = vpack.c.bf16 %v342, %v341
      %v344 = vld [vmem:[%s200] sm:$0xff]
      %v345 = vld [vmem:[%s200 + $0x8] sm:$0xff]
      %v346 = vpack.c.bf16 %v345, %v344
      %v347 = vld [vmem:[%s205] sm:$0xff]
      %v348 = vld [vmem:[%s205 + $0x8] sm:$0xff]
      %v349 = vpack.c.bf16 %v348, %v347
      %351 = vrot.lane.b32.xlu0 %v343, 120
      %v352 = vpop.permute.xlu0 %351
      %354 = vrot.lane.b32.xlu0 %v346, 120
      %v355 = vpop.permute.xlu0 %354
      %v357 = vsel %vm221, %v352, 0
      %v360 = vsel %vm221, %v355, 0
      %362 = vmatprep.subr.bf16.mxu0 0
      %363 = vmatpush1.bf16.xpose.msra.mxu0 0
      %364 = vmatprep.subr.bf16.mxu0 0
      %365 = vmatpush1.bf16.xpose.msra.mxu0 0
      %366 = vmatprep.subr.bf16.mxu0 0
      %367 = vmatpush1.bf16.xpose.msra.mxu0 0
      %368 = vmatprep.subr.bf16.mxu0 0
      %369 = vmatpush1.bf16.xpose.msra.mxu0 0
      %370 = vmatprep.subr.bf16.mxu0 0
      %371 = vmatpush1.bf16.xpose.msra.mxu0 0
      %372 = vmatprep.subr.bf16.mxu0 0
      %373 = vmatpush1.bf16.xpose.msra.mxu0 0
      %374 = vmatprep.subr.bf16.mxu0 0
      %375 = vmatpush1.bf16.xpose.msra.mxu0 0
      %376 = vmatprep.subr.bf16.mxu0 0
      %377 = vmatpush1.bf16.xpose.msra.mxu0 %v360
      %378 = vmatprep.subr.bf16.mxu0 0
      %379 = vmatpush2.bf16.xpose.msra.mxu0 0
      %380 = vmatprep.subr.bf16.mxu0 0
      %381 = vmatpush2.bf16.xpose.msra.mxu0 0
      %382 = vmatprep.subr.bf16.mxu0 0
      %383 = vmatpush2.bf16.xpose.msra.mxu0 0
      %384 = vmatprep.subr.bf16.mxu0 0
      %385 = vmatpush2.bf16.xpose.msra.mxu0 0
      %386 = vmatprep.subr.bf16.mxu0 0
      %387 = vmatpush2.bf16.xpose.msra.mxu0 0
      %388 = vmatprep.subr.bf16.mxu0 0
      %389 = vmatpush2.bf16.xpose.msra.mxu0 0
      %390 = vmatprep.subr.bf16.mxu0 0
      %391 = vmatpush2.bf16.xpose.msra.mxu0 0
      %392 = vmatprep.subr.bf16.mxu0 0
      %393 = vmatpush2.bf16.xpose.msra.mxu0 0
      %394 = vmatprep.mubr.bf16.mxu0 0
      %395 = vmatmul.mubr.bf16.gmra.mxu0 %v357
      %v396 = vpop.f32.mrf.mxu0
      %v397 = vadd.f32 0.0, %v396
      %v398 = vpop.f32.mrf.mxu0
      %v399 = vpop.f32.mrf.mxu0
      %v400 = vadd.f32 0.0, %v399
      %v401 = vpop.f32.mrf.mxu0
      %402 = vdwg.mxu0
      %v403 = vmul.f32 %v397, 0.35355338
      %v404 = vmul.f32 %v400, 0.35355338
      %v405 = vsel %vm271, %v403, -inf
      %406 = vmax.xlane.f32.xlu0 %v405
      %v407 = vpop.xlane.xlu0 %406
      %v408 = vsel %vm271, %v404, -inf
      %409 = vmax.xlane.f32.xlu0 %v408
      %v410 = vpop.xlane.xlu0 %409
      %v411 = vsub.f32 %v403, %v407
      %v412 = vsub.f32 %v404, %v410
      %v413 = vmul.f32 %v411, 1.442695
      %v414 = vpow.pop %v413
      %v415 = vmul.f32 %v412, 1.442695
      %v416 = vpow.pop %v415
      %v417 = vsel %vm271, %v414, 0.0
      %418 = vadd.xlane.f32.xlu0 %v417
      %v419 = vpop.xlane.xlu0 %418
      %v420 = vsel %vm271, %v416, 0.0
      %421 = vadd.xlane.f32.xlu0 %v420
      %v422 = vpop.xlane.xlu0 %421
      %v423 = vrcp.pop %v419
      %v424 = vrcp.pop %v422
      %v425 = vmul.f32 %v414, %v423
      %v426 = vmul.f32 %v416, %v424
      %v427 = vpack.c.bf16 %v426, %v425
      %429 = vrot.lane.b32.xlu0 %v349, 120
      %v430 = vpop.permute.xlu0 %429
      %v433 = vsel %vm271, %v427, 0
      %435 = vmatprep.subr.bf16.mxu0 0
      %436 = vmatpush1.bf16.msra.mxu0 0
      %437 = vmatprep.subr.bf16.mxu0 0
      %438 = vmatpush1.bf16.msra.mxu0 0
      %439 = vmatprep.subr.bf16.mxu0 0
      %440 = vmatpush1.bf16.msra.mxu0 0
      %441 = vmatprep.subr.bf16.mxu0 0
      %442 = vmatpush1.bf16.msra.mxu0 0
      %443 = vmatprep.subr.bf16.mxu0 0
      %444 = vmatpush1.bf16.msra.mxu0 0
      %445 = vmatprep.subr.bf16.mxu0 0
      %446 = vmatpush1.bf16.msra.mxu0 0
      %447 = vmatprep.subr.bf16.mxu0 0
      %448 = vmatpush1.bf16.msra.mxu0 0
      %449 = vmatprep.subr.bf16.mxu0 0
      %450 = vmatpush1.bf16.msra.mxu0 %v430
      %451 = vmatprep.subr.bf16.mxu0 0
      %452 = vmatpush2.bf16.msra.mxu0 0
      %453 = vmatprep.subr.bf16.mxu0 0
      %454 = vmatpush2.bf16.msra.mxu0 0
      %455 = vmatprep.subr.bf16.mxu0 0
      %456 = vmatpush2.bf16.msra.mxu0 0
      %457 = vmatprep.subr.bf16.mxu0 0
      %458 = vmatpush2.bf16.msra.mxu0 0
      %459 = vmatprep.subr.bf16.mxu0 0
      %460 = vmatpush2.bf16.msra.mxu0 0
      %461 = vmatprep.subr.bf16.mxu0 0
      %462 = vmatpush2.bf16.msra.mxu0 0
      %463 = vmatprep.subr.bf16.mxu0 0
      %464 = vmatpush2.bf16.msra.mxu0 0
      %465 = vmatprep.subr.bf16.mxu0 0
      %466 = vmatpush2.bf16.msra.mxu0 0
      %467 = vmatprep.mubr.bf16.mxu0 0
      %468 = vmatmul.mubr.bf16.gmra.mxu0 %v433
      %v469 = vpop.f32.mrf.mxu0
      %v470 = vadd.f32 0.0, %v469
      %v471 = vpop.f32.mrf.mxu0
      %v472 = vpop.f32.mrf.mxu0
      %v473 = vadd.f32 0.0, %v472
      %v474 = vpop.f32.mrf.mxu0
      %475 = vdwg.mxu0
      %478 = vrot.lane.b32.xlu0 %v470, 8
      %v479 = vpop.permute.xlu0 %478
      %480 = vrot.lane.b32.xlu0 %v473, 8
      %v481 = vpop.permute.xlu0 %480
      %vm484 = vcmask 130112
      %485 = vst.msk [vmem:[%s210] sm:$0xff] %vm484, %v479
      %486 = vst.msk [vmem:[%s210 + $0x8] sm:$0xff] %vm484, %v481
      %v487 = vld [vmem:[%s195] sm:$0xff]
      %v488 = vld [vmem:[%s195 + $0x8] sm:$0xff]
      %v489 = vpack.c.bf16 %v488, %v487
      %v490 = vld [vmem:[%s200] sm:$0xff]
      %v491 = vld [vmem:[%s200 + $0x8] sm:$0xff]
      %v492 = vpack.c.bf16 %v491, %v490
      %v493 = vld [vmem:[%s205] sm:$0xff]
      %v494 = vld [vmem:[%s205 + $0x8] sm:$0xff]
      %v495 = vpack.c.bf16 %v494, %v493
      %497 = vrot.lane.b32.xlu0 %v489, 112
      %v498 = vpop.permute.xlu0 %497
      %500 = vrot.lane.b32.xlu0 %v492, 112
      %v501 = vpop.permute.xlu0 %500
      %v503 = vsel %vm221, %v498, 0
      %v506 = vsel %vm221, %v501, 0
      %508 = vmatprep.subr.bf16.mxu0 0
      %509 = vmatpush1.bf16.xpose.msra.mxu0 0
      %510 = vmatprep.subr.bf16.mxu0 0
      %511 = vmatpush1.bf16.xpose.msra.mxu0 0
      %512 = vmatprep.subr.bf16.mxu0 0
      %513 = vmatpush1.bf16.xpose.msra.mxu0 0
      %514 = vmatprep.subr.bf16.mxu0 0
      %515 = vmatpush1.bf16.xpose.msra.mxu0 0
      %516 = vmatprep.subr.bf16.mxu0 0
      %517 = vmatpush1.bf16.xpose.msra.mxu0 0
      %518 = vmatprep.subr.bf16.mxu0 0
      %519 = vmatpush1.bf16.xpose.msra.mxu0 0
      %520 = vmatprep.subr.bf16.mxu0 0
      %521 = vmatpush1.bf16.xpose.msra.mxu0 0
      %522 = vmatprep.subr.bf16.mxu0 0
      %523 = vmatpush1.bf16.xpose.msra.mxu0 %v506
      %524 = vmatprep.subr.bf16.mxu0 0
      %525 = vmatpush2.bf16.xpose.msra.mxu0 0
      %526 = vmatprep.subr.bf16.mxu0 0
      %527 = vmatpush2.bf16.xpose.msra.mxu0 0
      %528 = vmatprep.subr.bf16.mxu0 0
      %529 = vmatpush2.bf16.xpose.msra.mxu0 0
      %530 = vmatprep.subr.bf16.mxu0 0
      %531 = vmatpush2.bf16.xpose.msra.mxu0 0
      %532 = vmatprep.subr.bf16.mxu0 0
      %533 = vmatpush2.bf16.xpose.msra.mxu0 0
      %534 = vmatprep.subr.bf16.mxu0 0
      %535 = vmatpush2.bf16.xpose.msra.mxu0 0
      %536 = vmatprep.subr.bf16.mxu0 0
      %537 = vmatpush2.bf16.xpose.msra.mxu0 0
      %538 = vmatprep.subr.bf16.mxu0 0
      %539 = vmatpush2.bf16.xpose.msra.mxu0 0
      %540 = vmatprep.mubr.bf16.mxu0 0
      %541 = vmatmul.mubr.bf16.gmra.mxu0 %v503
      %v542 = vpop.f32.mrf.mxu0
      %v543 = vadd.f32 0.0, %v542
      %v544 = vpop.f32.mrf.mxu0
      %v545 = vpop.f32.mrf.mxu0
      %v546 = vadd.f32 0.0, %v545
      %v547 = vpop.f32.mrf.mxu0
      %548 = vdwg.mxu0
      %v549 = vmul.f32 %v543, 0.35355338
      %v550 = vmul.f32 %v546, 0.35355338
      %v551 = vsel %vm271, %v549, -inf
      %552 = vmax.xlane.f32.xlu0 %v551
      %v553 = vpop.xlane.xlu0 %552
      %v554 = vsel %vm271, %v550, -inf
      %555 = vmax.xlane.f32.xlu0 %v554
      %v556 = vpop.xlane.xlu0 %555
      %v557 = vsub.f32 %v549, %v553
      %v558 = vsub.f32 %v550, %v556
      %v559 = vmul.f32 %v557, 1.442695
      %v560 = vpow.pop %v559
      %v561 = vmul.f32 %v558, 1.442695
      %v562 = vpow.pop %v561
      %v563 = vsel %vm271, %v560, 0.0
      %564 = vadd.xlane.f32.xlu0 %v563
      %v565 = vpop.xlane.xlu0 %564
      %v566 = vsel %vm271, %v562, 0.0
      %567 = vadd.xlane.f32.xlu0 %v566
      %v568 = vpop.xlane.xlu0 %567
      %v569 = vrcp.pop %v565
      %v570 = vrcp.pop %v568
      %v571 = vmul.f32 %v560, %v569
      %v572 = vmul.f32 %v562, %v570
      %v573 = vpack.c.bf16 %v572, %v571
      %575 = vrot.lane.b32.xlu0 %v495, 112
      %v576 = vpop.permute.xlu0 %575
      %v579 = vsel %vm271, %v573, 0
      %581 = vmatprep.subr.bf16.mxu0 0
      %582 = vmatpush1.bf16.msra.mxu0 0
      %583 = vmatprep.subr.bf16.mxu0 0
      %584 = vmatpush1.bf16.msra.mxu0 0
      %585 = vmatprep.subr.bf16.mxu0 0
      %586 = vmatpush1.bf16.msra.mxu0 0
      %587 = vmatprep.subr.bf16.mxu0 0
      %588 = vmatpush1.bf16.msra.mxu0 0
      %589 = vmatprep.subr.bf16.mxu0 0
      %590 = vmatpush1.bf16.msra.mxu0 0
      %591 = vmatprep.subr.bf16.mxu0 0
      %592 = vmatpush1.bf16.msra.mxu0 0
      %593 = vmatprep.subr.bf16.mxu0 0
      %594 = vmatpush1.bf16.msra.mxu0 0
      %595 = vmatprep.subr.bf16.mxu0 0
      %596 = vmatpush1.bf16.msra.mxu0 %v576
      %597 = vmatprep.subr.bf16.mxu0 0
      %598 = vmatpush2.bf16.msra.mxu0 0
      %599 = vmatprep.subr.bf16.mxu0 0
      %600 = vmatpush2.bf16.msra.mxu0 0
      %601 = vmatprep.subr.bf16.mxu0 0
      %602 = vmatpush2.bf16.msra.mxu0 0
      %603 = vmatprep.subr.bf16.mxu0 0
      %604 = vmatpush2.bf16.msra.mxu0 0
      %605 = vmatprep.subr.bf16.mxu0 0
      %606 = vmatpush2.bf16.msra.mxu0 0
      %607 = vmatprep.subr.bf16.mxu0 0
      %608 = vmatpush2.bf16.msra.mxu0 0
      %609 = vmatprep.subr.bf16.mxu0 0
      %610 = vmatpush2.bf16.msra.mxu0 0
      %611 = vmatprep.subr.bf16.mxu0 0
      %612 = vmatpush2.bf16.msra.mxu0 0
      %613 = vmatprep.mubr.bf16.mxu0 0
      %614 = vmatmul.mubr.bf16.gmra.mxu0 %v579
      %v615 = vpop.f32.mrf.mxu0
      %v616 = vadd.f32 0.0, %v615
      %v617 = vpop.f32.mrf.mxu0
      %v618 = vpop.f32.mrf.mxu0
      %v619 = vadd.f32 0.0, %v618
      %v620 = vpop.f32.mrf.mxu0
      %621 = vdwg.mxu0
      %624 = vrot.lane.b32.xlu0 %v616, 16
      %v625 = vpop.permute.xlu0 %624
      %626 = vrot.lane.b32.xlu0 %v619, 16
      %v627 = vpop.permute.xlu0 %626
      %vm630 = vcmask 195712
      %631 = vst.msk [vmem:[%s210] sm:$0xff] %vm630, %v625
      %632 = vst.msk [vmem:[%s210 + $0x8] sm:$0xff] %vm630, %v627
      %v633 = vld [vmem:[%s195] sm:$0xff]
      %v634 = vld [vmem:[%s195 + $0x8] sm:$0xff]
      %v635 = vpack.c.bf16 %v634, %v633
      %v636 = vld [vmem:[%s200] sm:$0xff]
      %v637 = vld [vmem:[%s200 + $0x8] sm:$0xff]
      %v638 = vpack.c.bf16 %v637, %v636
      %v639 = vld [vmem:[%s205] sm:$0xff]
      %v640 = vld [vmem:[%s205 + $0x8] sm:$0xff]
      %v641 = vpack.c.bf16 %v640, %v639
      %643 = vrot.lane.b32.xlu0 %v635, 104
      %v644 = vpop.permute.xlu0 %643
      %646 = vrot.lane.b32.xlu0 %v638, 104
      %v647 = vpop.permute.xlu0 %646
      %v649 = vsel %vm221, %v644, 0
      %v652 = vsel %vm221, %v647, 0
      %654 = vmatprep.subr.bf16.mxu0 0
      %655 = vmatpush1.bf16.xpose.msra.mxu0 0
      %656 = vmatprep.subr.bf16.mxu0 0
      %657 = vmatpush1.bf16.xpose.msra.mxu0 0
      %658 = vmatprep.subr.bf16.mxu0 0
      %659 = vmatpush1.bf16.xpose.msra.mxu0 0
      %660 = vmatprep.subr.bf16.mxu0 0
      %661 = vmatpush1.bf16.xpose.msra.mxu0 0
      %662 = vmatprep.subr.bf16.mxu0 0
      %663 = vmatpush1.bf16.xpose.msra.mxu0 0
      %664 = vmatprep.subr.bf16.mxu0 0
      %665 = vmatpush1.bf16.xpose.msra.mxu0 0
      %666 = vmatprep.subr.bf16.mxu0 0
      %667 = vmatpush1.bf16.xpose.msra.mxu0 0
      %668 = vmatprep.subr.bf16.mxu0 0
      %669 = vmatpush1.bf16.xpose.msra.mxu0 %v652
      %670 = vmatprep.subr.bf16.mxu0 0
      %671 = vmatpush2.bf16.xpose.msra.mxu0 0
      %672 = vmatprep.subr.bf16.mxu0 0
      %673 = vmatpush2.bf16.xpose.msra.mxu0 0
      %674 = vmatprep.subr.bf16.mxu0 0
      %675 = vmatpush2.bf16.xpose.msra.mxu0 0
      %676 = vmatprep.subr.bf16.mxu0 0
      %677 = vmatpush2.bf16.xpose.msra.mxu0 0
      %678 = vmatprep.subr.bf16.mxu0 0
      %679 = vmatpush2.bf16.xpose.msra.mxu0 0
      %680 = vmatprep.subr.bf16.mxu0 0
      %681 = vmatpush2.bf16.xpose.msra.mxu0 0
      %682 = vmatprep.subr.bf16.mxu0 0
      %683 = vmatpush2.bf16.xpose.msra.mxu0 0
      %684 = vmatprep.subr.bf16.mxu0 0
      %685 = vmatpush2.bf16.xpose.msra.mxu0 0
      %686 = vmatprep.mubr.bf16.mxu0 0
      %687 = vmatmul.mubr.bf16.gmra.mxu0 %v649
      %v688 = vpop.f32.mrf.mxu0
      %v689 = vadd.f32 0.0, %v688
      %v690 = vpop.f32.mrf.mxu0
      %v691 = vpop.f32.mrf.mxu0
      %v692 = vadd.f32 0.0, %v691
      %v693 = vpop.f32.mrf.mxu0
      %694 = vdwg.mxu0
      %v695 = vmul.f32 %v689, 0.35355338
      %v696 = vmul.f32 %v692, 0.35355338
      %v697 = vsel %vm271, %v695, -inf
      %698 = vmax.xlane.f32.xlu0 %v697
      %v699 = vpop.xlane.xlu0 %698
      %v700 = vsel %vm271, %v696, -inf
      %701 = vmax.xlane.f32.xlu0 %v700
      %v702 = vpop.xlane.xlu0 %701
      %v703 = vsub.f32 %v695, %v699
      %v704 = vsub.f32 %v696, %v702
      %v705 = vmul.f32 %v703, 1.442695
      %v706 = vpow.pop %v705
      %v707 = vmul.f32 %v704, 1.442695
      %v708 = vpow.pop %v707
      %v709 = vsel %vm271, %v706, 0.0
      %710 = vadd.xlane.f32.xlu0 %v709
      %v711 = vpop.xlane.xlu0 %710
      %v712 = vsel %vm271, %v708, 0.0
      %713 = vadd.xlane.f32.xlu0 %v712
      %v714 = vpop.xlane.xlu0 %713
      %v715 = vrcp.pop %v711
      %v716 = vrcp.pop %v714
      %v717 = vmul.f32 %v706, %v715
      %v718 = vmul.f32 %v708, %v716
      %v719 = vpack.c.bf16 %v718, %v717
      %721 = vrot.lane.b32.xlu0 %v641, 104
      %v722 = vpop.permute.xlu0 %721
      %v725 = vsel %vm271, %v719, 0
      %727 = vmatprep.subr.bf16.mxu0 0
      %728 = vmatpush1.bf16.msra.mxu0 0
      %729 = vmatprep.subr.bf16.mxu0 0
      %730 = vmatpush1.bf16.msra.mxu0 0
      %731 = vmatprep.subr.bf16.mxu0 0
      %732 = vmatpush1.bf16.msra.mxu0 0
      %733 = vmatprep.subr.bf16.mxu0 0
      %734 = vmatpush1.bf16.msra.mxu0 0
      %735 = vmatprep.subr.bf16.mxu0 0
      %736 = vmatpush1.bf16.msra.mxu0 0
      %737 = vmatprep.subr.bf16.mxu0 0
      %738 = vmatpush1.bf16.msra.mxu0 0
      %739 = vmatprep.subr.bf16.mxu0 0
      %740 = vmatpush1.bf16.msra.mxu0 0
      %741 = vmatprep.subr.bf16.mxu0 0
      %742 = vmatpush1.bf16.msra.mxu0 %v722
      %743 = vmatprep.subr.bf16.mxu0 0
      %744 = vmatpush2.bf16.msra.mxu0 0
      %745 = vmatprep.subr.bf16.mxu0 0
      %746 = vmatpush2.bf16.msra.mxu0 0
      %747 = vmatprep.subr.bf16.mxu0 0
      %748 = vmatpush2.bf16.msra.mxu0 0
      %749 = vmatprep.subr.bf16.mxu0 0
      %750 = vmatpush2.bf16.msra.mxu0 0
      %751 = vmatprep.subr.bf16.mxu0 0
      %752 = vmatpush2.bf16.msra.mxu0 0
      %753 = vmatprep.subr.bf16.mxu0 0
      %754 = vmatpush2.bf16.msra.mxu0 0
      %755 = vmatprep.subr.bf16.mxu0 0
      %756 = vmatpush2.bf16.msra.mxu0 0
      %757 = vmatprep.subr.bf16.mxu0 0
      %758 = vmatpush2.bf16.msra.mxu0 0
      %759 = vmatprep.mubr.bf16.mxu0 0
      %760 = vmatmul.mubr.bf16.gmra.mxu0 %v725
      %v761 = vpop.f32.mrf.mxu0
      %v762 = vadd.f32 0.0, %v761
      %v763 = vpop.f32.mrf.mxu0
      %v764 = vpop.f32.mrf.mxu0
      %v765 = vadd.f32 0.0, %v764
      %v766 = vpop.f32.mrf.mxu0
      %767 = vdwg.mxu0
      %770 = vrot.lane.b32.xlu0 %v762, 24
      %v771 = vpop.permute.xlu0 %770
      %772 = vrot.lane.b32.xlu0 %v765, 24
      %v773 = vpop.permute.xlu0 %772
      %vm776 = vcmask 261312
      %777 = vst.msk [vmem:[%s210] sm:$0xff] %vm776, %v771
      %778 = vst.msk [vmem:[%s210 + $0x8] sm:$0xff] %vm776, %v773
      %p779 = scmp.lt.s32.totalorder %s14, 3
      %s780 = scalar_select %p779, %s14, 3
      %s781 = smul.addr %s780, 2
      %s782 = smul.addr %s781, 8
      %s783 = scalar_lea.vmem %s3, %s782
      // Predicated region
      $region33: #{basic_text_transformer_block_3d.9} parent=31 // pred_check
        %p784 = pneg %p110
      $region34: #{basic_text_transformer_block_3d.9} parent=31 // pred_check_branch
        %786 = sbr.rel (%p784) target = $region36
      $region35: #{basic_text_transformer_block_3d.9} parent=31 // pred_region
        _
      $region36: #{basic_text_transformer_block_3d.9} parent=31 // pred_fallthru
        _
    $region32: #{basic_text_transformer_block_3d.9} parent=5 // pred_fallthru
      _
    %p787 = scmp.le.s32.totalorder 2, %s9
    // Predicated region
    $region37: #{basic_text_transformer_block_3d.9} parent=5 // pred_check
      %p788 = pneg %p787
    $region38: #{basic_text_transformer_block_3d.9} parent=5 // pred_check_branch
      %790 = sbr.rel (%p788) target = $region40
    $region39: #{basic_text_transformer_block_3d.9} parent=5 // pred_region
      %s791 = ssub.s32 %s9, 2
      // Predicated region
      $region41: #{basic_text_transformer_block_3d.9} parent=39 // pred_check
        %p792 = pneg %p116
      $region42: #{basic_text_transformer_block_3d.9} parent=39 // pred_check_branch
        %794 = sbr.rel (%p792) target = $region44
      $region43: #{basic_text_transformer_block_3d.9} parent=39 // pred_region
        %p795 = scmp.lt.s32.totalorder %s15, 3
        %s796 = scalar_select %p795, %s15, 3
        %s797 = smul.addr %s796, 2
        %s798 = smul.addr %s797, 8
        %s799 = scalar_lea.vmem %s3, %s798
      $region44: #{basic_text_transformer_block_3d.9} parent=39 // pred_fallthru
        _
    $region40: #{basic_text_transformer_block_3d.9} parent=5 // pred_fallthru
      _
  $region6: #{basic_text_transformer_block_3d.9} parent=0 // loop_footer
    %s13 = sadd.s32 1, %s9
  $region7: #{basic_text_transformer_block_3d.9} parent=0 // loop_footer_branch
    %8 = sbr.rel target = $region3
  $region8: #{basic_text_transformer_block_3d.9} parent=0 // loop_exit
    _

// kernel: basic_text_transformer_block_3d.11
$region0: #{basic_text_transformer_block_3d.11}
  #allocation0 [shape = 'u32[]', space=smem, size = 0x4, offset = 0x4, fixed_abs, tag = 'smem constant byte address 0x4 - core index']
  #allocation1 [shape = 'u32[144,128]{1,0:T(1,128)}', space=vmem, size = 0x12000, scoped, tag = 'internal scratch']
  %s0 = inlined_call_operand.vmem [shape: f32[64,32], index: 0, kind: input, shape index: {}]
  %s1 = inlined_call_operand.vmem [shape: f32[1,32], index: 1, kind: input, shape index: {}]
  %s2 = inlined_call_operand.vmem [shape: f32[1,32], index: 2, kind: input, shape index: {}]
  %s3 = inlined_call_operand.vmem [shape: f32[32,32], index: 3, kind: input, shape index: {}]
  %s4 = inlined_call_operand.vmem [shape: f32[64,32], index: 4, kind: output, shape index: {}]
  %s5 = sld [smem:[#allocation0]]
  $region26: #{basic_text_transformer_block_3d.11} parent=0
    _
  %s7 = ssub.s32 1, %s5
  %s8 = scalar_select 0, %s7, %s5
  // Predicated region
  $region2: #{basic_text_transformer_block_3d.11} parent=0 // pred_check
    _
  $region3: #{basic_text_transformer_block_3d.11} parent=0 // pred_check_branch
    %10 = sbr.rel (0) target = $region5
  $region4: #{basic_text_transformer_block_3d.11} parent=0 // pred_region
    _
  $region5: #{basic_text_transformer_block_3d.11} parent=0 // pred_fallthru
    _
  // Predicated region
  $region6: #{basic_text_transformer_block_3d.11} parent=0 // pred_check
    _
  $region7: #{basic_text_transformer_block_3d.11} parent=0 // pred_check_branch
    %12 = sbr.rel (0) target = $region9
  $region8: #{basic_text_transformer_block_3d.11} parent=0 // pred_region
    _
  $region9: #{basic_text_transformer_block_3d.11} parent=0 // pred_fallthru
    _
  // Predicated region
  $region10: #{basic_text_transformer_block_3d.11} parent=0 // pred_check
    _
  $region11: #{basic_text_transformer_block_3d.11} parent=0 // pred_check_branch
    %14 = sbr.rel (0) target = $region13
  $region12: #{basic_text_transformer_block_3d.11} parent=0 // pred_region
    _
  $region13: #{basic_text_transformer_block_3d.11} parent=0 // pred_fallthru
    _
  // Predicated region
  $region14: #{basic_text_transformer_block_3d.11} parent=0 // pred_check
    _
  $region15: #{basic_text_transformer_block_3d.11} parent=0 // pred_check_branch
    %16 = sbr.rel (0) target = $region17
  $region16: #{basic_text_transformer_block_3d.11} parent=0 // pred_region
    _
  $region17: #{basic_text_transformer_block_3d.11} parent=0 // pred_fallthru
    _
  %v18 = vld [vmem:[%s0] sm:$0xff]
  %v19 = vld [vmem:[%s0 + $0x8] sm:$0xff]
  %v20 = vld [vmem:[%s0 + $0x10] sm:$0xff]
  %v21 = vld [vmem:[%s0 + $0x18] sm:$0xff]
  %v22 = vld [vmem:[%s0 + $0x20] sm:$0xff]
  %v23 = vld [vmem:[%s0 + $0x28] sm:$0xff]
  %v24 = vld [vmem:[%s0 + $0x30] sm:$0xff]
  %v25 = vld [vmem:[%s0 + $0x38] sm:$0xff]
  %v26 = vld [vmem:[%s1] sm:$0x1]
  %v27 = vld [vmem:[%s2] sm:$0x1]
  %vm28 = vcmask 261120
  %v29 = vsel %vm28, %v18, 0.0
  %30 = vadd.xlane.f32.xlu0 %v29
  %v31 = vpop.xlane.xlu0 %30
  %v32 = vsel %vm28, %v19, 0.0
  %33 = vadd.xlane.f32.xlu0 %v32
  %v34 = vpop.xlane.xlu0 %33
  %v35 = vsel %vm28, %v20, 0.0
  %36 = vadd.xlane.f32.xlu0 %v35
  %v37 = vpop.xlane.xlu0 %36
  %v38 = vsel %vm28, %v21, 0.0
  %39 = vadd.xlane.f32.xlu0 %v38
  %v40 = vpop.xlane.xlu0 %39
  %v41 = vsel %vm28, %v22, 0.0
  %42 = vadd.xlane.f32.xlu0 %v41
  %v43 = vpop.xlane.xlu0 %42
  %v44 = vsel %vm28, %v23, 0.0
  %45 = vadd.xlane.f32.xlu0 %v44
  %v46 = vpop.xlane.xlu0 %45
  %v47 = vsel %vm28, %v24, 0.0
  %48 = vadd.xlane.f32.xlu0 %v47
  %v49 = vpop.xlane.xlu0 %48
  %v50 = vsel %vm28, %v25, 0.0
  %51 = vadd.xlane.f32.xlu0 %v50
  %v52 = vpop.xlane.xlu0 %51
  %v53 = vrcp.pop 32.0
  %v54 = vmul.f32 %v31, %v53
  %v55 = vmul.f32 %v34, %v53
  %v56 = vmul.f32 %v37, %v53
  %v57 = vmul.f32 %v40, %v53
  %v58 = vmul.f32 %v43, %v53
  %v59 = vmul.f32 %v46, %v53
  %v60 = vmul.f32 %v49, %v53
  %v61 = vmul.f32 %v52, %v53
  %v62 = vsub.f32 %v18, %v54
  %v63 = vsub.f32 %v19, %v55
  %v64 = vsub.f32 %v20, %v56
  %v65 = vsub.f32 %v21, %v57
  %v66 = vsub.f32 %v22, %v58
  %v67 = vsub.f32 %v23, %v59
  %v68 = vsub.f32 %v24, %v60
  %v69 = vsub.f32 %v25, %v61
  %v70 = vmul.f32 %v62, %v62
  %v71 = vmul.f32 %v63, %v63
  %v72 = vmul.f32 %v64, %v64
  %v73 = vmul.f32 %v65, %v65
  %v74 = vmul.f32 %v66, %v66
  %v75 = vmul.f32 %v67, %v67
  %v76 = vmul.f32 %v68, %v68
  %v77 = vmul.f32 %v69, %v69
  %v78 = vsel %vm28, %v70, 0.0
  %79 = vadd.xlane.f32.xlu0 %v78
  %v80 = vpop.xlane.xlu0 %79
  %v81 = vsel %vm28, %v71, 0.0
  %82 = vadd.xlane.f32.xlu0 %v81
  %v83 = vpop.xlane.xlu0 %82
  %v84 = vsel %vm28, %v72, 0.0
  %85 = vadd.xlane.f32.xlu0 %v84
  %v86 = vpop.xlane.xlu0 %85
  %v87 = vsel %vm28, %v73, 0.0
  %88 = vadd.xlane.f32.xlu0 %v87
  %v89 = vpop.xlane.xlu0 %88
  %v90 = vsel %vm28, %v74, 0.0
  %91 = vadd.xlane.f32.xlu0 %v90
  %v92 = vpop.xlane.xlu0 %91
  %v93 = vsel %vm28, %v75, 0.0
  %94 = vadd.xlane.f32.xlu0 %v93
  %v95 = vpop.xlane.xlu0 %94
  %v96 = vsel %vm28, %v76, 0.0
  %97 = vadd.xlane.f32.xlu0 %v96
  %v98 = vpop.xlane.xlu0 %97
  %v99 = vsel %vm28, %v77, 0.0
  %100 = vadd.xlane.f32.xlu0 %v99
  %v101 = vpop.xlane.xlu0 %100
  %v102 = vmul.f32 %v80, %v53
  %v103 = vmul.f32 %v83, %v53
  %v104 = vmul.f32 %v86, %v53
  %v105 = vmul.f32 %v89, %v53
  %v106 = vmul.f32 %v92, %v53
  %v107 = vmul.f32 %v95, %v53
  %v108 = vmul.f32 %v98, %v53
  %v109 = vmul.f32 %v101, %v53
  %v110 = vadd.f32 %v102, 1e-05
  %v111 = vadd.f32 %v103, 1e-05
  %v112 = vadd.f32 %v104, 1e-05
  %v113 = vadd.f32 %v105, 1e-05
  %v114 = vadd.f32 %v106, 1e-05
  %v115 = vadd.f32 %v107, 1e-05
  %v116 = vadd.f32 %v108, 1e-05
  %v117 = vadd.f32 %v109, 1e-05
  %v118 = vrsqrt.pop %v110
  %v119 = vrsqrt.pop %v111
  %v120 = vrsqrt.pop %v112
  %v121 = vrsqrt.pop %v113
  %v122 = vrsqrt.pop %v114
  %v123 = vrsqrt.pop %v115
  %v124 = vrsqrt.pop %v116
  %v125 = vrsqrt.pop %v117
  %v126 = vmul.f32 %v62, %v118
  %v127 = vmul.f32 %v63, %v119
  %v128 = vmul.f32 %v64, %v120
  %v129 = vmul.f32 %v65, %v121
  %v130 = vmul.f32 %v66, %v122
  %v131 = vmul.f32 %v67, %v123
  %v132 = vmul.f32 %v68, %v124
  %v133 = vmul.f32 %v69, %v125
  %v135 = vlaneseq
  %v136 = vshrl.u32 %v135, 7
  %v137 = vsub.s32 0, %v136
  %v138 = vrot.slane %v26, %v137
  %v140 = vmul.f32 %v126, %v138
  %v141 = vmul.f32 %v127, %v138
  %v142 = vmul.f32 %v128, %v138
  %v143 = vmul.f32 %v129, %v138
  %v144 = vmul.f32 %v130, %v138
  %v145 = vmul.f32 %v131, %v138
  %v146 = vmul.f32 %v132, %v138
  %v147 = vmul.f32 %v133, %v138
  %v149 = vlaneseq
  %v150 = vshrl.u32 %v149, 7
  %v151 = vsub.s32 0, %v150
  %v152 = vrot.slane %v27, %v151
  %v154 = vadd.f32 %v140, %v152
  %v155 = vadd.f32 %v141, %v152
  %v156 = vadd.f32 %v142, %v152
  %v157 = vadd.f32 %v143, %v152
  %v158 = vadd.f32 %v144, %v152
  %v159 = vadd.f32 %v145, %v152
  %v160 = vadd.f32 %v146, %v152
  %v161 = vadd.f32 %v147, %v152
  %v162 = vpack.c.bf16 %v155, %v154
  %v163 = vpack.c.bf16 %v157, %v156
  %v164 = vpack.c.bf16 %v159, %v158
  %v165 = vpack.c.bf16 %v161, %v160
  %v166 = vld [vmem:[%s3] sm:$0xff]
  %v167 = vld [vmem:[%s3 + $0x8] sm:$0xff]
  %v168 = vld [vmem:[%s3 + $0x10] sm:$0xff]
  %v169 = vld [vmem:[%s3 + $0x18] sm:$0xff]
  %v170 = vpack.c.bf16 %v167, %v166
  %v171 = vpack.c.bf16 %v169, %v168
  %v173 = vsel %vm28, %v162, 0
  %v176 = vsel %vm28, %v163, 0
  %v179 = vsel %vm28, %v164, 0
  %v182 = vsel %vm28, %v165, 0
  %184 = vmatprep.subr.bf16.mxu0 0
  %185 = vmatpush1.bf16.msra.mxu0 0
  %186 = vmatprep.subr.bf16.mxu0 0
  %187 = vmatpush1.bf16.msra.mxu0 0
  %188 = vmatprep.subr.bf16.mxu0 0
  %189 = vmatpush1.bf16.msra.mxu0 0
  %190 = vmatprep.subr.bf16.mxu0 0
  %191 = vmatpush1.bf16.msra.mxu0 0
  %192 = vmatprep.subr.bf16.mxu0 0
  %193 = vmatpush1.bf16.msra.mxu0 0
  %194 = vmatprep.subr.bf16.mxu0 0
  %195 = vmatpush1.bf16.msra.mxu0 0
  %196 = vmatprep.subr.bf16.mxu0 0
  %197 = vmatpush1.bf16.msra.mxu0 %v171
  %198 = vmatprep.subr.bf16.mxu0 0
  %199 = vmatpush1.bf16.msra.mxu0 %v170
  %200 = vmatprep.subr.bf16.mxu0 0
  %201 = vmatpush2.bf16.msra.mxu0 0
  %202 = vmatprep.subr.bf16.mxu0 0
  %203 = vmatpush2.bf16.msra.mxu0 0
  %204 = vmatprep.subr.bf16.mxu0 0
  %205 = vmatpush2.bf16.msra.mxu0 0
  %206 = vmatprep.subr.bf16.mxu0 0
  %207 = vmatpush2.bf16.msra.mxu0 0
  %208 = vmatprep.subr.bf16.mxu0 0
  %209 = vmatpush2.bf16.msra.mxu0 0
  %210 = vmatprep.subr.bf16.mxu0 0
  %211 = vmatpush2.bf16.msra.mxu0 0
  %212 = vmatprep.subr.bf16.mxu0 0
  %213 = vmatpush2.bf16.msra.mxu0 0
  %214 = vmatprep.subr.bf16.mxu0 0
  %215 = vmatpush2.bf16.msra.mxu0 0
  %216 = vmatprep.mubr.bf16.mxu0 0
  %217 = vmatmul.mubr.bf16.gmra.mxu0 %v173
  %v218 = vpop.f32.mrf.mxu0
  %v219 = vadd.f32 0.0, %v218
  %v220 = vpop.f32.mrf.mxu0
  %v221 = vpop.f32.mrf.mxu0
  %v222 = vadd.f32 0.0, %v221
  %v223 = vpop.f32.mrf.mxu0
  %224 = vmatprep.mubr.bf16.mxu0 0
  %225 = vmatmul.mubr.bf16.gmra.mxu0 %v176
  %v226 = vpop.f32.mrf.mxu0
  %v227 = vadd.f32 0.0, %v226
  %v228 = vpop.f32.mrf.mxu0
  %v229 = vpop.f32.mrf.mxu0
  %v230 = vadd.f32 0.0, %v229
  %v231 = vpop.f32.mrf.mxu0
  %232 = vmatprep.mubr.bf16.mxu0 0
  %233 = vmatmul.mubr.bf16.gmra.mxu0 %v179
  %v234 = vpop.f32.mrf.mxu0
  %v235 = vadd.f32 0.0, %v234
  %v236 = vpop.f32.mrf.mxu0
  %v237 = vpop.f32.mrf.mxu0
  %v238 = vadd.f32 0.0, %v237
  %v239 = vpop.f32.mrf.mxu0
  %240 = vmatprep.mubr.bf16.mxu0 0
  %241 = vmatmul.mubr.bf16.gmra.mxu0 %v182
  %v242 = vpop.f32.mrf.mxu0
  %v243 = vadd.f32 0.0, %v242
  %v244 = vpop.f32.mrf.mxu0
  %v245 = vpop.f32.mrf.mxu0
  %v246 = vadd.f32 0.0, %v245
  %v247 = vpop.f32.mrf.mxu0
  %248 = vdwg.mxu0
  %249 = vst.msk [vmem:[%s4] sm:$0xff] %vm28, %v219
  %250 = vst.msk [vmem:[%s4 + $0x8] sm:$0xff] %vm28, %v222
  %251 = vst.msk [vmem:[%s4 + $0x10] sm:$0xff] %vm28, %v227
  %252 = vst.msk [vmem:[%s4 + $0x18] sm:$0xff] %vm28, %v230
  %253 = vst.msk [vmem:[%s4 + $0x20] sm:$0xff] %vm28, %v235
  %254 = vst.msk [vmem:[%s4 + $0x28] sm:$0xff] %vm28, %v238
  %255 = vst.msk [vmem:[%s4 + $0x30] sm:$0xff] %vm28, %v243
  %256 = vst.msk [vmem:[%s4 + $0x38] sm:$0xff] %vm28, %v246
  // Predicated region
  $region18: #{basic_text_transformer_block_3d.11} parent=0 // pred_check
    _
  $region19: #{basic_text_transformer_block_3d.11} parent=0 // pred_check_branch
    %258 = sbr.rel (0) target = $region21
  $region20: #{basic_text_transformer_block_3d.11} parent=0 // pred_region
    _
  $region21: #{basic_text_transformer_block_3d.11} parent=0 // pred_fallthru
    _
  // Predicated region
  $region22: #{basic_text_transformer_block_3d.11} parent=0 // pred_check
    _
  $region23: #{basic_text_transformer_block_3d.11} parent=0 // pred_check_branch
    %260 = sbr.rel (0) target = $region25
  $region24: #{basic_text_transformer_block_3d.11} parent=0 // pred_region
    _
  $region25: #{basic_text_transformer_block_3d.11} parent=0 // pred_fallthru
    _

// kernel: basic_text_transformer_block_3d.13
$region0: #{basic_text_transformer_block_3d.13}
  #allocation0 [shape = 'u32[]', space=smem, size = 0x4, offset = 0x4, fixed_abs, tag = 'smem constant byte address 0x4 - core index']
  #allocation1 [shape = 'u32[144,128]{1,0:T(1,128)}', space=vmem, size = 0x12000, scoped, tag = 'internal scratch']
  %s0 = inlined_call_operand.vmem [shape: f32[4,16,32], index: 0, kind: input, shape index: {}]
  %s1 = inlined_call_operand.vmem [shape: f32[4,8,32], index: 1, kind: input, shape index: {}]
  %s2 = inlined_call_operand.vmem [shape: f32[4,8,32], index: 2, kind: input, shape index: {}]
  %s3 = inlined_call_operand.vmem [shape: f32[4,16,32], index: 3, kind: output, shape index: {}]
  %s4 = sld [smem:[#allocation0]]
  $region45: #{basic_text_transformer_block_3d.13} parent=0
    _
  %s6 = ssub.s32 1, %s4
  %s7 = scalar_select 0, %s6, %s4
  loop: start=0, step=1, limit=6
  $region2: #{basic_text_transformer_block_3d.13} parent=0 // loop_pre_header
    _
  $region3: #{basic_text_transformer_block_3d.13} parent=0 // loop_header
    %s9 = sphi 0, %s13
    %p10 = scmp.ge.s32.totalorder %s9, 6
    %s19 = sphi 0, %s21
    %s22 = sphi 0, %s19
    %s23 = sphi 0, %s22
    %s39 = sphi 0, %s23
    %s45 = sphi 0, %s47
    %s48 = sphi 0, %s45
    %s49 = sphi 0, %s48
    %s65 = sphi 0, %s49
    %s71 = sphi 0, %s73
    %s74 = sphi 0, %s71
    %s75 = sphi 0, %s74
    %s91 = sphi 0, %s75
    %s97 = sphi 0, %s99
    %s100 = sphi 0, %s97
    %s101 = sphi 0, %s100
    %s117 = sphi 0, %s101
  $region4: #{basic_text_transformer_block_3d.13} parent=0 // loop_header_branch
    %12 = sbr.rel (%p10) target = $region8
  $region5: #{basic_text_transformer_block_3d.13} parent=0 // loop_body
    %s14 = ssub.s32 %s9, 1
    %s15 = ssub.s32 %s9, 2
    %s16 = sadd.s32 %s9, 1
    %s17 = ssub.s32 %s9, %s16
    %p18 = scmp.eq.s32.totalorder %s17, 0
    %s20 = sadd.s32 %s19, 1
    %s21 = scalar_select %p18, %s19, %s20
    %p24 = pneg %p18
    %p25 = scmp.eq.s32.totalorder %s9, 3
    %p26 = por %p24, %p25
    %p27 = scmp.ne.s32.totalorder %s19, %s22
    %p28 = scmp.eq.s32.totalorder %s9, 0
    %p29 = por %p27, %p28
    %p30 = scmp.ne.s32.totalorder %s19, %s22
    %p31 = scmp.eq.s32.totalorder %s14, 3
    %p32 = por %p30, %p31
    %p33 = scmp.ne.s32.totalorder %s22, %s23
    %p34 = scmp.eq.s32.totalorder %s14, 0
    %p35 = por %p33, %p34
    %p36 = scmp.ne.s32.totalorder %s22, %s23
    %p37 = scmp.eq.s32.totalorder %s15, 3
    %p38 = por %p36, %p37
    %p40 = scmp.ne.s32.totalorder %s23, %s39
    %p41 = scmp.eq.s32.totalorder %s15, 0
    %p42 = por %p40, %p41
    %s43 = ssub.s32 %s9, %s16
    %p44 = scmp.eq.s32.totalorder %s43, 0
    %s46 = sadd.s32 %s45, 1
    %s47 = scalar_select %p44, %s45, %s46
    %p50 = pneg %p44
    %p51 = scmp.eq.s32.totalorder %s9, 3
    %p52 = por %p50, %p51
    %p53 = scmp.ne.s32.totalorder %s45, %s48
    %p54 = scmp.eq.s32.totalorder %s9, 0
    %p55 = por %p53, %p54
    %p56 = scmp.ne.s32.totalorder %s45, %s48
    %p57 = scmp.eq.s32.totalorder %s14, 3
    %p58 = por %p56, %p57
    %p59 = scmp.ne.s32.totalorder %s48, %s49
    %p60 = scmp.eq.s32.totalorder %s14, 0
    %p61 = por %p59, %p60
    %p62 = scmp.ne.s32.totalorder %s48, %s49
    %p63 = scmp.eq.s32.totalorder %s15, 3
    %p64 = por %p62, %p63
    %p66 = scmp.ne.s32.totalorder %s49, %s65
    %p67 = scmp.eq.s32.totalorder %s15, 0
    %p68 = por %p66, %p67
    %s69 = ssub.s32 %s9, %s16
    %p70 = scmp.eq.s32.totalorder %s69, 0
    %s72 = sadd.s32 %s71, 1
    %s73 = scalar_select %p70, %s71, %s72
    %p76 = pneg %p70
    %p77 = scmp.eq.s32.totalorder %s9, 3
    %p78 = por %p76, %p77
    %p79 = scmp.ne.s32.totalorder %s71, %s74
    %p80 = scmp.eq.s32.totalorder %s9, 0
    %p81 = por %p79, %p80
    %p82 = scmp.ne.s32.totalorder %s71, %s74
    %p83 = scmp.eq.s32.totalorder %s14, 3
    %p84 = por %p82, %p83
    %p85 = scmp.ne.s32.totalorder %s74, %s75
    %p86 = scmp.eq.s32.totalorder %s14, 0
    %p87 = por %p85, %p86
    %p88 = scmp.ne.s32.totalorder %s74, %s75
    %p89 = scmp.eq.s32.totalorder %s15, 3
    %p90 = por %p88, %p89
    %p92 = scmp.ne.s32.totalorder %s75, %s91
    %p93 = scmp.eq.s32.totalorder %s15, 0
    %p94 = por %p92, %p93
    %s95 = ssub.s32 %s9, %s16
    %p96 = scmp.eq.s32.totalorder %s95, 0
    %s98 = sadd.s32 %s97, 1
    %s99 = scalar_select %p96, %s97, %s98
    %p102 = pneg %p96
    %p103 = scmp.eq.s32.totalorder %s9, 3
    %p104 = por %p102, %p103
    %p105 = scmp.ne.s32.totalorder %s97, %s100
    %p106 = scmp.eq.s32.totalorder %s9, 0
    %p107 = por %p105, %p106
    %p108 = scmp.ne.s32.totalorder %s97, %s100
    %p109 = scmp.eq.s32.totalorder %s14, 3
    %p110 = por %p108, %p109
    %p111 = scmp.ne.s32.totalorder %s100, %s101
    %p112 = scmp.eq.s32.totalorder %s14, 0
    %p113 = por %p111, %p112
    %p114 = scmp.ne.s32.totalorder %s100, %s101
    %p115 = scmp.eq.s32.totalorder %s15, 3
    %p116 = por %p114, %p115
    %p118 = scmp.ne.s32.totalorder %s101, %s117
    %p119 = scmp.eq.s32.totalorder %s15, 0
    %p120 = por %p118, %p119
    %p121 = scmp.le.s32.totalorder 1, %s9
    %p122 = scmp.lt.s32.totalorder %s9, 5
    %p123 = pnand %p121, %p122
    %p124 = pneg %p123
    // Predicated region
    $region9: #{basic_text_transformer_block_3d.13} parent=5 // pred_check
      _
    $region10: #{basic_text_transformer_block_3d.13} parent=5 // pred_check_branch
      %126 = sbr.rel (%p123) target = $region12
    $region11: #{basic_text_transformer_block_3d.13} parent=5 // pred_region
      %s127 = ssub.s32 %s9, 1
    $region12: #{basic_text_transformer_block_3d.13} parent=5 // pred_fallthru
      _
    %p128 = scmp.lt.s32.totalorder %s9, 4
    // Predicated region
    $region13: #{basic_text_transformer_block_3d.13} parent=5 // pred_check
      %p129 = pneg %p128
    $region14: #{basic_text_transformer_block_3d.13} parent=5 // pred_check_branch
      %131 = sbr.rel (%p129) target = $region16
    $region15: #{basic_text_transformer_block_3d.13} parent=5 // pred_region
      // Predicated region
      $region17: #{basic_text_transformer_block_3d.13} parent=15 // pred_check
        %p132 = pneg %p29
      $region18: #{basic_text_transformer_block_3d.13} parent=15 // pred_check_branch
        %134 = sbr.rel (%p132) target = $region20
      $region19: #{basic_text_transformer_block_3d.13} parent=15 // pred_region
        %p135 = scmp.lt.s32.totalorder %s9, 3
        %s136 = scalar_select %p135, %s9, 3
        %s137 = smul.addr %s136, 2
        %s138 = smul.addr %s137, 8
        %s139 = scalar_lea.vmem %s0, %s138
      $region20: #{basic_text_transformer_block_3d.13} parent=15 // pred_fallthru
        _
      // Predicated region
      $region21: #{basic_text_transformer_block_3d.13} parent=15 // pred_check
        %p140 = pneg %p55
      $region22: #{basic_text_transformer_block_3d.13} parent=15 // pred_check_branch
        %142 = sbr.rel (%p140) target = $region24
      $region23: #{basic_text_transformer_block_3d.13} parent=15 // pred_region
        %p143 = scmp.lt.s32.totalorder %s9, 3
        %s144 = scalar_select %p143, %s9, 3
        %s145 = smul.addr %s144, 8
        %s146 = scalar_lea.vmem %s1, %s145
      $region24: #{basic_text_transformer_block_3d.13} parent=15 // pred_fallthru
        _
      // Predicated region
      $region25: #{basic_text_transformer_block_3d.13} parent=15 // pred_check
        %p147 = pneg %p81
      $region26: #{basic_text_transformer_block_3d.13} parent=15 // pred_check_branch
        %149 = sbr.rel (%p147) target = $region28
      $region27: #{basic_text_transformer_block_3d.13} parent=15 // pred_region
        %p150 = scmp.lt.s32.totalorder %s9, 3
        %s151 = scalar_select %p150, %s9, 3
        %s152 = smul.addr %s151, 8
        %s153 = scalar_lea.vmem %s2, %s152
      $region28: #{basic_text_transformer_block_3d.13} parent=15 // pred_fallthru
        _
    $region16: #{basic_text_transformer_block_3d.13} parent=5 // pred_fallthru
      _
    %p154 = scmp.le.s32.totalorder 1, %s9
    %p155 = scmp.lt.s32.totalorder %s9, 5
    %p156 = pnand %p154, %p155
    %p157 = pneg %p156
    // Predicated region
    $region29: #{basic_text_transformer_block_3d.13} parent=5 // pred_check
      _
    $region30: #{basic_text_transformer_block_3d.13} parent=5 // pred_check_branch
      %159 = sbr.rel (%p156) target = $region32
    $region31: #{basic_text_transformer_block_3d.13} parent=5 // pred_region
      %s160 = ssub.s32 %s9, 1
      %p161 = scmp.lt.s32.totalorder %s14, 3
      %s162 = scalar_select %p161, %s14, 3
      %s163 = smul.addr %s162, 2
      %s164 = smul.addr %s163, 8
      %s165 = scalar_lea.vmem %s0, %s164
      %p166 = pneg %p35
      %p167 = pneg %p32
      %p168 = scmp.lt.s32.totalorder %s14, 3
      %s169 = scalar_select %p168, %s14, 3
      %s170 = smul.addr %s169, 8
      %s171 = scalar_lea.vmem %s1, %s170
      %p172 = pneg %p61
      %p173 = pneg %p58
      %p174 = scmp.lt.s32.totalorder %s14, 3
      %s175 = scalar_select %p174, %s14, 3
      %s176 = smul.addr %s175, 8
      %s177 = scalar_lea.vmem %s2, %s176
      %p178 = pneg %p87
      %p179 = pneg %p84
      %p180 = pneg %p113
      %p181 = pneg %p110
      %p182 = scmp.lt.s32.totalorder %s14, 3
      %s183 = scalar_select %p182, %s14, 3
      %s184 = smul.addr %s183, 2
      %s185 = smul.addr %s184, 8
      %s186 = scalar_lea.vmem %s3, %s185
      %p187 = scmp.lt.s32.totalorder %s14, 3
      %s188 = scalar_select %p187, %s14, 3
      %s189 = smul.addr %s188, 2
      %s190 = smul.addr %s189, 8
      %s191 = scalar_lea.vmem %s0, %s190
      %p192 = scmp.lt.s32.totalorder %s14, 3
      %s193 = scalar_select %p192, %s14, 3
      %s194 = smul.addr %s193, 8
      %s195 = scalar_lea.vmem %s1, %s194
      %p196 = scmp.lt.s32.totalorder %s14, 3
      %s197 = scalar_select %p196, %s14, 3
      %s198 = smul.addr %s197, 8
      %s199 = scalar_lea.vmem %s2, %s198
      %p200 = scmp.lt.s32.totalorder %s14, 3
      %s201 = scalar_select %p200, %s14, 3
      %s202 = smul.addr %s201, 2
      %s203 = smul.addr %s202, 8
      %s204 = scalar_lea.vmem %s3, %s203
      %v206 = vld [vmem:[%s191] sm:$0xff]
      %v207 = vld [vmem:[%s191 + $0x8] sm:$0xff]
      %v208 = vpack.c.bf16 %v207, %v206
      %v209 = vld [vmem:[%s195] sm:$0xff]
      %v210 = vpack.c.bf16 %v209, %v209
      %v211 = vld [vmem:[%s199] sm:$0xff]
      %v212 = vpack.c.bf16 %v211, %v211
      %vm213 = vcmask 64512
      %v215 = vsel %vm213, %v208, 0
      %v218 = vsel %vm213, %v210, 0
      %220 = vmatprep.subr.bf16.mxu0 0
      %221 = vmatpush1.bf16.xpose.msra.mxu0 0
      %222 = vmatprep.subr.bf16.mxu0 0
      %223 = vmatpush1.bf16.xpose.msra.mxu0 0
      %224 = vmatprep.subr.bf16.mxu0 0
      %225 = vmatpush1.bf16.xpose.msra.mxu0 0
      %226 = vmatprep.subr.bf16.mxu0 0
      %227 = vmatpush1.bf16.xpose.msra.mxu0 0
      %228 = vmatprep.subr.bf16.mxu0 0
      %229 = vmatpush1.bf16.xpose.msra.mxu0 0
      %230 = vmatprep.subr.bf16.mxu0 0
      %231 = vmatpush1.bf16.xpose.msra.mxu0 0
      %232 = vmatprep.subr.bf16.mxu0 0
      %233 = vmatpush1.bf16.xpose.msra.mxu0 0
      %234 = vmatprep.subr.bf16.mxu0 0
      %235 = vmatpush1.bf16.xpose.msra.mxu0 %v218
      %236 = vmatprep.subr.bf16.mxu0 0
      %237 = vmatpush2.bf16.xpose.msra.mxu0 0
      %238 = vmatprep.subr.bf16.mxu0 0
      %239 = vmatpush2.bf16.xpose.msra.mxu0 0
      %240 = vmatprep.subr.bf16.mxu0 0
      %241 = vmatpush2.bf16.xpose.msra.mxu0 0
      %242 = vmatprep.subr.bf16.mxu0 0
      %243 = vmatpush2.bf16.xpose.msra.mxu0 0
      %244 = vmatprep.subr.bf16.mxu0 0
      %245 = vmatpush2.bf16.xpose.msra.mxu0 0
      %246 = vmatprep.subr.bf16.mxu0 0
      %247 = vmatpush2.bf16.xpose.msra.mxu0 0
      %248 = vmatprep.subr.bf16.mxu0 0
      %249 = vmatpush2.bf16.xpose.msra.mxu0 0
      %250 = vmatprep.subr.bf16.mxu0 0
      %251 = vmatpush2.bf16.xpose.msra.mxu0 0
      %252 = vmatprep.mubr.bf16.mxu0 0
      %253 = vmatmul.mubr.bf16.gmra.mxu0 %v215
      %v254 = vpop.f32.mrf.mxu0
      %v255 = vadd.f32 0.0, %v254
      %v256 = vpop.f32.mrf.mxu0
      %v257 = vpop.f32.mrf.mxu0
      %v258 = vadd.f32 0.0, %v257
      %v259 = vpop.f32.mrf.mxu0
      %260 = vdwg.mxu0
      %v261 = vmul.f32 %v255, 0.35355338
      %v262 = vmul.f32 %v258, 0.35355338
      %v263 = vsel %vm213, %v261, -inf
      %264 = vmax.xlane.f32.xlu0 %v263
      %v265 = vpop.xlane.xlu0 %264
      %v266 = vsel %vm213, %v262, -inf
      %267 = vmax.xlane.f32.xlu0 %v266
      %v268 = vpop.xlane.xlu0 %267
      %v269 = vsub.f32 %v261, %v265
      %v270 = vsub.f32 %v262, %v268
      %v271 = vmul.f32 %v269, 1.442695
      %v272 = vpow.pop %v271
      %v273 = vmul.f32 %v270, 1.442695
      %v274 = vpow.pop %v273
      %v275 = vsel %vm213, %v272, 0.0
      %276 = vadd.xlane.f32.xlu0 %v275
      %v277 = vpop.xlane.xlu0 %276
      %v278 = vsel %vm213, %v274, 0.0
      %279 = vadd.xlane.f32.xlu0 %v278
      %v280 = vpop.xlane.xlu0 %279
      %v281 = vrcp.pop %v277
      %v282 = vrcp.pop %v280
      %v283 = vmul.f32 %v272, %v281
      %v284 = vmul.f32 %v274, %v282
      %v285 = vpack.c.bf16 %v284, %v283
      %v287 = vsel %vm213, %v285, 0
      %vm289 = vcmask 1043456
      %v291 = vsel %vm289, %v212, 0
      %293 = vmatprep.subr.bf16.mxu0 0
      %294 = vmatpush1.bf16.msra.mxu0 0
      %295 = vmatprep.subr.bf16.mxu0 0
      %296 = vmatpush1.bf16.msra.mxu0 0
      %297 = vmatprep.subr.bf16.mxu0 0
      %298 = vmatpush1.bf16.msra.mxu0 0
      %299 = vmatprep.subr.bf16.mxu0 0
      %300 = vmatpush1.bf16.msra.mxu0 0
      %301 = vmatprep.subr.bf16.mxu0 0
      %302 = vmatpush1.bf16.msra.mxu0 0
      %303 = vmatprep.subr.bf16.mxu0 0
      %304 = vmatpush1.bf16.msra.mxu0 0
      %305 = vmatprep.subr.bf16.mxu0 0
      %306 = vmatpush1.bf16.msra.mxu0 0
      %307 = vmatprep.subr.bf16.mxu0 0
      %308 = vmatpush1.bf16.msra.mxu0 %v291
      %309 = vmatprep.subr.bf16.mxu0 0
      %310 = vmatpush2.bf16.msra.mxu0 0
      %311 = vmatprep.subr.bf16.mxu0 0
      %312 = vmatpush2.bf16.msra.mxu0 0
      %313 = vmatprep.subr.bf16.mxu0 0
      %314 = vmatpush2.bf16.msra.mxu0 0
      %315 = vmatprep.subr.bf16.mxu0 0
      %316 = vmatpush2.bf16.msra.mxu0 0
      %317 = vmatprep.subr.bf16.mxu0 0
      %318 = vmatpush2.bf16.msra.mxu0 0
      %319 = vmatprep.subr.bf16.mxu0 0
      %320 = vmatpush2.bf16.msra.mxu0 0
      %321 = vmatprep.subr.bf16.mxu0 0
      %322 = vmatpush2.bf16.msra.mxu0 0
      %323 = vmatprep.subr.bf16.mxu0 0
      %324 = vmatpush2.bf16.msra.mxu0 0
      %325 = vmatprep.mubr.bf16.mxu0 0
      %326 = vmatmul.mubr.bf16.gmra.mxu0 %v287
      %v327 = vpop.f32.mrf.mxu0
      %v328 = vadd.f32 0.0, %v327
      %v329 = vpop.f32.mrf.mxu0
      %v330 = vpop.f32.mrf.mxu0
      %v331 = vadd.f32 0.0, %v330
      %v332 = vpop.f32.mrf.mxu0
      %333 = vdwg.mxu0
      %334 = vst.msk [vmem:[%s204] sm:$0xff] %vm213, %v328
      %335 = vst.msk [vmem:[%s204 + $0x8] sm:$0xff] %vm213, %v331
      %v336 = vld [vmem:[%s191] sm:$0xff]
      %v337 = vld [vmem:[%s191 + $0x8] sm:$0xff]
      %v338 = vpack.c.bf16 %v337, %v336
      %v339 = vld [vmem:[%s195] sm:$0xff]
      %v340 = vpack.c.bf16 %v339, %v339
      %v341 = vld [vmem:[%s199] sm:$0xff]
      %v342 = vpack.c.bf16 %v341, %v341
      %344 = vrot.lane.b32.xlu0 %v338, 120
      %v345 = vpop.permute.xlu0 %344
      %347 = vrot.lane.b32.xlu0 %v340, 120
      %v348 = vpop.permute.xlu0 %347
      %v350 = vsel %vm213, %v345, 0
      %v353 = vsel %vm213, %v348, 0
      %355 = vmatprep.subr.bf16.mxu0 0
      %356 = vmatpush1.bf16.xpose.msra.mxu0 0
      %357 = vmatprep.subr.bf16.mxu0 0
      %358 = vmatpush1.bf16.xpose.msra.mxu0 0
      %359 = vmatprep.subr.bf16.mxu0 0
      %360 = vmatpush1.bf16.xpose.msra.mxu0 0
      %361 = vmatprep.subr.bf16.mxu0 0
      %362 = vmatpush1.bf16.xpose.msra.mxu0 0
      %363 = vmatprep.subr.bf16.mxu0 0
      %364 = vmatpush1.bf16.xpose.msra.mxu0 0
      %365 = vmatprep.subr.bf16.mxu0 0
      %366 = vmatpush1.bf16.xpose.msra.mxu0 0
      %367 = vmatprep.subr.bf16.mxu0 0
      %368 = vmatpush1.bf16.xpose.msra.mxu0 0
      %369 = vmatprep.subr.bf16.mxu0 0
      %370 = vmatpush1.bf16.xpose.msra.mxu0 %v353
      %371 = vmatprep.subr.bf16.mxu0 0
      %372 = vmatpush2.bf16.xpose.msra.mxu0 0
      %373 = vmatprep.subr.bf16.mxu0 0
      %374 = vmatpush2.bf16.xpose.msra.mxu0 0
      %375 = vmatprep.subr.bf16.mxu0 0
      %376 = vmatpush2.bf16.xpose.msra.mxu0 0
      %377 = vmatprep.subr.bf16.mxu0 0
      %378 = vmatpush2.bf16.xpose.msra.mxu0 0
      %379 = vmatprep.subr.bf16.mxu0 0
      %380 = vmatpush2.bf16.xpose.msra.mxu0 0
      %381 = vmatprep.subr.bf16.mxu0 0
      %382 = vmatpush2.bf16.xpose.msra.mxu0 0
      %383 = vmatprep.subr.bf16.mxu0 0
      %384 = vmatpush2.bf16.xpose.msra.mxu0 0
      %385 = vmatprep.subr.bf16.mxu0 0
      %386 = vmatpush2.bf16.xpose.msra.mxu0 0
      %387 = vmatprep.mubr.bf16.mxu0 0
      %388 = vmatmul.mubr.bf16.gmra.mxu0 %v350
      %v389 = vpop.f32.mrf.mxu0
      %v390 = vadd.f32 0.0, %v389
      %v391 = vpop.f32.mrf.mxu0
      %v392 = vpop.f32.mrf.mxu0
      %v393 = vadd.f32 0.0, %v392
      %v394 = vpop.f32.mrf.mxu0
      %395 = vdwg.mxu0
      %v396 = vmul.f32 %v390, 0.35355338
      %v397 = vmul.f32 %v393, 0.35355338
      %v398 = vsel %vm213, %v396, -inf
      %399 = vmax.xlane.f32.xlu0 %v398
      %v400 = vpop.xlane.xlu0 %399
      %v401 = vsel %vm213, %v397, -inf
      %402 = vmax.xlane.f32.xlu0 %v401
      %v403 = vpop.xlane.xlu0 %402
      %v404 = vsub.f32 %v396, %v400
      %v405 = vsub.f32 %v397, %v403
      %v406 = vmul.f32 %v404, 1.442695
      %v407 = vpow.pop %v406
      %v408 = vmul.f32 %v405, 1.442695
      %v409 = vpow.pop %v408
      %v410 = vsel %vm213, %v407, 0.0
      %411 = vadd.xlane.f32.xlu0 %v410
      %v412 = vpop.xlane.xlu0 %411
      %v413 = vsel %vm213, %v409, 0.0
      %414 = vadd.xlane.f32.xlu0 %v413
      %v415 = vpop.xlane.xlu0 %414
      %v416 = vrcp.pop %v412
      %v417 = vrcp.pop %v415
      %v418 = vmul.f32 %v407, %v416
      %v419 = vmul.f32 %v409, %v417
      %v420 = vpack.c.bf16 %v419, %v418
      %422 = vrot.lane.b32.xlu0 %v342, 120
      %v423 = vpop.permute.xlu0 %422
      %v425 = vsel %vm213, %v420, 0
      %v428 = vsel %vm289, %v423, 0
      %430 = vmatprep.subr.bf16.mxu0 0
      %431 = vmatpush1.bf16.msra.mxu0 0
      %432 = vmatprep.subr.bf16.mxu0 0
      %433 = vmatpush1.bf16.msra.mxu0 0
      %434 = vmatprep.subr.bf16.mxu0 0
      %435 = vmatpush1.bf16.msra.mxu0 0
      %436 = vmatprep.subr.bf16.mxu0 0
      %437 = vmatpush1.bf16.msra.mxu0 0
      %438 = vmatprep.subr.bf16.mxu0 0
      %439 = vmatpush1.bf16.msra.mxu0 0
      %440 = vmatprep.subr.bf16.mxu0 0
      %441 = vmatpush1.bf16.msra.mxu0 0
      %442 = vmatprep.subr.bf16.mxu0 0
      %443 = vmatpush1.bf16.msra.mxu0 0
      %444 = vmatprep.subr.bf16.mxu0 0
      %445 = vmatpush1.bf16.msra.mxu0 %v428
      %446 = vmatprep.subr.bf16.mxu0 0
      %447 = vmatpush2.bf16.msra.mxu0 0
      %448 = vmatprep.subr.bf16.mxu0 0
      %449 = vmatpush2.bf16.msra.mxu0 0
      %450 = vmatprep.subr.bf16.mxu0 0
      %451 = vmatpush2.bf16.msra.mxu0 0
      %452 = vmatprep.subr.bf16.mxu0 0
      %453 = vmatpush2.bf16.msra.mxu0 0
      %454 = vmatprep.subr.bf16.mxu0 0
      %455 = vmatpush2.bf16.msra.mxu0 0
      %456 = vmatprep.subr.bf16.mxu0 0
      %457 = vmatpush2.bf16.msra.mxu0 0
      %458 = vmatprep.subr.bf16.mxu0 0
      %459 = vmatpush2.bf16.msra.mxu0 0
      %460 = vmatprep.subr.bf16.mxu0 0
      %461 = vmatpush2.bf16.msra.mxu0 0
      %462 = vmatprep.mubr.bf16.mxu0 0
      %463 = vmatmul.mubr.bf16.gmra.mxu0 %v425
      %v464 = vpop.f32.mrf.mxu0
      %v465 = vadd.f32 0.0, %v464
      %v466 = vpop.f32.mrf.mxu0
      %v467 = vpop.f32.mrf.mxu0
      %v468 = vadd.f32 0.0, %v467
      %v469 = vpop.f32.mrf.mxu0
      %470 = vdwg.mxu0
      %473 = vrot.lane.b32.xlu0 %v465, 8
      %v474 = vpop.permute.xlu0 %473
      %475 = vrot.lane.b32.xlu0 %v468, 8
      %v476 = vpop.permute.xlu0 %475
      %vm479 = vcmask 130112
      %480 = vst.msk [vmem:[%s204] sm:$0xff] %vm479, %v474
      %481 = vst.msk [vmem:[%s204 + $0x8] sm:$0xff] %vm479, %v476
      %v482 = vld [vmem:[%s191] sm:$0xff]
      %v483 = vld [vmem:[%s191 + $0x8] sm:$0xff]
      %v484 = vpack.c.bf16 %v483, %v482
      %v485 = vld [vmem:[%s195] sm:$0xff]
      %v486 = vpack.c.bf16 %v485, %v485
      %v487 = vld [vmem:[%s199] sm:$0xff]
      %v488 = vpack.c.bf16 %v487, %v487
      %490 = vrot.lane.b32.xlu0 %v484, 112
      %v491 = vpop.permute.xlu0 %490
      %493 = vrot.lane.b32.xlu0 %v486, 112
      %v494 = vpop.permute.xlu0 %493
      %v496 = vsel %vm213, %v491, 0
      %v499 = vsel %vm213, %v494, 0
      %501 = vmatprep.subr.bf16.mxu0 0
      %502 = vmatpush1.bf16.xpose.msra.mxu0 0
      %503 = vmatprep.subr.bf16.mxu0 0
      %504 = vmatpush1.bf16.xpose.msra.mxu0 0
      %505 = vmatprep.subr.bf16.mxu0 0
      %506 = vmatpush1.bf16.xpose.msra.mxu0 0
      %507 = vmatprep.subr.bf16.mxu0 0
      %508 = vmatpush1.bf16.xpose.msra.mxu0 0
      %509 = vmatprep.subr.bf16.mxu0 0
      %510 = vmatpush1.bf16.xpose.msra.mxu0 0
      %511 = vmatprep.subr.bf16.mxu0 0
      %512 = vmatpush1.bf16.xpose.msra.mxu0 0
      %513 = vmatprep.subr.bf16.mxu0 0
      %514 = vmatpush1.bf16.xpose.msra.mxu0 0
      %515 = vmatprep.subr.bf16.mxu0 0
      %516 = vmatpush1.bf16.xpose.msra.mxu0 %v499
      %517 = vmatprep.subr.bf16.mxu0 0
      %518 = vmatpush2.bf16.xpose.msra.mxu0 0
      %519 = vmatprep.subr.bf16.mxu0 0
      %520 = vmatpush2.bf16.xpose.msra.mxu0 0
      %521 = vmatprep.subr.bf16.mxu0 0
      %522 = vmatpush2.bf16.xpose.msra.mxu0 0
      %523 = vmatprep.subr.bf16.mxu0 0
      %524 = vmatpush2.bf16.xpose.msra.mxu0 0
      %525 = vmatprep.subr.bf16.mxu0 0
      %526 = vmatpush2.bf16.xpose.msra.mxu0 0
      %527 = vmatprep.subr.bf16.mxu0 0
      %528 = vmatpush2.bf16.xpose.msra.mxu0 0
      %529 = vmatprep.subr.bf16.mxu0 0
      %530 = vmatpush2.bf16.xpose.msra.mxu0 0
      %531 = vmatprep.subr.bf16.mxu0 0
      %532 = vmatpush2.bf16.xpose.msra.mxu0 0
      %533 = vmatprep.mubr.bf16.mxu0 0
      %534 = vmatmul.mubr.bf16.gmra.mxu0 %v496
      %v535 = vpop.f32.mrf.mxu0
      %v536 = vadd.f32 0.0, %v535
      %v537 = vpop.f32.mrf.mxu0
      %v538 = vpop.f32.mrf.mxu0
      %v539 = vadd.f32 0.0, %v538
      %v540 = vpop.f32.mrf.mxu0
      %541 = vdwg.mxu0
      %v542 = vmul.f32 %v536, 0.35355338
      %v543 = vmul.f32 %v539, 0.35355338
      %v544 = vsel %vm213, %v542, -inf
      %545 = vmax.xlane.f32.xlu0 %v544
      %v546 = vpop.xlane.xlu0 %545
      %v547 = vsel %vm213, %v543, -inf
      %548 = vmax.xlane.f32.xlu0 %v547
      %v549 = vpop.xlane.xlu0 %548
      %v550 = vsub.f32 %v542, %v546
      %v551 = vsub.f32 %v543, %v549
      %v552 = vmul.f32 %v550, 1.442695
      %v553 = vpow.pop %v552
      %v554 = vmul.f32 %v551, 1.442695
      %v555 = vpow.pop %v554
      %v556 = vsel %vm213, %v553, 0.0
      %557 = vadd.xlane.f32.xlu0 %v556
      %v558 = vpop.xlane.xlu0 %557
      %v559 = vsel %vm213, %v555, 0.0
      %560 = vadd.xlane.f32.xlu0 %v559
      %v561 = vpop.xlane.xlu0 %560
      %v562 = vrcp.pop %v558
      %v563 = vrcp.pop %v561
      %v564 = vmul.f32 %v553, %v562
      %v565 = vmul.f32 %v555, %v563
      %v566 = vpack.c.bf16 %v565, %v564
      %568 = vrot.lane.b32.xlu0 %v488, 112
      %v569 = vpop.permute.xlu0 %568
      %v571 = vsel %vm213, %v566, 0
      %v574 = vsel %vm289, %v569, 0
      %576 = vmatprep.subr.bf16.mxu0 0
      %577 = vmatpush1.bf16.msra.mxu0 0
      %578 = vmatprep.subr.bf16.mxu0 0
      %579 = vmatpush1.bf16.msra.mxu0 0
      %580 = vmatprep.subr.bf16.mxu0 0
      %581 = vmatpush1.bf16.msra.mxu0 0
      %582 = vmatprep.subr.bf16.mxu0 0
      %583 = vmatpush1.bf16.msra.mxu0 0
      %584 = vmatprep.subr.bf16.mxu0 0
      %585 = vmatpush1.bf16.msra.mxu0 0
      %586 = vmatprep.subr.bf16.mxu0 0
      %587 = vmatpush1.bf16.msra.mxu0 0
      %588 = vmatprep.subr.bf16.mxu0 0
      %589 = vmatpush1.bf16.msra.mxu0 0
      %590 = vmatprep.subr.bf16.mxu0 0
      %591 = vmatpush1.bf16.msra.mxu0 %v574
      %592 = vmatprep.subr.bf16.mxu0 0
      %593 = vmatpush2.bf16.msra.mxu0 0
      %594 = vmatprep.subr.bf16.mxu0 0
      %595 = vmatpush2.bf16.msra.mxu0 0
      %596 = vmatprep.subr.bf16.mxu0 0
      %597 = vmatpush2.bf16.msra.mxu0 0
      %598 = vmatprep.subr.bf16.mxu0 0
      %599 = vmatpush2.bf16.msra.mxu0 0
      %600 = vmatprep.subr.bf16.mxu0 0
      %601 = vmatpush2.bf16.msra.mxu0 0
      %602 = vmatprep.subr.bf16.mxu0 0
      %603 = vmatpush2.bf16.msra.mxu0 0
      %604 = vmatprep.subr.bf16.mxu0 0
      %605 = vmatpush2.bf16.msra.mxu0 0
      %606 = vmatprep.subr.bf16.mxu0 0
      %607 = vmatpush2.bf16.msra.mxu0 0
      %608 = vmatprep.mubr.bf16.mxu0 0
      %609 = vmatmul.mubr.bf16.gmra.mxu0 %v571
      %v610 = vpop.f32.mrf.mxu0
      %v611 = vadd.f32 0.0, %v610
      %v612 = vpop.f32.mrf.mxu0
      %v613 = vpop.f32.mrf.mxu0
      %v614 = vadd.f32 0.0, %v613
      %v615 = vpop.f32.mrf.mxu0
      %616 = vdwg.mxu0
      %619 = vrot.lane.b32.xlu0 %v611, 16
      %v620 = vpop.permute.xlu0 %619
      %621 = vrot.lane.b32.xlu0 %v614, 16
      %v622 = vpop.permute.xlu0 %621
      %vm625 = vcmask 195712
      %626 = vst.msk [vmem:[%s204] sm:$0xff] %vm625, %v620
      %627 = vst.msk [vmem:[%s204 + $0x8] sm:$0xff] %vm625, %v622
      %v628 = vld [vmem:[%s191] sm:$0xff]
      %v629 = vld [vmem:[%s191 + $0x8] sm:$0xff]
      %v630 = vpack.c.bf16 %v629, %v628
      %v631 = vld [vmem:[%s195] sm:$0xff]
      %v632 = vpack.c.bf16 %v631, %v631
      %v633 = vld [vmem:[%s199] sm:$0xff]
      %v634 = vpack.c.bf16 %v633, %v633
      %636 = vrot.lane.b32.xlu0 %v630, 104
      %v637 = vpop.permute.xlu0 %636
      %639 = vrot.lane.b32.xlu0 %v632, 104
      %v640 = vpop.permute.xlu0 %639
      %v642 = vsel %vm213, %v637, 0
      %v645 = vsel %vm213, %v640, 0
      %647 = vmatprep.subr.bf16.mxu0 0
      %648 = vmatpush1.bf16.xpose.msra.mxu0 0
      %649 = vmatprep.subr.bf16.mxu0 0
      %650 = vmatpush1.bf16.xpose.msra.mxu0 0
      %651 = vmatprep.subr.bf16.mxu0 0
      %652 = vmatpush1.bf16.xpose.msra.mxu0 0
      %653 = vmatprep.subr.bf16.mxu0 0
      %654 = vmatpush1.bf16.xpose.msra.mxu0 0
      %655 = vmatprep.subr.bf16.mxu0 0
      %656 = vmatpush1.bf16.xpose.msra.mxu0 0
      %657 = vmatprep.subr.bf16.mxu0 0
      %658 = vmatpush1.bf16.xpose.msra.mxu0 0
      %659 = vmatprep.subr.bf16.mxu0 0
      %660 = vmatpush1.bf16.xpose.msra.mxu0 0
      %661 = vmatprep.subr.bf16.mxu0 0
      %662 = vmatpush1.bf16.xpose.msra.mxu0 %v645
      %663 = vmatprep.subr.bf16.mxu0 0
      %664 = vmatpush2.bf16.xpose.msra.mxu0 0
      %665 = vmatprep.subr.bf16.mxu0 0
      %666 = vmatpush2.bf16.xpose.msra.mxu0 0
      %667 = vmatprep.subr.bf16.mxu0 0
      %668 = vmatpush2.bf16.xpose.msra.mxu0 0
      %669 = vmatprep.subr.bf16.mxu0 0
      %670 = vmatpush2.bf16.xpose.msra.mxu0 0
      %671 = vmatprep.subr.bf16.mxu0 0
      %672 = vmatpush2.bf16.xpose.msra.mxu0 0
      %673 = vmatprep.subr.bf16.mxu0 0
      %674 = vmatpush2.bf16.xpose.msra.mxu0 0
      %675 = vmatprep.subr.bf16.mxu0 0
      %676 = vmatpush2.bf16.xpose.msra.mxu0 0
      %677 = vmatprep.subr.bf16.mxu0 0
      %678 = vmatpush2.bf16.xpose.msra.mxu0 0
      %679 = vmatprep.mubr.bf16.mxu0 0
      %680 = vmatmul.mubr.bf16.gmra.mxu0 %v642
      %v681 = vpop.f32.mrf.mxu0
      %v682 = vadd.f32 0.0, %v681
      %v683 = vpop.f32.mrf.mxu0
      %v684 = vpop.f32.mrf.mxu0
      %v685 = vadd.f32 0.0, %v684
      %v686 = vpop.f32.mrf.mxu0
      %687 = vdwg.mxu0
      %v688 = vmul.f32 %v682, 0.35355338
      %v689 = vmul.f32 %v685, 0.35355338
      %v690 = vsel %vm213, %v688, -inf
      %691 = vmax.xlane.f32.xlu0 %v690
      %v692 = vpop.xlane.xlu0 %691
      %v693 = vsel %vm213, %v689, -inf
      %694 = vmax.xlane.f32.xlu0 %v693
      %v695 = vpop.xlane.xlu0 %694
      %v696 = vsub.f32 %v688, %v692
      %v697 = vsub.f32 %v689, %v695
      %v698 = vmul.f32 %v696, 1.442695
      %v699 = vpow.pop %v698
      %v700 = vmul.f32 %v697, 1.442695
      %v701 = vpow.pop %v700
      %v702 = vsel %vm213, %v699, 0.0
      %703 = vadd.xlane.f32.xlu0 %v702
      %v704 = vpop.xlane.xlu0 %703
      %v705 = vsel %vm213, %v701, 0.0
      %706 = vadd.xlane.f32.xlu0 %v705
      %v707 = vpop.xlane.xlu0 %706
      %v708 = vrcp.pop %v704
      %v709 = vrcp.pop %v707
      %v710 = vmul.f32 %v699, %v708
      %v711 = vmul.f32 %v701, %v709
      %v712 = vpack.c.bf16 %v711, %v710
      %714 = vrot.lane.b32.xlu0 %v634, 104
      %v715 = vpop.permute.xlu0 %714
      %v717 = vsel %vm213, %v712, 0
      %v720 = vsel %vm289, %v715, 0
      %722 = vmatprep.subr.bf16.mxu0 0
      %723 = vmatpush1.bf16.msra.mxu0 0
      %724 = vmatprep.subr.bf16.mxu0 0
      %725 = vmatpush1.bf16.msra.mxu0 0
      %726 = vmatprep.subr.bf16.mxu0 0
      %727 = vmatpush1.bf16.msra.mxu0 0
      %728 = vmatprep.subr.bf16.mxu0 0
      %729 = vmatpush1.bf16.msra.mxu0 0
      %730 = vmatprep.subr.bf16.mxu0 0
      %731 = vmatpush1.bf16.msra.mxu0 0
      %732 = vmatprep.subr.bf16.mxu0 0
      %733 = vmatpush1.bf16.msra.mxu0 0
      %734 = vmatprep.subr.bf16.mxu0 0
      %735 = vmatpush1.bf16.msra.mxu0 0
      %736 = vmatprep.subr.bf16.mxu0 0
      %737 = vmatpush1.bf16.msra.mxu0 %v720
      %738 = vmatprep.subr.bf16.mxu0 0
      %739 = vmatpush2.bf16.msra.mxu0 0
      %740 = vmatprep.subr.bf16.mxu0 0
      %741 = vmatpush2.bf16.msra.mxu0 0
      %742 = vmatprep.subr.bf16.mxu0 0
      %743 = vmatpush2.bf16.msra.mxu0 0
      %744 = vmatprep.subr.bf16.mxu0 0
      %745 = vmatpush2.bf16.msra.mxu0 0
      %746 = vmatprep.subr.bf16.mxu0 0
      %747 = vmatpush2.bf16.msra.mxu0 0
      %748 = vmatprep.subr.bf16.mxu0 0
      %749 = vmatpush2.bf16.msra.mxu0 0
      %750 = vmatprep.subr.bf16.mxu0 0
      %751 = vmatpush2.bf16.msra.mxu0 0
      %752 = vmatprep.subr.bf16.mxu0 0
      %753 = vmatpush2.bf16.msra.mxu0 0
      %754 = vmatprep.mubr.bf16.mxu0 0
      %755 = vmatmul.mubr.bf16.gmra.mxu0 %v717
      %v756 = vpop.f32.mrf.mxu0
      %v757 = vadd.f32 0.0, %v756
      %v758 = vpop.f32.mrf.mxu0
      %v759 = vpop.f32.mrf.mxu0
      %v760 = vadd.f32 0.0, %v759
      %v761 = vpop.f32.mrf.mxu0
      %762 = vdwg.mxu0
      %765 = vrot.lane.b32.xlu0 %v757, 24
      %v766 = vpop.permute.xlu0 %765
      %767 = vrot.lane.b32.xlu0 %v760, 24
      %v768 = vpop.permute.xlu0 %767
      %vm771 = vcmask 261312
      %772 = vst.msk [vmem:[%s204] sm:$0xff] %vm771, %v766
      %773 = vst.msk [vmem:[%s204 + $0x8] sm:$0xff] %vm771, %v768
      %p774 = scmp.lt.s32.totalorder %s14, 3
      %s775 = scalar_select %p774, %s14, 3
      %s776 = smul.addr %s775, 2
      %s777 = smul.addr %s776, 8
      %s778 = scalar_lea.vmem %s3, %s777
      // Predicated region
      $region33: #{basic_text_transformer_block_3d.13} parent=31 // pred_check
        %p779 = pneg %p110
      $region34: #{basic_text_transformer_block_3d.13} parent=31 // pred_check_branch
        %781 = sbr.rel (%p779) target = $region36
      $region35: #{basic_text_transformer_block_3d.13} parent=31 // pred_region
        _
      $region36: #{basic_text_transformer_block_3d.13} parent=31 // pred_fallthru
        _
    $region32: #{basic_text_transformer_block_3d.13} parent=5 // pred_fallthru
      _
    %p782 = scmp.le.s32.totalorder 2, %s9
    // Predicated region
    $region37: #{basic_text_transformer_block_3d.13} parent=5 // pred_check
      %p783 = pneg %p782
    $region38: #{basic_text_transformer_block_3d.13} parent=5 // pred_check_branch
      %785 = sbr.rel (%p783) target = $region40
    $region39: #{basic_text_transformer_block_3d.13} parent=5 // pred_region
      %s786 = ssub.s32 %s9, 2
      // Predicated region
      $region41: #{basic_text_transformer_block_3d.13} parent=39 // pred_check
        %p787 = pneg %p116
      $region42: #{basic_text_transformer_block_3d.13} parent=39 // pred_check_branch
        %789 = sbr.rel (%p787) target = $region44
      $region43: #{basic_text_transformer_block_3d.13} parent=39 // pred_region
        %p790 = scmp.lt.s32.totalorder %s15, 3
        %s791 = scalar_select %p790, %s15, 3
        %s792 = smul.addr %s791, 2
        %s793 = smul.addr %s792, 8
        %s794 = scalar_lea.vmem %s3, %s793
      $region44: #{basic_text_transformer_block_3d.13} parent=39 // pred_fallthru
        _
    $region40: #{basic_text_transformer_block_3d.13} parent=5 // pred_fallthru
      _
  $region6: #{basic_text_transformer_block_3d.13} parent=0 // loop_footer
    %s13 = sadd.s32 1, %s9
  $region7: #{basic_text_transformer_block_3d.13} parent=0 // loop_footer_branch
    %8 = sbr.rel target = $region3
  $region8: #{basic_text_transformer_block_3d.13} parent=0 // loop_exit
    _

// kernel: basic_text_transformer_block_3d.12
$region0: #{basic_text_transformer_block_3d.12}
  #allocation0 [shape = 'u32[]', space=smem, size = 0x4, offset = 0x4, fixed_abs, tag = 'smem constant byte address 0x4 - core index']
  #allocation1 [shape = 'u32[144,128]{1,0:T(1,128)}', space=vmem, size = 0x12000, scoped, tag = 'internal scratch']
  %s0 = inlined_call_operand.vmem [shape: f32[32,16], index: 0, kind: input, shape index: {}]
  %s1 = inlined_call_operand.vmem [shape: f32[16,64], index: 1, kind: input, shape index: {}]
  %s2 = inlined_call_operand.vmem [shape: f32[32,32], index: 2, kind: output, shape index: {0}]
  %s3 = inlined_call_operand.vmem [shape: f32[32,32], index: 3, kind: output, shape index: {1}]
  %4 = xla_tuple %s2, %s3
  %s5 = sld [smem:[#allocation0]]
  $region26: #{basic_text_transformer_block_3d.12} parent=0
    _
  %s7 = ssub.s32 1, %s5
  %s8 = scalar_select 0, %s7, %s5
  // Predicated region
  $region2: #{basic_text_transformer_block_3d.12} parent=0 // pred_check
    _
  $region3: #{basic_text_transformer_block_3d.12} parent=0 // pred_check_branch
    %10 = sbr.rel (0) target = $region5
  $region4: #{basic_text_transformer_block_3d.12} parent=0 // pred_region
    _
  $region5: #{basic_text_transformer_block_3d.12} parent=0 // pred_fallthru
    _
  // Predicated region
  $region6: #{basic_text_transformer_block_3d.12} parent=0 // pred_check
    _
  $region7: #{basic_text_transformer_block_3d.12} parent=0 // pred_check_branch
    %12 = sbr.rel (0) target = $region9
  $region8: #{basic_text_transformer_block_3d.12} parent=0 // pred_region
    _
  $region9: #{basic_text_transformer_block_3d.12} parent=0 // pred_fallthru
    _
  %v14 = vld [vmem:[%s0] sm:$0xff]
  %v15 = vld [vmem:[%s0 + $0x8] sm:$0xff]
  %v16 = vld [vmem:[%s0 + $0x10] sm:$0xff]
  %v17 = vld [vmem:[%s0 + $0x18] sm:$0xff]
  %v18 = vpack.c.bf16 %v15, %v14
  %v19 = vpack.c.bf16 %v17, %v16
  %v20 = vld [vmem:[%s1] sm:$0xff]
  %v21 = vld [vmem:[%s1 + $0x8] sm:$0xff]
  %v22 = vpack.c.bf16 %v21, %v20
  %vm23 = vcmask 130048
  %v25 = vsel %vm23, %v18, 0
  %v28 = vsel %vm23, %v19, 0
  %30 = vmatprep.subr.bf16.mxu0 0
  %31 = vmatpush1.bf16.msra.mxu0 0
  %32 = vmatprep.subr.bf16.mxu0 0
  %33 = vmatpush1.bf16.msra.mxu0 0
  %34 = vmatprep.subr.bf16.mxu0 0
  %35 = vmatpush1.bf16.msra.mxu0 0
  %36 = vmatprep.subr.bf16.mxu0 0
  %37 = vmatpush1.bf16.msra.mxu0 0
  %38 = vmatprep.subr.bf16.mxu0 0
  %39 = vmatpush1.bf16.msra.mxu0 0
  %40 = vmatprep.subr.bf16.mxu0 0
  %41 = vmatpush1.bf16.msra.mxu0 0
  %42 = vmatprep.subr.bf16.mxu0 0
  %43 = vmatpush1.bf16.msra.mxu0 0
  %44 = vmatprep.subr.bf16.mxu0 0
  %45 = vmatpush1.bf16.msra.mxu0 %v22
  %46 = vmatprep.subr.bf16.mxu0 0
  %47 = vmatpush2.bf16.msra.mxu0 0
  %48 = vmatprep.subr.bf16.mxu0 0
  %49 = vmatpush2.bf16.msra.mxu0 0
  %50 = vmatprep.subr.bf16.mxu0 0
  %51 = vmatpush2.bf16.msra.mxu0 0
  %52 = vmatprep.subr.bf16.mxu0 0
  %53 = vmatpush2.bf16.msra.mxu0 0
  %54 = vmatprep.subr.bf16.mxu0 0
  %55 = vmatpush2.bf16.msra.mxu0 0
  %56 = vmatprep.subr.bf16.mxu0 0
  %57 = vmatpush2.bf16.msra.mxu0 0
  %58 = vmatprep.subr.bf16.mxu0 0
  %59 = vmatpush2.bf16.msra.mxu0 0
  %60 = vmatprep.subr.bf16.mxu0 0
  %61 = vmatpush2.bf16.msra.mxu0 0
  %62 = vmatprep.mubr.bf16.mxu0 0
  %63 = vmatmul.mubr.bf16.gmra.mxu0 %v25
  %v64 = vpop.f32.mrf.mxu0
  %v65 = vadd.f32 0.0, %v64
  %v66 = vpop.f32.mrf.mxu0
  %v67 = vpop.f32.mrf.mxu0
  %v68 = vadd.f32 0.0, %v67
  %v69 = vpop.f32.mrf.mxu0
  %70 = vmatprep.mubr.bf16.mxu0 0
  %71 = vmatmul.mubr.bf16.gmra.mxu0 %v28
  %v72 = vpop.f32.mrf.mxu0
  %v73 = vadd.f32 0.0, %v72
  %v74 = vpop.f32.mrf.mxu0
  %v75 = vpop.f32.mrf.mxu0
  %v76 = vadd.f32 0.0, %v75
  %v77 = vpop.f32.mrf.mxu0
  %78 = vdwg.mxu0
  %vm79 = vcmask 261120
  %80 = vst.msk [vmem:[%s2] sm:$0xff] %vm79, %v65
  %81 = vst.msk [vmem:[%s2 + $0x8] sm:$0xff] %vm79, %v68
  %82 = vst.msk [vmem:[%s2 + $0x10] sm:$0xff] %vm79, %v73
  %83 = vst.msk [vmem:[%s2 + $0x18] sm:$0xff] %vm79, %v76
  %88 = vrot.lane.b32.xlu0 %v65, 96
  %v89 = vpop.permute.xlu0 %88
  %90 = vrot.lane.b32.xlu0 %v68, 96
  %v91 = vpop.permute.xlu0 %90
  %92 = vrot.lane.b32.xlu0 %v73, 96
  %v93 = vpop.permute.xlu0 %92
  %94 = vrot.lane.b32.xlu0 %v76, 96
  %v95 = vpop.permute.xlu0 %94
  %100 = vst.msk [vmem:[%s3] sm:$0xff] %vm79, %v89
  %101 = vst.msk [vmem:[%s3 + $0x8] sm:$0xff] %vm79, %v91
  %102 = vst.msk [vmem:[%s3 + $0x10] sm:$0xff] %vm79, %v93
  %103 = vst.msk [vmem:[%s3 + $0x18] sm:$0xff] %vm79, %v95
  // Predicated region
  $region10: #{basic_text_transformer_block_3d.12} parent=0 // pred_check
    _
  $region11: #{basic_text_transformer_block_3d.12} parent=0 // pred_check_branch
    %105 = sbr.rel (0) target = $region13
  $region12: #{basic_text_transformer_block_3d.12} parent=0 // pred_region
    _
  $region13: #{basic_text_transformer_block_3d.12} parent=0 // pred_fallthru
    _
  // Predicated region
  $region14: #{basic_text_transformer_block_3d.12} parent=0 // pred_check
    _
  $region15: #{basic_text_transformer_block_3d.12} parent=0 // pred_check_branch
    %107 = sbr.rel (0) target = $region17
  $region16: #{basic_text_transformer_block_3d.12} parent=0 // pred_region
    _
  $region17: #{basic_text_transformer_block_3d.12} parent=0 // pred_fallthru
    _
  // Predicated region
  $region18: #{basic_text_transformer_block_3d.12} parent=0 // pred_check
    _
  $region19: #{basic_text_transformer_block_3d.12} parent=0 // pred_check_branch
    %109 = sbr.rel (0) target = $region21
  $region20: #{basic_text_transformer_block_3d.12} parent=0 // pred_region
    _
  $region21: #{basic_text_transformer_block_3d.12} parent=0 // pred_fallthru
    _
  // Predicated region
  $region22: #{basic_text_transformer_block_3d.12} parent=0 // pred_check
    _
  $region23: #{basic_text_transformer_block_3d.12} parent=0 // pred_check_branch
    %111 = sbr.rel (0) target = $region25
  $region24: #{basic_text_transformer_block_3d.12} parent=0 // pred_region
    _
  $region25: #{basic_text_transformer_block_3d.12} parent=0 // pred_fallthru
    _

// kernel: basic_text_transformer_block_3d.15
$region0: #{basic_text_transformer_block_3d.15}
  #allocation0 [shape = 'u32[]', space=smem, size = 0x4, offset = 0x4, fixed_abs, tag = 'smem constant byte address 0x4 - core index']
  #allocation1 [shape = 'u32[144,128]{1,0:T(1,128)}', space=vmem, size = 0x12000, scoped, tag = 'internal scratch']
  %s0 = inlined_call_operand.vmem [shape: f32[64,32], index: 0, kind: input, shape index: {}, may-alias: {0,7}]
  %s1 = inlined_call_operand.vmem [shape: f32[1,32], index: 1, kind: input, shape index: {}]
  %s2 = inlined_call_operand.vmem [shape: f32[1,32], index: 2, kind: input, shape index: {}]
  %s3 = inlined_call_operand.vmem [shape: f32[32,256], index: 3, kind: input, shape index: {}]
  %s4 = inlined_call_operand.vmem [shape: f32[1,256], index: 4, kind: input, shape index: {}]
  %s5 = inlined_call_operand.vmem [shape: f32[128,32], index: 5, kind: input, shape index: {}]
  %s6 = inlined_call_operand.vmem [shape: f32[1,32], index: 6, kind: input, shape index: {}]
  %s7 = inlined_call_operand.vmem [shape: f32[64,32], index: 7, kind: input, shape index: {}, may-alias: {0,7}]
  %s8 = inlined_call_operand.hbm [shape: f32[64,32], index: 8, kind: output, shape index: {}]
  %s9 = sld [smem:[#allocation0]]
  $region42: #{basic_text_transformer_block_3d.15} parent=0
    _
  %s11 = ssub.s32 1, %s9
  %s12 = scalar_select 0, %s11, %s9
  $region1: #{basic_text_transformer_block_3d.15} parent=0
    #allocation2 [shape = 'u8[32768]{0}', space=vmem, size = 0x8000, scoped, tag = 'output window, operand 0, single buffered']
    #allocation3 [shape = 's32[1]{0}', space=sflag, size = 0x4, scoped, tag = 'scoped memory for basic_text_transformer_block_3d.15']
    %13 = vsyncpa [#allocation3], 0
    // Predicated region
    $region2: #{basic_text_transformer_block_3d.15} parent=1 // pred_check
      _
    $region3: #{basic_text_transformer_block_3d.15} parent=1 // pred_check_branch
      %15 = sbr.rel (0) target = $region5
    $region4: #{basic_text_transformer_block_3d.15} parent=1 // pred_region
      _
    $region5: #{basic_text_transformer_block_3d.15} parent=1 // pred_fallthru
      _
    // Predicated region
    $region6: #{basic_text_transformer_block_3d.15} parent=1 // pred_check
      _
    $region7: #{basic_text_transformer_block_3d.15} parent=1 // pred_check_branch
      %17 = sbr.rel (0) target = $region9
    $region8: #{basic_text_transformer_block_3d.15} parent=1 // pred_region
      _
    $region9: #{basic_text_transformer_block_3d.15} parent=1 // pred_fallthru
      _
    // Predicated region
    $region10: #{basic_text_transformer_block_3d.15} parent=1 // pred_check
      _
    $region11: #{basic_text_transformer_block_3d.15} parent=1 // pred_check_branch
      %19 = sbr.rel (0) target = $region13
    $region12: #{basic_text_transformer_block_3d.15} parent=1 // pred_region
      _
    $region13: #{basic_text_transformer_block_3d.15} parent=1 // pred_fallthru
      _
    // Predicated region
    $region14: #{basic_text_transformer_block_3d.15} parent=1 // pred_check
      _
    $region15: #{basic_text_transformer_block_3d.15} parent=1 // pred_check_branch
      %21 = sbr.rel (0) target = $region17
    $region16: #{basic_text_transformer_block_3d.15} parent=1 // pred_region
      _
    $region17: #{basic_text_transformer_block_3d.15} parent=1 // pred_fallthru
      _
    // Predicated region
    $region18: #{basic_text_transformer_block_3d.15} parent=1 // pred_check
      _
    $region19: #{basic_text_transformer_block_3d.15} parent=1 // pred_check_branch
      %23 = sbr.rel (0) target = $region21
    $region20: #{basic_text_transformer_block_3d.15} parent=1 // pred_region
      _
    $region21: #{basic_text_transformer_block_3d.15} parent=1 // pred_fallthru
      _
    // Predicated region
    $region22: #{basic_text_transformer_block_3d.15} parent=1 // pred_check
      _
    $region23: #{basic_text_transformer_block_3d.15} parent=1 // pred_check_branch
      %25 = sbr.rel (0) target = $region25
    $region24: #{basic_text_transformer_block_3d.15} parent=1 // pred_region
      _
    $region25: #{basic_text_transformer_block_3d.15} parent=1 // pred_fallthru
      _
    // Predicated region
    $region26: #{basic_text_transformer_block_3d.15} parent=1 // pred_check
      _
    $region27: #{basic_text_transformer_block_3d.15} parent=1 // pred_check_branch
      %27 = sbr.rel (0) target = $region29
    $region28: #{basic_text_transformer_block_3d.15} parent=1 // pred_region
      _
    $region29: #{basic_text_transformer_block_3d.15} parent=1 // pred_fallthru
      _
    // Predicated region
    $region30: #{basic_text_transformer_block_3d.15} parent=1 // pred_check
      _
    $region31: #{basic_text_transformer_block_3d.15} parent=1 // pred_check_branch
      %29 = sbr.rel (0) target = $region33
    $region32: #{basic_text_transformer_block_3d.15} parent=1 // pred_region
      _
    $region33: #{basic_text_transformer_block_3d.15} parent=1 // pred_fallthru
      _
    %v31 = vld [vmem:[%s0] sm:$0xff]
    %v32 = vld [vmem:[%s0 + $0x8] sm:$0xff]
    %v33 = vld [vmem:[%s0 + $0x10] sm:$0xff]
    %v34 = vld [vmem:[%s0 + $0x18] sm:$0xff]
    %v35 = vld [vmem:[%s0 + $0x20] sm:$0xff]
    %v36 = vld [vmem:[%s0 + $0x28] sm:$0xff]
    %v37 = vld [vmem:[%s0 + $0x30] sm:$0xff]
    %v38 = vld [vmem:[%s0 + $0x38] sm:$0xff]
    %v39 = vld [vmem:[%s1] sm:$0x1]
    %v40 = vld [vmem:[%s2] sm:$0x1]
    %vm41 = vcmask 261120
    %v42 = vsel %vm41, %v31, 0.0
    %43 = vadd.xlane.f32.xlu0 %v42
    %v44 = vpop.xlane.xlu0 %43
    %v45 = vsel %vm41, %v32, 0.0
    %46 = vadd.xlane.f32.xlu0 %v45
    %v47 = vpop.xlane.xlu0 %46
    %v48 = vsel %vm41, %v33, 0.0
    %49 = vadd.xlane.f32.xlu0 %v48
    %v50 = vpop.xlane.xlu0 %49
    %v51 = vsel %vm41, %v34, 0.0
    %52 = vadd.xlane.f32.xlu0 %v51
    %v53 = vpop.xlane.xlu0 %52
    %v54 = vsel %vm41, %v35, 0.0
    %55 = vadd.xlane.f32.xlu0 %v54
    %v56 = vpop.xlane.xlu0 %55
    %v57 = vsel %vm41, %v36, 0.0
    %58 = vadd.xlane.f32.xlu0 %v57
    %v59 = vpop.xlane.xlu0 %58
    %v60 = vsel %vm41, %v37, 0.0
    %61 = vadd.xlane.f32.xlu0 %v60
    %v62 = vpop.xlane.xlu0 %61
    %v63 = vsel %vm41, %v38, 0.0
    %64 = vadd.xlane.f32.xlu0 %v63
    %v65 = vpop.xlane.xlu0 %64
    %v66 = vrcp.pop 32.0
    %v67 = vmul.f32 %v44, %v66
    %v68 = vmul.f32 %v47, %v66
    %v69 = vmul.f32 %v50, %v66
    %v70 = vmul.f32 %v53, %v66
    %v71 = vmul.f32 %v56, %v66
    %v72 = vmul.f32 %v59, %v66
    %v73 = vmul.f32 %v62, %v66
    %v74 = vmul.f32 %v65, %v66
    %v75 = vsub.f32 %v31, %v67
    %v76 = vsub.f32 %v32, %v68
    %v77 = vsub.f32 %v33, %v69
    %v78 = vsub.f32 %v34, %v70
    %v79 = vsub.f32 %v35, %v71
    %v80 = vsub.f32 %v36, %v72
    %v81 = vsub.f32 %v37, %v73
    %v82 = vsub.f32 %v38, %v74
    %v83 = vmul.f32 %v75, %v75
    %v84 = vmul.f32 %v76, %v76
    %v85 = vmul.f32 %v77, %v77
    %v86 = vmul.f32 %v78, %v78
    %v87 = vmul.f32 %v79, %v79
    %v88 = vmul.f32 %v80, %v80
    %v89 = vmul.f32 %v81, %v81
    %v90 = vmul.f32 %v82, %v82
    %v91 = vsel %vm41, %v83, 0.0
    %92 = vadd.xlane.f32.xlu0 %v91
    %v93 = vpop.xlane.xlu0 %92
    %v94 = vsel %vm41, %v84, 0.0
    %95 = vadd.xlane.f32.xlu0 %v94
    %v96 = vpop.xlane.xlu0 %95
    %v97 = vsel %vm41, %v85, 0.0
    %98 = vadd.xlane.f32.xlu0 %v97
    %v99 = vpop.xlane.xlu0 %98
    %v100 = vsel %vm41, %v86, 0.0
    %101 = vadd.xlane.f32.xlu0 %v100
    %v102 = vpop.xlane.xlu0 %101
    %v103 = vsel %vm41, %v87, 0.0
    %104 = vadd.xlane.f32.xlu0 %v103
    %v105 = vpop.xlane.xlu0 %104
    %v106 = vsel %vm41, %v88, 0.0
    %107 = vadd.xlane.f32.xlu0 %v106
    %v108 = vpop.xlane.xlu0 %107
    %v109 = vsel %vm41, %v89, 0.0
    %110 = vadd.xlane.f32.xlu0 %v109
    %v111 = vpop.xlane.xlu0 %110
    %v112 = vsel %vm41, %v90, 0.0
    %113 = vadd.xlane.f32.xlu0 %v112
    %v114 = vpop.xlane.xlu0 %113
    %v115 = vmul.f32 %v93, %v66
    %v116 = vmul.f32 %v96, %v66
    %v117 = vmul.f32 %v99, %v66
    %v118 = vmul.f32 %v102, %v66
    %v119 = vmul.f32 %v105, %v66
    %v120 = vmul.f32 %v108, %v66
    %v121 = vmul.f32 %v111, %v66
    %v122 = vmul.f32 %v114, %v66
    %v123 = vadd.f32 %v115, 1e-05
    %v124 = vadd.f32 %v116, 1e-05
    %v125 = vadd.f32 %v117, 1e-05
    %v126 = vadd.f32 %v118, 1e-05
    %v127 = vadd.f32 %v119, 1e-05
    %v128 = vadd.f32 %v120, 1e-05
    %v129 = vadd.f32 %v121, 1e-05
    %v130 = vadd.f32 %v122, 1e-05
    %v131 = vrsqrt.pop %v123
    %v132 = vrsqrt.pop %v124
    %v133 = vrsqrt.pop %v125
    %v134 = vrsqrt.pop %v126
    %v135 = vrsqrt.pop %v127
    %v136 = vrsqrt.pop %v128
    %v137 = vrsqrt.pop %v129
    %v138 = vrsqrt.pop %v130
    %v139 = vmul.f32 %v75, %v131
    %v140 = vmul.f32 %v76, %v132
    %v141 = vmul.f32 %v77, %v133
    %v142 = vmul.f32 %v78, %v134
    %v143 = vmul.f32 %v79, %v135
    %v144 = vmul.f32 %v80, %v136
    %v145 = vmul.f32 %v81, %v137
    %v146 = vmul.f32 %v82, %v138
    %v148 = vlaneseq
    %v149 = vshrl.u32 %v148, 7
    %v150 = vsub.s32 0, %v149
    %v151 = vrot.slane %v39, %v150
    %v153 = vmul.f32 %v139, %v151
    %v154 = vmul.f32 %v140, %v151
    %v155 = vmul.f32 %v141, %v151
    %v156 = vmul.f32 %v142, %v151
    %v157 = vmul.f32 %v143, %v151
    %v158 = vmul.f32 %v144, %v151
    %v159 = vmul.f32 %v145, %v151
    %v160 = vmul.f32 %v146, %v151
    %v162 = vlaneseq
    %v163 = vshrl.u32 %v162, 7
    %v164 = vsub.s32 0, %v163
    %v165 = vrot.slane %v40, %v164
    %v167 = vadd.f32 %v153, %v165
    %v168 = vadd.f32 %v154, %v165
    %v169 = vadd.f32 %v155, %v165
    %v170 = vadd.f32 %v156, %v165
    %v171 = vadd.f32 %v157, %v165
    %v172 = vadd.f32 %v158, %v165
    %v173 = vadd.f32 %v159, %v165
    %v174 = vadd.f32 %v160, %v165
    %v175 = vpack.c.bf16 %v168, %v167
    %v176 = vpack.c.bf16 %v170, %v169
    %v177 = vpack.c.bf16 %v172, %v171
    %v178 = vpack.c.bf16 %v174, %v173
    %v179 = vld [vmem:[%s3] sm:$0xff]
    %v180 = vld [vmem:[%s3 + $0x8] sm:$0xff]
    %v181 = vld [vmem:[%s3 + $0x10] sm:$0xff]
    %v182 = vld [vmem:[%s3 + $0x18] sm:$0xff]
    %v183 = vld [vmem:[%s3 + $0x20] sm:$0xff]
    %v184 = vld [vmem:[%s3 + $0x28] sm:$0xff]
    %v185 = vld [vmem:[%s3 + $0x30] sm:$0xff]
    %v186 = vld [vmem:[%s3 + $0x38] sm:$0xff]
    %v187 = vpack.c.bf16 %v181, %v179
    %v188 = vpack.c.bf16 %v182, %v180
    %v189 = vpack.c.bf16 %v185, %v183
    %v190 = vpack.c.bf16 %v186, %v184
    %v191 = vld [vmem:[%s4] sm:$0x3]
    %v193 = vlaneseq
    %v194 = vshrl.u32 %v193, 7
    %v195 = vsub.s32 0, %v194
    %v196 = vrot.slane %v191, %v195
    %v197 = vlaneseq
    %v198 = vshrl.u32 %v197, 7
    %v199 = vsub.s32 1, %v198
    %v200 = vrot.slane %v191, %v199
    %v204 = vsel %vm41, %v175, 0
    %v207 = vsel %vm41, %v176, 0
    %v210 = vsel %vm41, %v177, 0
    %v213 = vsel %vm41, %v178, 0
    %215 = vmatprep.subr.bf16.mxu0 0
    %216 = vmatpush1.bf16.msra.mxu0 0
    %217 = vmatprep.subr.bf16.mxu0 0
    %218 = vmatpush1.bf16.msra.mxu0 0
    %219 = vmatprep.subr.bf16.mxu0 0
    %220 = vmatpush1.bf16.msra.mxu0 0
    %221 = vmatprep.subr.bf16.mxu0 0
    %222 = vmatpush1.bf16.msra.mxu0 0
    %223 = vmatprep.subr.bf16.mxu0 0
    %224 = vmatpush1.bf16.msra.mxu0 0
    %225 = vmatprep.subr.bf16.mxu0 0
    %226 = vmatpush1.bf16.msra.mxu0 0
    %227 = vmatprep.subr.bf16.mxu0 %v190
    %228 = vmatpush1.bf16.msra.mxu0 %v189
    %229 = vmatprep.subr.bf16.mxu0 %v188
    %230 = vmatpush1.bf16.msra.mxu0 %v187
    %231 = vmatprep.subr.bf16.mxu0 0
    %232 = vmatpush2.bf16.msra.mxu0 0
    %233 = vmatprep.subr.bf16.mxu0 0
    %234 = vmatpush2.bf16.msra.mxu0 0
    %235 = vmatprep.subr.bf16.mxu0 0
    %236 = vmatpush2.bf16.msra.mxu0 0
    %237 = vmatprep.subr.bf16.mxu0 0
    %238 = vmatpush2.bf16.msra.mxu0 0
    %239 = vmatprep.subr.bf16.mxu0 0
    %240 = vmatpush2.bf16.msra.mxu0 0
    %241 = vmatprep.subr.bf16.mxu0 0
    %242 = vmatpush2.bf16.msra.mxu0 0
    %243 = vmatprep.subr.bf16.mxu0 0
    %244 = vmatpush2.bf16.msra.mxu0 0
    %245 = vmatprep.subr.bf16.mxu0 0
    %246 = vmatpush2.bf16.msra.mxu0 0
    %247 = vmatprep.mubr.bf16.mxu0 0
    %248 = vmatmul.mubr.bf16.gmra.mxu0 %v204
    %v249 = vpop.f32.mrf.mxu0
    %v250 = vadd.f32 %v196, %v249
    %v251 = vpop.f32.mrf.mxu0
    %v252 = vadd.f32 %v200, %v251
    %v253 = vpop.f32.mrf.mxu0
    %v254 = vadd.f32 %v196, %v253
    %v255 = vpop.f32.mrf.mxu0
    %v256 = vadd.f32 %v200, %v255
    %257 = vmatprep.mubr.bf16.mxu0 0
    %258 = vmatmul.mubr.bf16.gmra.mxu0 %v207
    %v259 = vpop.f32.mrf.mxu0
    %v260 = vadd.f32 %v196, %v259
    %v261 = vpop.f32.mrf.mxu0
    %v262 = vadd.f32 %v200, %v261
    %v263 = vpop.f32.mrf.mxu0
    %v264 = vadd.f32 %v196, %v263
    %v265 = vpop.f32.mrf.mxu0
    %v266 = vadd.f32 %v200, %v265
    %267 = vmatprep.mubr.bf16.mxu0 0
    %268 = vmatmul.mubr.bf16.gmra.mxu0 %v210
    %v269 = vpop.f32.mrf.mxu0
    %v270 = vadd.f32 %v196, %v269
    %v271 = vpop.f32.mrf.mxu0
    %v272 = vadd.f32 %v200, %v271
    %v273 = vpop.f32.mrf.mxu0
    %v274 = vadd.f32 %v196, %v273
    %v275 = vpop.f32.mrf.mxu0
    %v276 = vadd.f32 %v200, %v275
    %277 = vmatprep.mubr.bf16.mxu0 0
    %278 = vmatmul.mubr.bf16.gmra.mxu0 %v213
    %v279 = vpop.f32.mrf.mxu0
    %v280 = vadd.f32 %v196, %v279
    %v281 = vpop.f32.mrf.mxu0
    %v282 = vadd.f32 %v200, %v281
    %v283 = vpop.f32.mrf.mxu0
    %v284 = vadd.f32 %v196, %v283
    %v285 = vpop.f32.mrf.mxu0
    %v286 = vadd.f32 %v200, %v285
    %287 = vdwg.mxu0
    %v288 = vmul.f32 %v252, 0.5
    %v289 = vmul.f32 %v256, 0.5
    %v290 = vmul.f32 %v262, 0.5
    %v291 = vmul.f32 %v266, 0.5
    %v292 = vmul.f32 %v272, 0.5
    %v293 = vmul.f32 %v276, 0.5
    %v294 = vmul.f32 %v282, 0.5
    %v295 = vmul.f32 %v286, 0.5
    %v296 = vmul.f32 %v252, 0.70710677
    %v297 = vmul.f32 %v256, 0.70710677
    %v298 = vmul.f32 %v262, 0.70710677
    %v299 = vmul.f32 %v266, 0.70710677
    %v300 = vmul.f32 %v272, 0.70710677
    %v301 = vmul.f32 %v276, 0.70710677
    %v302 = vmul.f32 %v282, 0.70710677
    %v303 = vmul.f32 %v286, 0.70710677
    %v304 = verf.f32.pop %v296
    %v305 = verf.f32.pop %v297
    %v306 = verf.f32.pop %v298
    %v307 = verf.f32.pop %v299
    %v308 = verf.f32.pop %v300
    %v309 = verf.f32.pop %v301
    %v310 = verf.f32.pop %v302
    %v311 = verf.f32.pop %v303
    %v312 = vadd.f32 %v304, 1.0
    %v313 = vadd.f32 %v305, 1.0
    %v314 = vadd.f32 %v306, 1.0
    %v315 = vadd.f32 %v307, 1.0
    %v316 = vadd.f32 %v308, 1.0
    %v317 = vadd.f32 %v309, 1.0
    %v318 = vadd.f32 %v310, 1.0
    %v319 = vadd.f32 %v311, 1.0
    %v320 = vmul.f32 %v288, %v312
    %v321 = vmul.f32 %v289, %v313
    %v322 = vmul.f32 %v290, %v314
    %v323 = vmul.f32 %v291, %v315
    %v324 = vmul.f32 %v292, %v316
    %v325 = vmul.f32 %v293, %v317
    %v326 = vmul.f32 %v294, %v318
    %v327 = vmul.f32 %v295, %v319
    %v328 = vmul.f32 %v250, %v320
    %v329 = vmul.f32 %v254, %v321
    %v330 = vmul.f32 %v260, %v322
    %v331 = vmul.f32 %v264, %v323
    %v332 = vmul.f32 %v270, %v324
    %v333 = vmul.f32 %v274, %v325
    %v334 = vmul.f32 %v280, %v326
    %v335 = vmul.f32 %v284, %v327
    %v336 = vpack.c.bf16 %v329, %v328
    %v337 = vpack.c.bf16 %v331, %v330
    %v338 = vpack.c.bf16 %v333, %v332
    %v339 = vpack.c.bf16 %v335, %v334
    %v340 = vld [vmem:[%s5] sm:$0xff]
    %v341 = vld [vmem:[%s5 + $0x8] sm:$0xff]
    %v342 = vld [vmem:[%s5 + $0x10] sm:$0xff]
    %v343 = vld [vmem:[%s5 + $0x18] sm:$0xff]
    %v344 = vld [vmem:[%s5 + $0x20] sm:$0xff]
    %v345 = vld [vmem:[%s5 + $0x28] sm:$0xff]
    %v346 = vld [vmem:[%s5 + $0x30] sm:$0xff]
    %v347 = vld [vmem:[%s5 + $0x38] sm:$0xff]
    %v348 = vld [vmem:[%s5 + $0x40] sm:$0xff]
    %v349 = vld [vmem:[%s5 + $0x48] sm:$0xff]
    %v350 = vld [vmem:[%s5 + $0x50] sm:$0xff]
    %v351 = vld [vmem:[%s5 + $0x58] sm:$0xff]
    %v352 = vld [vmem:[%s5 + $0x60] sm:$0xff]
    %v353 = vld [vmem:[%s5 + $0x68] sm:$0xff]
    %v354 = vld [vmem:[%s5 + $0x70] sm:$0xff]
    %v355 = vld [vmem:[%s5 + $0x78] sm:$0xff]
    %v356 = vpack.c.bf16 %v341, %v340
    %v357 = vpack.c.bf16 %v343, %v342
    %v358 = vpack.c.bf16 %v345, %v344
    %v359 = vpack.c.bf16 %v347, %v346
    %v360 = vpack.c.bf16 %v349, %v348
    %v361 = vpack.c.bf16 %v351, %v350
    %v362 = vpack.c.bf16 %v353, %v352
    %v363 = vpack.c.bf16 %v355, %v354
    %v364 = vld [vmem:[%s6] sm:$0x1]
    %v366 = vlaneseq
    %v367 = vshrl.u32 %v366, 7
    %v368 = vsub.s32 0, %v367
    %v369 = vrot.slane %v364, %v368
    %371 = vmatprep.subr.bf16.mxu0 0
    %372 = vmatpush1.bf16.msra.mxu0 %v363
    %373 = vmatprep.subr.bf16.mxu0 0
    %374 = vmatpush1.bf16.msra.mxu0 %v362
    %375 = vmatprep.subr.bf16.mxu0 0
    %376 = vmatpush1.bf16.msra.mxu0 %v361
    %377 = vmatprep.subr.bf16.mxu0 0
    %378 = vmatpush1.bf16.msra.mxu0 %v360
    %379 = vmatprep.subr.bf16.mxu0 0
    %380 = vmatpush1.bf16.msra.mxu0 %v359
    %381 = vmatprep.subr.bf16.mxu0 0
    %382 = vmatpush1.bf16.msra.mxu0 %v358
    %383 = vmatprep.subr.bf16.mxu0 0
    %384 = vmatpush1.bf16.msra.mxu0 %v357
    %385 = vmatprep.subr.bf16.mxu0 0
    %386 = vmatpush1.bf16.msra.mxu0 %v356
    %387 = vmatprep.subr.bf16.mxu0 0
    %388 = vmatpush2.bf16.msra.mxu0 0
    %389 = vmatprep.subr.bf16.mxu0 0
    %390 = vmatpush2.bf16.msra.mxu0 0
    %391 = vmatprep.subr.bf16.mxu0 0
    %392 = vmatpush2.bf16.msra.mxu0 0
    %393 = vmatprep.subr.bf16.mxu0 0
    %394 = vmatpush2.bf16.msra.mxu0 0
    %395 = vmatprep.subr.bf16.mxu0 0
    %396 = vmatpush2.bf16.msra.mxu0 0
    %397 = vmatprep.subr.bf16.mxu0 0
    %398 = vmatpush2.bf16.msra.mxu0 0
    %399 = vmatprep.subr.bf16.mxu0 0
    %400 = vmatpush2.bf16.msra.mxu0 0
    %401 = vmatprep.subr.bf16.mxu0 0
    %402 = vmatpush2.bf16.msra.mxu0 0
    %403 = vmatprep.mubr.bf16.mxu0 0
    %404 = vmatmul.mubr.bf16.gmra.mxu0 %v336
    %v405 = vpop.f32.mrf.mxu0
    %v406 = vadd.f32 %v369, %v405
    %v407 = vpop.f32.mrf.mxu0
    %v408 = vpop.f32.mrf.mxu0
    %v409 = vadd.f32 %v369, %v408
    %v410 = vpop.f32.mrf.mxu0
    %411 = vmatprep.mubr.bf16.mxu0 0
    %412 = vmatmul.mubr.bf16.gmra.mxu0 %v337
    %v413 = vpop.f32.mrf.mxu0
    %v414 = vadd.f32 %v369, %v413
    %v415 = vpop.f32.mrf.mxu0
    %v416 = vpop.f32.mrf.mxu0
    %v417 = vadd.f32 %v369, %v416
    %v418 = vpop.f32.mrf.mxu0
    %419 = vmatprep.mubr.bf16.mxu0 0
    %420 = vmatmul.mubr.bf16.gmra.mxu0 %v338
    %v421 = vpop.f32.mrf.mxu0
    %v422 = vadd.f32 %v369, %v421
    %v423 = vpop.f32.mrf.mxu0
    %v424 = vpop.f32.mrf.mxu0
    %v425 = vadd.f32 %v369, %v424
    %v426 = vpop.f32.mrf.mxu0
    %427 = vmatprep.mubr.bf16.mxu0 0
    %428 = vmatmul.mubr.bf16.gmra.mxu0 %v339
    %v429 = vpop.f32.mrf.mxu0
    %v430 = vadd.f32 %v369, %v429
    %v431 = vpop.f32.mrf.mxu0
    %v432 = vpop.f32.mrf.mxu0
    %v433 = vadd.f32 %v369, %v432
    %v434 = vpop.f32.mrf.mxu0
    %435 = vdwg.mxu0
    %v436 = vld [vmem:[%s7] sm:$0xff]
    %v437 = vld [vmem:[%s7 + $0x8] sm:$0xff]
    %v438 = vld [vmem:[%s7 + $0x10] sm:$0xff]
    %v439 = vld [vmem:[%s7 + $0x18] sm:$0xff]
    %v440 = vld [vmem:[%s7 + $0x20] sm:$0xff]
    %v441 = vld [vmem:[%s7 + $0x28] sm:$0xff]
    %v442 = vld [vmem:[%s7 + $0x30] sm:$0xff]
    %v443 = vld [vmem:[%s7 + $0x38] sm:$0xff]
    %v444 = vadd.f32 %v406, %v436
    %v445 = vadd.f32 %v409, %v437
    %v446 = vadd.f32 %v414, %v438
    %v447 = vadd.f32 %v417, %v439
    %v448 = vadd.f32 %v422, %v440
    %v449 = vadd.f32 %v425, %v441
    %v450 = vadd.f32 %v430, %v442
    %v451 = vadd.f32 %v433, %v443
    %452 = vst.msk [vmem:[#allocation2] sm:$0xff] %vm41, %v444
    %453 = vst.msk [vmem:[#allocation2 + $0x8] sm:$0xff] %vm41, %v445
    %454 = vst.msk [vmem:[#allocation2 + $0x10] sm:$0xff] %vm41, %v446
    %455 = vst.msk [vmem:[#allocation2 + $0x18] sm:$0xff] %vm41, %v447
    %456 = vst.msk [vmem:[#allocation2 + $0x20] sm:$0xff] %vm41, %v448
    %457 = vst.msk [vmem:[#allocation2 + $0x28] sm:$0xff] %vm41, %v449
    %458 = vst.msk [vmem:[#allocation2 + $0x30] sm:$0xff] %vm41, %v450
    %459 = vst.msk [vmem:[#allocation2 + $0x38] sm:$0xff] %vm41, %v451
    // Predicated region
    $region34: #{basic_text_transformer_block_3d.15} parent=1 // pred_check
      _
    $region35: #{basic_text_transformer_block_3d.15} parent=1 // pred_check_branch
      %461 = sbr.rel (0) target = $region37
    $region36: #{basic_text_transformer_block_3d.15} parent=1 // pred_region
      %s463 = ssub.s32 1024, 1024
      %464 = vsyncadd [#allocation3], %s463
      %s465 = sshll.u32 [#allocation2], 4
      %s466 = int_to_ptr.vmem [resolvable:$true] %s465
      %471 = dma.vmem_to_hbm [thread:$0]  %s466, 1024, %s8, [#allocation3], 128, 128, 8
    $region37: #{basic_text_transformer_block_3d.15} parent=1 // pred_fallthru
      _
    // Predicated region
    $region38: #{basic_text_transformer_block_3d.15} parent=1 // pred_check
      _
    $region39: #{basic_text_transformer_block_3d.15} parent=1 // pred_check_branch
      %473 = sbr.rel (0) target = $region41
    $region40: #{basic_text_transformer_block_3d.15} parent=1 // pred_region
      %474 = dma.done [#allocation3], 1024
    $region41: #{basic_text_transformer_block_3d.15} parent=1 // pred_fallthru
      _
    %475 = vsyncpa [#allocation3], 1

</llo_original>
